<compile_context>
chip_gen: v7x
topology: tpu7x:2x2x1
jax: 0.10.0
libtpu: 0.0.40
codegen_flags: <defaults>
</compile_context>

<pallas_src>
import jax
import jax.numpy as jnp
from jax.experimental import pallas as pl
from jax.experimental.pallas import tpu as pltpu


def _add_relu_conv1x1_kernel(x_ref, y_ref, w_ref, o_ref):
    # x_ref, y_ref: (C_in, HW) f32 (resident)   w_ref: (TC_out, C_in) f32   o_ref: (TC_out, HW) f32
    z = jnp.maximum(x_ref[...] + y_ref[...], 0.0).astype(jnp.bfloat16)   # add + ReLU (f32) -> bf16
    w = w_ref[...].astype(jnp.bfloat16)                                   # cast tile in-kernel
    o_ref[...] = jnp.dot(
        w, z, preferred_element_type=jnp.float32                          # bf16 MXU, f32 accumulate
    ).astype(o_ref.dtype)


def _largest_tile(dim, multiple=8, cap=256):
    """Largest divisor of `dim` that is a multiple of `multiple` and <= cap (else full dim)."""
    best = dim
    t = multiple
    while t <= min(dim, cap):
        if dim % t == 0:
            best = t
        t += multiple
    return best


def add_relu_conv1x1(x39, x53, weight):
    """x39, x53: (1, C, H, W) float32; weight: (C_out, C_in, 1, 1) float32."""
    n, c, h, w = x39.shape
    assert n == 1, "kernel written for batch size 1 (as in the reference module)"
    c_out = weight.shape[0]
    hw = h * w

    # Free (contiguous) reshapes only — no pads, slices or dtype-convert passes in the wrapper.
    x2d = x39.reshape(c, hw)
    y2d = x53.reshape(c, hw)
    w2d = weight.reshape(c_out, c)

    tc = _largest_tile(c_out)            # 696 -> 232 (sublane-aligned), grid of 3
    grid = (c_out // tc,)

    cost = pl.CostEstimate(
        flops=2 * c_out * c * hw,
        transcendentals=0,
        bytes_accessed=(2 * c * hw * 4 + c_out * c * 4 + c_out * hw * 4),
    )

    out2d = pl.pallas_call(
        _add_relu_conv1x1_kernel,
        out_shape=jax.ShapeDtypeStruct((c_out, hw), x39.dtype),
        grid=grid,
        in_specs=[
            pl.BlockSpec((c, hw), lambda i: (0, 0)),      # x resident (fetched once)
            pl.BlockSpec((c, hw), lambda i: (0, 0)),      # y resident (fetched once)
            pl.BlockSpec((tc, c), lambda i: (i, 0)),      # weight tile marches along C_out
        ],
        out_specs=pl.BlockSpec((tc, hw), lambda i: (i, 0)),
        compiler_params=pltpu.CompilerParams(
            dimension_semantics=("parallel",),            # independent C_out tiles -> megacore
        ),
        cost_estimate=cost,
    )(x2d, y2d, w2d)

    return out2d.reshape(1, c_out, h, w)


if __name__ == "__main__":
    # Shapes taken directly from the module: [1, 696, 28, 28], Conv2d(696, 696, 1x1, bias=False)
    N, C, H, W = 1, 696, 28, 28
    key = jax.random.PRNGKey(0)
    k1, k2, k3 = jax.random.split(key, 3)

    x39 = jax.random.normal(k1, (N, C, H, W), dtype=jnp.float32)
    x53 = jax.random.normal(k2, (N, C, H, W), dtype=jnp.float32)

    # Deterministic weight init (kaiming-uniform-like bound for a 1x1 conv).
    fan_in = C
    bound = 1.0 / (fan_in ** 0.5)
    weight = jax.random.uniform(
        k3, (C, C, 1, 1), dtype=jnp.float32, minval=-bound, maxval=bound
    )

    out = add_relu_conv1x1(x39, x53, weight)
    out = jax.block_until_ready(out)

    # Pure-JAX f32 reference check (tolerance loosened for the bf16 MXU operands).
    z_ref = jnp.maximum(x39 + x53, 0.0).reshape(C, H * W)
    ref = (weight.reshape(C, C) @ z_ref).reshape(1, C, H, W)
    assert out.shape == (N, C, H, W)
    assert jnp.allclose(out, ref, atol=5e-2, rtol=5e-2), "mismatch vs reference"

    print("KERNEL_OK")
</pallas_src>

<mosaic_0001>
module attributes {stable_mosaic.version = 11 : i64} {
  func.func @_add_relu_conv1x1_kernel(%arg0: i32, %arg1: memref<696x784xf32, #tpu.memory_space<vmem>>, %arg2: memref<696x784xf32, #tpu.memory_space<vmem>>, %arg3: memref<232x696xf32, #tpu.memory_space<vmem>>, %arg4: memref<232x784xf32, #tpu.memory_space<vmem>>) attributes {dimension_semantics = [#tpu.dimension_semantics<parallel>], iteration_bounds = array<i64: 3>, scalar_prefetch = 0 : i64, scratch_operands = 0 : i64, tpu.core_type = #tpu.core_type<tc>, window_params = [{pipeline_mode = #tpu.pipeline_mode<synchronous>, transform_indices = @transform_0, window_bounds = array<i64: 696, 784>}, {pipeline_mode = #tpu.pipeline_mode<synchronous>, transform_indices = @transform_1, window_bounds = array<i64: 696, 784>}, {transform_indices = @transform_2, window_bounds = array<i64: 232, 696>}, {transform_indices = @transform_3, window_bounds = array<i64: 232, 784>}]} {
    %c0 = arith.constant 0 : index
    %c0_0 = arith.constant 0 : index
    %0 = vector.load %arg1[%c0, %c0_0] : memref<696x784xf32, #tpu.memory_space<vmem>>, vector<696x784xf32>
    %c0_1 = arith.constant 0 : index
    %c0_2 = arith.constant 0 : index
    %1 = vector.load %arg2[%c0_1, %c0_2] : memref<696x784xf32, #tpu.memory_space<vmem>>, vector<696x784xf32>
    %2 = arith.addf %0, %1 : vector<696x784xf32>
    %cst = arith.constant 0.000000e+00 : f32
    %3 = vector.broadcast %cst : f32 to vector<696x784xf32>
    %4 = arith.maximumf %2, %3 : vector<696x784xf32>
    %5 = arith.truncf %4 : vector<696x784xf32> to vector<696x784xbf16>
    %c0_3 = arith.constant 0 : index
    %c0_4 = arith.constant 0 : index
    %6 = vector.load %arg3[%c0_3, %c0_4] : memref<232x696xf32, #tpu.memory_space<vmem>>, vector<232x696xf32>
    %7 = arith.truncf %6 : vector<232x696xf32> to vector<232x696xbf16>
    %cst_5 = arith.constant dense<0.000000e+00> : vector<232x784xf32>
    %8 = tpu.matmul %7, %5, %cst_5 {dimension_numbers = #tpu.dot_dimension_numbers<[1], [0], [0], [1], [0, 0, 1, 1], [], []>} : vector<232x696xbf16>, vector<696x784xbf16>, vector<232x784xf32> -> vector<232x784xf32>
    %c0_6 = arith.constant 0 : index
    %c0_7 = arith.constant 0 : index
    %9 = vector.load %arg4[%c0_6, %c0_7] : memref<232x784xf32, #tpu.memory_space<vmem>>, vector<232x784xf32>
    tpu.vector_store %arg4[%c0_6, %c0_7], %8 {strides = array<i32>} : memref<232x784xf32, #tpu.memory_space<vmem>>, vector<232x784xf32>,
    return
  }
  func.func @transform_0(%arg0: i32) -> (i32, i32) {
    %c0_i32 = arith.constant 0 : i32
    %c0_i32_0 = arith.constant 0 : i32
    %c0_i32_1 = arith.constant 0 : i32
    return %c0_i32, %c0_i32_0 : i32, i32
  }
  func.func @transform_1(%arg0: i32) -> (i32, i32) {
    %c0_i32 = arith.constant 0 : i32
    %c0_i32_0 = arith.constant 0 : i32
    %c0_i32_1 = arith.constant 0 : i32
    return %c0_i32, %c0_i32_0 : i32, i32
  }
  func.func @transform_2(%arg0: i32) -> (i32, i32) {
    %c0_i32 = arith.constant 0 : i32
    %c0_i32_0 = arith.constant 0 : i32
    return %arg0, %c0_i32 : i32, i32
  }
  func.func @transform_3(%arg0: i32) -> (i32, i32) {
    %c0_i32 = arith.constant 0 : i32
    %c0_i32_0 = arith.constant 0 : i32
    return %arg0, %c0_i32 : i32, i32
  }
}

</mosaic_0001>

<llo_original>
// kernel: tpu_custom_call.1
$region0: #{tpu_custom_call.1}
  #allocation0 [shape = 'u32[]', space=smem, size = 0x4, offset = 0x4, fixed_abs, tag = 'smem constant byte address 0x4 - core index']
  #allocation1 [shape = 'u32[144,128]{1,0:T(1,128)}', space=vmem, size = 0x12000, scoped, tag = 'internal scratch']
  %s0 = inlined_call_operand.vmem [shape: f32[696,784], index: 0, kind: input, shape index: {}]
  %s1 = inlined_call_operand.vmem [shape: f32[696,784], index: 1, kind: input, shape index: {}]
  %s2 = inlined_call_operand.vmem [shape: f32[696,696], index: 2, kind: input, shape index: {}]
  %s3 = inlined_call_operand.vmem [shape: f32[696,784], index: 3, kind: output, shape index: {}]
  %s4 = sld [smem:[#allocation0]]
  $region45: #{tpu_custom_call.1} parent=0
    _
  %s6 = ssub.s32 1, %s4
  %s7 = scalar_select 0, %s6, %s4
  loop: start=0, step=1, limit=5
  $region2: #{tpu_custom_call.1} parent=0 // loop_pre_header
    _
  $region3: #{tpu_custom_call.1} parent=0 // loop_header
    %s9 = sphi 0, %s13
    %p10 = scmp.ge.s32.totalorder %s9, 5
    %s17 = sphi 0, %s17
    %s19 = sphi 0, %s17
    %s20 = sphi 0, %s19
    %s34 = sphi 0, %s20
    %s38 = sphi 0, %s38
    %s40 = sphi 0, %s38
    %s41 = sphi 0, %s40
    %s55 = sphi 0, %s41
    %s61 = sphi 0, %s63
    %s64 = sphi 0, %s61
    %s65 = sphi 0, %s64
    %s81 = sphi 0, %s65
    %s87 = sphi 0, %s89
    %s90 = sphi 0, %s87
    %s91 = sphi 0, %s90
    %s107 = sphi 0, %s91
  $region4: #{tpu_custom_call.1} parent=0 // loop_header_branch
    %12 = sbr.rel (%p10) target = $region8
  $region5: #{tpu_custom_call.1} parent=0 // loop_body
    %s14 = ssub.s32 %s9, 1
    %s15 = ssub.s32 %s9, 2
    %s16 = sadd.s32 %s9, 1
    %s18 = sadd.s32 %s17, 1
    %p21 = scmp.eq.s32.totalorder %s9, 2
    %p22 = scmp.ne.s32.totalorder %s17, %s19
    %p23 = scmp.eq.s32.totalorder %s9, 0
    %p24 = por %p22, %p23
    %p25 = scmp.ne.s32.totalorder %s17, %s19
    %p26 = scmp.eq.s32.totalorder %s14, 2
    %p27 = por %p25, %p26
    %p28 = scmp.ne.s32.totalorder %s19, %s20
    %p29 = scmp.eq.s32.totalorder %s14, 0
    %p30 = por %p28, %p29
    %p31 = scmp.ne.s32.totalorder %s19, %s20
    %p32 = scmp.eq.s32.totalorder %s15, 2
    %p33 = por %p31, %p32
    %p35 = scmp.ne.s32.totalorder %s20, %s34
    %p36 = scmp.eq.s32.totalorder %s15, 0
    %p37 = por %p35, %p36
    %s39 = sadd.s32 %s38, 1
    %p42 = scmp.eq.s32.totalorder %s9, 2
    %p43 = scmp.ne.s32.totalorder %s38, %s40
    %p44 = scmp.eq.s32.totalorder %s9, 0
    %p45 = por %p43, %p44
    %p46 = scmp.ne.s32.totalorder %s38, %s40
    %p47 = scmp.eq.s32.totalorder %s14, 2
    %p48 = por %p46, %p47
    %p49 = scmp.ne.s32.totalorder %s40, %s41
    %p50 = scmp.eq.s32.totalorder %s14, 0
    %p51 = por %p49, %p50
    %p52 = scmp.ne.s32.totalorder %s40, %s41
    %p53 = scmp.eq.s32.totalorder %s15, 2
    %p54 = por %p52, %p53
    %p56 = scmp.ne.s32.totalorder %s41, %s55
    %p57 = scmp.eq.s32.totalorder %s15, 0
    %p58 = por %p56, %p57
    %s59 = ssub.s32 %s9, %s16
    %p60 = scmp.eq.s32.totalorder %s59, 0
    %s62 = sadd.s32 %s61, 1
    %s63 = scalar_select %p60, %s61, %s62
    %p66 = pneg %p60
    %p67 = scmp.eq.s32.totalorder %s9, 2
    %p68 = por %p66, %p67
    %p69 = scmp.ne.s32.totalorder %s61, %s64
    %p70 = scmp.eq.s32.totalorder %s9, 0
    %p71 = por %p69, %p70
    %p72 = scmp.ne.s32.totalorder %s61, %s64
    %p73 = scmp.eq.s32.totalorder %s14, 2
    %p74 = por %p72, %p73
    %p75 = scmp.ne.s32.totalorder %s64, %s65
    %p76 = scmp.eq.s32.totalorder %s14, 0
    %p77 = por %p75, %p76
    %p78 = scmp.ne.s32.totalorder %s64, %s65
    %p79 = scmp.eq.s32.totalorder %s15, 2
    %p80 = por %p78, %p79
    %p82 = scmp.ne.s32.totalorder %s65, %s81
    %p83 = scmp.eq.s32.totalorder %s15, 0
    %p84 = por %p82, %p83
    %s85 = ssub.s32 %s9, %s16
    %p86 = scmp.eq.s32.totalorder %s85, 0
    %s88 = sadd.s32 %s87, 1
    %s89 = scalar_select %p86, %s87, %s88
    %p92 = pneg %p86
    %p93 = scmp.eq.s32.totalorder %s9, 2
    %p94 = por %p92, %p93
    %p95 = scmp.ne.s32.totalorder %s87, %s90
    %p96 = scmp.eq.s32.totalorder %s9, 0
    %p97 = por %p95, %p96
    %p98 = scmp.ne.s32.totalorder %s87, %s90
    %p99 = scmp.eq.s32.totalorder %s14, 2
    %p100 = por %p98, %p99
    %p101 = scmp.ne.s32.totalorder %s90, %s91
    %p102 = scmp.eq.s32.totalorder %s14, 0
    %p103 = por %p101, %p102
    %p104 = scmp.ne.s32.totalorder %s90, %s91
    %p105 = scmp.eq.s32.totalorder %s15, 2
    %p106 = por %p104, %p105
    %p108 = scmp.ne.s32.totalorder %s91, %s107
    %p109 = scmp.eq.s32.totalorder %s15, 0
    %p110 = por %p108, %p109
    %p111 = scmp.le.s32.totalorder 1, %s9
    %p112 = scmp.lt.s32.totalorder %s9, 4
    %p113 = pnand %p111, %p112
    %p114 = pneg %p113
    // Predicated region
    $region9: #{tpu_custom_call.1} parent=5 // pred_check
      _
    $region10: #{tpu_custom_call.1} parent=5 // pred_check_branch
      %116 = sbr.rel (%p113) target = $region12
    $region11: #{tpu_custom_call.1} parent=5 // pred_region
      %s117 = ssub.s32 %s9, 1
      // Predicated region
      $region13: #{tpu_custom_call.1} parent=11 // pred_check
        %p118 = pneg %p30
      $region14: #{tpu_custom_call.1} parent=11 // pred_check_branch
        %120 = sbr.rel (%p118) target = $region16
      $region15: #{tpu_custom_call.1} parent=11 // pred_region
        _
      $region16: #{tpu_custom_call.1} parent=11 // pred_fallthru
        _
      // Predicated region
      $region17: #{tpu_custom_call.1} parent=11 // pred_check
        %p121 = pneg %p51
      $region18: #{tpu_custom_call.1} parent=11 // pred_check_branch
        %123 = sbr.rel (%p121) target = $region20
      $region19: #{tpu_custom_call.1} parent=11 // pred_region
        _
      $region20: #{tpu_custom_call.1} parent=11 // pred_fallthru
        _
    $region12: #{tpu_custom_call.1} parent=5 // pred_fallthru
      _
    %p124 = scmp.lt.s32.totalorder %s9, 3
    // Predicated region
    $region21: #{tpu_custom_call.1} parent=5 // pred_check
      %p125 = pneg %p124
    $region22: #{tpu_custom_call.1} parent=5 // pred_check_branch
      %127 = sbr.rel (%p125) target = $region24
    $region23: #{tpu_custom_call.1} parent=5 // pred_region
      // Predicated region
      $region25: #{tpu_custom_call.1} parent=23 // pred_check
        %p128 = pneg %p71
      $region26: #{tpu_custom_call.1} parent=23 // pred_check_branch
        %130 = sbr.rel (%p128) target = $region28
      $region27: #{tpu_custom_call.1} parent=23 // pred_region
        %s131 = smul.u32 29, %s9
        %p132 = scmp.lt.s32.totalorder %s131, 86
        %s133 = scalar_select %p132, %s131, 86
        %s134 = smul.addr %s133, 6
        %s135 = smul.addr %s134, 8
        %s136 = scalar_lea.vmem %s2, %s135
        %s137 = smul.u32 29, %s9
      $region28: #{tpu_custom_call.1} parent=23 // pred_fallthru
        _
    $region24: #{tpu_custom_call.1} parent=5 // pred_fallthru
      _
    %p138 = scmp.le.s32.totalorder 1, %s9
    %p139 = scmp.lt.s32.totalorder %s9, 4
    %p140 = pnand %p138, %p139
    %p141 = pneg %p140
    // Predicated region
    $region29: #{tpu_custom_call.1} parent=5 // pred_check
      _
    $region30: #{tpu_custom_call.1} parent=5 // pred_check_branch
      %143 = sbr.rel (%p140) target = $region32
    $region31: #{tpu_custom_call.1} parent=5 // pred_region
      %s144 = ssub.s32 %s9, 1
      %p145 = pneg %p30
      %p146 = pneg %p27
      %p147 = pneg %p51
      %p148 = pneg %p48
      %s149 = smul.u32 29, %s14
      %p150 = scmp.lt.s32.totalorder %s149, 86
      %s151 = scalar_select %p150, %s149, 86
      %s152 = smul.addr %s151, 6
      %s153 = smul.addr %s152, 8
      %s154 = scalar_lea.vmem %s2, %s153
      %p155 = pneg %p77
      %p156 = pneg %p74
      %p157 = pneg %p103
      %p158 = pneg %p100
      %s159 = smul.u32 29, %s14
      %p160 = scmp.lt.s32.totalorder %s159, 86
      %s161 = scalar_select %p160, %s159, 86
      %s162 = smul.addr %s161, 7
      %s163 = smul.addr %s162, 8
      %s164 = scalar_lea.vmem %s3, %s163
      %s165 = smul.u32 29, %s14
      %p166 = scmp.lt.s32.totalorder %s165, 86
      %s167 = scalar_select %p166, %s165, 86
      %s168 = smul.addr %s167, 6
      %s169 = smul.addr %s168, 8
      %s170 = scalar_lea.vmem %s2, %s169
      %s171 = smul.u32 29, %s14
      %s172 = smul.u32 29, %s14
      %p173 = scmp.lt.s32.totalorder %s172, 86
      %s174 = scalar_select %p173, %s172, 86
      %s175 = smul.addr %s174, 7
      %s176 = smul.addr %s175, 8
      %s177 = scalar_lea.vmem %s3, %s176
      %s178 = smul.u32 29, %s14
      %v180 = vld [vmem:[%s0] sm:$0xff]
      %v181 = vld [vmem:[%s0 + $0x8] sm:$0xff]
      %v182 = vld [vmem:[%s0 + $0x10] sm:$0xff]
      %v183 = vld [vmem:[%s0 + $0x18] sm:$0xff]
      %v184 = vld [vmem:[%s0 + $0x20] sm:$0xff]
      %v185 = vld [vmem:[%s0 + $0x28] sm:$0xff]
      %v186 = vld [vmem:[%s0 + $0x30] sm:$0xff]
      %v187 = vld [vmem:[%s0 + $0x38] sm:$0xff]
      %v188 = vld [vmem:[%s0 + $0x40] sm:$0xff]
      %v189 = vld [vmem:[%s0 + $0x48] sm:$0xff]
      %v190 = vld [vmem:[%s0 + $0x50] sm:$0xff]
      %v191 = vld [vmem:[%s0 + $0x58] sm:$0xff]
      %v192 = vld [vmem:[%s0 + $0x60] sm:$0xff]
      %v193 = vld [vmem:[%s0 + $0x68] sm:$0xff]
      %v194 = vld [vmem:[%s0 + $0x70] sm:$0xff]
      %v195 = vld [vmem:[%s0 + $0x78] sm:$0xff]
      %v196 = vld [vmem:[%s0 + $0x80] sm:$0xff]
      %v197 = vld [vmem:[%s0 + $0x88] sm:$0xff]
      %v198 = vld [vmem:[%s0 + $0x90] sm:$0xff]
      %v199 = vld [vmem:[%s0 + $0x98] sm:$0xff]
      %v200 = vld [vmem:[%s0 + $0xa0] sm:$0xff]
      %v201 = vld [vmem:[%s0 + $0xa8] sm:$0xff]
      %v202 = vld [vmem:[%s0 + $0xb0] sm:$0xff]
      %v203 = vld [vmem:[%s0 + $0xb8] sm:$0xff]
      %v204 = vld [vmem:[%s0 + $0xc0] sm:$0xff]
      %v205 = vld [vmem:[%s0 + $0xc8] sm:$0xff]
      %v206 = vld [vmem:[%s0 + $0xd0] sm:$0xff]
      %v207 = vld [vmem:[%s0 + $0xd8] sm:$0xff]
      %v208 = vld [vmem:[%s0 + $0xe0] sm:$0xff]
      %v209 = vld [vmem:[%s0 + $0xe8] sm:$0xff]
      %v210 = vld [vmem:[%s0 + $0xf0] sm:$0xff]
      %v211 = vld [vmem:[%s0 + $0xf8] sm:$0xff]
      %v212 = vld [vmem:[%s0 + $0x100] sm:$0xff]
      %v213 = vld [vmem:[%s0 + $0x108] sm:$0xff]
      %v214 = vld [vmem:[%s0 + $0x110] sm:$0xff]
      %v215 = vld [vmem:[%s0 + $0x118] sm:$0xff]
      %v216 = vld [vmem:[%s0 + $0x120] sm:$0xff]
      %v217 = vld [vmem:[%s0 + $0x128] sm:$0xff]
      %v218 = vld [vmem:[%s0 + $0x130] sm:$0xff]
      %v219 = vld [vmem:[%s0 + $0x138] sm:$0xff]
      %v220 = vld [vmem:[%s0 + $0x140] sm:$0xff]
      %v221 = vld [vmem:[%s0 + $0x148] sm:$0xff]
      %v222 = vld [vmem:[%s0 + $0x150] sm:$0xff]
      %v223 = vld [vmem:[%s0 + $0x158] sm:$0xff]
      %v224 = vld [vmem:[%s0 + $0x160] sm:$0xff]
      %v225 = vld [vmem:[%s0 + $0x168] sm:$0xff]
      %v226 = vld [vmem:[%s0 + $0x170] sm:$0xff]
      %v227 = vld [vmem:[%s0 + $0x178] sm:$0xff]
      %v228 = vld [vmem:[%s0 + $0x180] sm:$0xff]
      %v229 = vld [vmem:[%s0 + $0x188] sm:$0xff]
      %v230 = vld [vmem:[%s0 + $0x190] sm:$0xff]
      %v231 = vld [vmem:[%s0 + $0x198] sm:$0xff]
      %v232 = vld [vmem:[%s0 + $0x1a0] sm:$0xff]
      %v233 = vld [vmem:[%s0 + $0x1a8] sm:$0xff]
      %v234 = vld [vmem:[%s0 + $0x1b0] sm:$0xff]
      %v235 = vld [vmem:[%s0 + $0x1b8] sm:$0xff]
      %v236 = vld [vmem:[%s0 + $0x1c0] sm:$0xff]
      %v237 = vld [vmem:[%s0 + $0x1c8] sm:$0xff]
      %v238 = vld [vmem:[%s0 + $0x1d0] sm:$0xff]
      %v239 = vld [vmem:[%s0 + $0x1d8] sm:$0xff]
      %v240 = vld [vmem:[%s0 + $0x1e0] sm:$0xff]
      %v241 = vld [vmem:[%s0 + $0x1e8] sm:$0xff]
      %v242 = vld [vmem:[%s0 + $0x1f0] sm:$0xff]
      %v243 = vld [vmem:[%s0 + $0x1f8] sm:$0xff]
      %v244 = vld [vmem:[%s0 + $0x200] sm:$0xff]
      %v245 = vld [vmem:[%s0 + $0x208] sm:$0xff]
      %v246 = vld [vmem:[%s0 + $0x210] sm:$0xff]
      %v247 = vld [vmem:[%s0 + $0x218] sm:$0xff]
      %v248 = vld [vmem:[%s0 + $0x220] sm:$0xff]
      %v249 = vld [vmem:[%s0 + $0x228] sm:$0xff]
      %v250 = vld [vmem:[%s0 + $0x230] sm:$0xff]
      %v251 = vld [vmem:[%s0 + $0x238] sm:$0xff]
      %v252 = vld [vmem:[%s0 + $0x240] sm:$0xff]
      %v253 = vld [vmem:[%s0 + $0x248] sm:$0xff]
      %v254 = vld [vmem:[%s0 + $0x250] sm:$0xff]
      %v255 = vld [vmem:[%s0 + $0x258] sm:$0xff]
      %v256 = vld [vmem:[%s0 + $0x260] sm:$0xff]
      %v257 = vld [vmem:[%s0 + $0x268] sm:$0xff]
      %v258 = vld [vmem:[%s0 + $0x270] sm:$0xff]
      %v259 = vld [vmem:[%s0 + $0x278] sm:$0xff]
      %v260 = vld [vmem:[%s0 + $0x280] sm:$0xff]
      %v261 = vld [vmem:[%s0 + $0x288] sm:$0xff]
      %v262 = vld [vmem:[%s0 + $0x290] sm:$0xff]
      %v263 = vld [vmem:[%s0 + $0x298] sm:$0xff]
      %v264 = vld [vmem:[%s0 + $0x2a0] sm:$0xff]
      %v265 = vld [vmem:[%s0 + $0x2a8] sm:$0xff]
      %v266 = vld [vmem:[%s0 + $0x2b0] sm:$0xff]
      %v267 = vld [vmem:[%s0 + $0x2b8] sm:$0xff]
      %v268 = vld [vmem:[%s0 + $0x2c0] sm:$0xff]
      %v269 = vld [vmem:[%s0 + $0x2c8] sm:$0xff]
      %v270 = vld [vmem:[%s0 + $0x2d0] sm:$0xff]
      %v271 = vld [vmem:[%s0 + $0x2d8] sm:$0xff]
      %v272 = vld [vmem:[%s0 + $0x2e0] sm:$0xff]
      %v273 = vld [vmem:[%s0 + $0x2e8] sm:$0xff]
      %v274 = vld [vmem:[%s0 + $0x2f0] sm:$0xff]
      %v275 = vld [vmem:[%s0 + $0x2f8] sm:$0xff]
      %v276 = vld [vmem:[%s0 + $0x300] sm:$0xff]
      %v277 = vld [vmem:[%s0 + $0x308] sm:$0xff]
      %v278 = vld [vmem:[%s0 + $0x310] sm:$0xff]
      %v279 = vld [vmem:[%s0 + $0x318] sm:$0xff]
      %v280 = vld [vmem:[%s0 + $0x320] sm:$0xff]
      %v281 = vld [vmem:[%s0 + $0x328] sm:$0xff]
      %v282 = vld [vmem:[%s0 + $0x330] sm:$0xff]
      %v283 = vld [vmem:[%s0 + $0x338] sm:$0xff]
      %v284 = vld [vmem:[%s0 + $0x340] sm:$0xff]
      %v285 = vld [vmem:[%s0 + $0x348] sm:$0xff]
      %v286 = vld [vmem:[%s0 + $0x350] sm:$0xff]
      %v287 = vld [vmem:[%s0 + $0x358] sm:$0xff]
      %v288 = vld [vmem:[%s0 + $0x360] sm:$0xff]
      %v289 = vld [vmem:[%s0 + $0x368] sm:$0xff]
      %v290 = vld [vmem:[%s0 + $0x370] sm:$0xff]
      %v291 = vld [vmem:[%s0 + $0x378] sm:$0xff]
      %v292 = vld [vmem:[%s0 + $0x380] sm:$0xff]
      %v293 = vld [vmem:[%s0 + $0x388] sm:$0xff]
      %v294 = vld [vmem:[%s0 + $0x390] sm:$0xff]
      %v295 = vld [vmem:[%s0 + $0x398] sm:$0xff]
      %v296 = vld [vmem:[%s0 + $0x3a0] sm:$0xff]
      %v297 = vld [vmem:[%s0 + $0x3a8] sm:$0xff]
      %v298 = vld [vmem:[%s0 + $0x3b0] sm:$0xff]
      %v299 = vld [vmem:[%s0 + $0x3b8] sm:$0xff]
      %v300 = vld [vmem:[%s0 + $0x3c0] sm:$0xff]
      %v301 = vld [vmem:[%s0 + $0x3c8] sm:$0xff]
      %v302 = vld [vmem:[%s0 + $0x3d0] sm:$0xff]
      %v303 = vld [vmem:[%s0 + $0x3d8] sm:$0xff]
      %v304 = vld [vmem:[%s0 + $0x3e0] sm:$0xff]
      %v305 = vld [vmem:[%s0 + $0x3e8] sm:$0xff]
      %v306 = vld [vmem:[%s0 + $0x3f0] sm:$0xff]
      %v307 = vld [vmem:[%s0 + $0x3f8] sm:$0xff]
      %v308 = vld [vmem:[%s0 + $0x400] sm:$0xff]
      %v309 = vld [vmem:[%s0 + $0x408] sm:$0xff]
      %v310 = vld [vmem:[%s0 + $0x410] sm:$0xff]
      %v311 = vld [vmem:[%s0 + $0x418] sm:$0xff]
      %v312 = vld [vmem:[%s0 + $0x420] sm:$0xff]
      %v313 = vld [vmem:[%s0 + $0x428] sm:$0xff]
      %v314 = vld [vmem:[%s0 + $0x430] sm:$0xff]
      %v315 = vld [vmem:[%s0 + $0x438] sm:$0xff]
      %v316 = vld [vmem:[%s0 + $0x440] sm:$0xff]
      %v317 = vld [vmem:[%s0 + $0x448] sm:$0xff]
      %v318 = vld [vmem:[%s0 + $0x450] sm:$0xff]
      %v319 = vld [vmem:[%s0 + $0x458] sm:$0xff]
      %v320 = vld [vmem:[%s0 + $0x460] sm:$0xff]
      %v321 = vld [vmem:[%s0 + $0x468] sm:$0xff]
      %v322 = vld [vmem:[%s0 + $0x470] sm:$0xff]
      %v323 = vld [vmem:[%s0 + $0x478] sm:$0xff]
      %v324 = vld [vmem:[%s0 + $0x480] sm:$0xff]
      %v325 = vld [vmem:[%s0 + $0x488] sm:$0xff]
      %v326 = vld [vmem:[%s0 + $0x490] sm:$0xff]
      %v327 = vld [vmem:[%s0 + $0x498] sm:$0xff]
      %v328 = vld [vmem:[%s0 + $0x4a0] sm:$0xff]
      %v329 = vld [vmem:[%s0 + $0x4a8] sm:$0xff]
      %v330 = vld [vmem:[%s0 + $0x4b0] sm:$0xff]
      %v331 = vld [vmem:[%s0 + $0x4b8] sm:$0xff]
      %v332 = vld [vmem:[%s0 + $0x4c0] sm:$0xff]
      %v333 = vld [vmem:[%s0 + $0x4c8] sm:$0xff]
      %v334 = vld [vmem:[%s0 + $0x4d0] sm:$0xff]
      %v335 = vld [vmem:[%s0 + $0x4d8] sm:$0xff]
      %v336 = vld [vmem:[%s0 + $0x4e0] sm:$0xff]
      %v337 = vld [vmem:[%s0 + $0x4e8] sm:$0xff]
      %v338 = vld [vmem:[%s0 + $0x4f0] sm:$0xff]
      %v339 = vld [vmem:[%s0 + $0x4f8] sm:$0xff]
      %v340 = vld [vmem:[%s0 + $0x500] sm:$0xff]
      %v341 = vld [vmem:[%s0 + $0x508] sm:$0xff]
      %v342 = vld [vmem:[%s0 + $0x510] sm:$0xff]
      %v343 = vld [vmem:[%s0 + $0x518] sm:$0xff]
      %v344 = vld [vmem:[%s0 + $0x520] sm:$0xff]
      %v345 = vld [vmem:[%s0 + $0x528] sm:$0xff]
      %v346 = vld [vmem:[%s0 + $0x530] sm:$0xff]
      %v347 = vld [vmem:[%s0 + $0x538] sm:$0xff]
      %v348 = vld [vmem:[%s0 + $0x540] sm:$0xff]
      %v349 = vld [vmem:[%s0 + $0x548] sm:$0xff]
      %v350 = vld [vmem:[%s0 + $0x550] sm:$0xff]
      %v351 = vld [vmem:[%s0 + $0x558] sm:$0xff]
      %v352 = vld [vmem:[%s0 + $0x560] sm:$0xff]
      %v353 = vld [vmem:[%s0 + $0x568] sm:$0xff]
      %v354 = vld [vmem:[%s0 + $0x570] sm:$0xff]
      %v355 = vld [vmem:[%s0 + $0x578] sm:$0xff]
      %v356 = vld [vmem:[%s0 + $0x580] sm:$0xff]
      %v357 = vld [vmem:[%s0 + $0x588] sm:$0xff]
      %v358 = vld [vmem:[%s0 + $0x590] sm:$0xff]
      %v359 = vld [vmem:[%s0 + $0x598] sm:$0xff]
      %v360 = vld [vmem:[%s0 + $0x5a0] sm:$0xff]
      %v361 = vld [vmem:[%s0 + $0x5a8] sm:$0xff]
      %v362 = vld [vmem:[%s0 + $0x5b0] sm:$0xff]
      %v363 = vld [vmem:[%s0 + $0x5b8] sm:$0xff]
      %v364 = vld [vmem:[%s0 + $0x5c0] sm:$0xff]
      %v365 = vld [vmem:[%s0 + $0x5c8] sm:$0xff]
      %v366 = vld [vmem:[%s0 + $0x5d0] sm:$0xff]
      %v367 = vld [vmem:[%s0 + $0x5d8] sm:$0xff]
      %v368 = vld [vmem:[%s0 + $0x5e0] sm:$0xff]
      %v369 = vld [vmem:[%s0 + $0x5e8] sm:$0xff]
      %v370 = vld [vmem:[%s0 + $0x5f0] sm:$0xff]
      %v371 = vld [vmem:[%s0 + $0x5f8] sm:$0xff]
      %v372 = vld [vmem:[%s0 + $0x600] sm:$0xff]
      %v373 = vld [vmem:[%s0 + $0x608] sm:$0xff]
      %v374 = vld [vmem:[%s0 + $0x610] sm:$0xff]
      %v375 = vld [vmem:[%s0 + $0x618] sm:$0xff]
      %v376 = vld [vmem:[%s0 + $0x620] sm:$0xff]
      %v377 = vld [vmem:[%s0 + $0x628] sm:$0xff]
      %v378 = vld [vmem:[%s0 + $0x630] sm:$0xff]
      %v379 = vld [vmem:[%s0 + $0x638] sm:$0xff]
      %v380 = vld [vmem:[%s0 + $0x640] sm:$0xff]
      %v381 = vld [vmem:[%s0 + $0x648] sm:$0xff]
      %v382 = vld [vmem:[%s0 + $0x650] sm:$0xff]
      %v383 = vld [vmem:[%s0 + $0x658] sm:$0xff]
      %v384 = vld [vmem:[%s0 + $0x660] sm:$0xff]
      %v385 = vld [vmem:[%s0 + $0x668] sm:$0xff]
      %v386 = vld [vmem:[%s0 + $0x670] sm:$0xff]
      %v387 = vld [vmem:[%s0 + $0x678] sm:$0xff]
      %v388 = vld [vmem:[%s0 + $0x680] sm:$0xff]
      %v389 = vld [vmem:[%s0 + $0x688] sm:$0xff]
      %v390 = vld [vmem:[%s0 + $0x690] sm:$0xff]
      %v391 = vld [vmem:[%s0 + $0x698] sm:$0xff]
      %v392 = vld [vmem:[%s0 + $0x6a0] sm:$0xff]
      %v393 = vld [vmem:[%s0 + $0x6a8] sm:$0xff]
      %v394 = vld [vmem:[%s0 + $0x6b0] sm:$0xff]
      %v395 = vld [vmem:[%s0 + $0x6b8] sm:$0xff]
      %v396 = vld [vmem:[%s0 + $0x6c0] sm:$0xff]
      %v397 = vld [vmem:[%s0 + $0x6c8] sm:$0xff]
      %v398 = vld [vmem:[%s0 + $0x6d0] sm:$0xff]
      %v399 = vld [vmem:[%s0 + $0x6d8] sm:$0xff]
      %v400 = vld [vmem:[%s0 + $0x6e0] sm:$0xff]
      %v401 = vld [vmem:[%s0 + $0x6e8] sm:$0xff]
      %v402 = vld [vmem:[%s0 + $0x6f0] sm:$0xff]
      %v403 = vld [vmem:[%s0 + $0x6f8] sm:$0xff]
      %v404 = vld [vmem:[%s0 + $0x700] sm:$0xff]
      %v405 = vld [vmem:[%s0 + $0x708] sm:$0xff]
      %v406 = vld [vmem:[%s0 + $0x710] sm:$0xff]
      %v407 = vld [vmem:[%s0 + $0x718] sm:$0xff]
      %v408 = vld [vmem:[%s0 + $0x720] sm:$0xff]
      %v409 = vld [vmem:[%s0 + $0x728] sm:$0xff]
      %v410 = vld [vmem:[%s0 + $0x730] sm:$0xff]
      %v411 = vld [vmem:[%s0 + $0x738] sm:$0xff]
      %v412 = vld [vmem:[%s0 + $0x740] sm:$0xff]
      %v413 = vld [vmem:[%s0 + $0x748] sm:$0xff]
      %v414 = vld [vmem:[%s0 + $0x750] sm:$0xff]
      %v415 = vld [vmem:[%s0 + $0x758] sm:$0xff]
      %v416 = vld [vmem:[%s0 + $0x760] sm:$0xff]
      %v417 = vld [vmem:[%s0 + $0x768] sm:$0xff]
      %v418 = vld [vmem:[%s0 + $0x770] sm:$0xff]
      %v419 = vld [vmem:[%s0 + $0x778] sm:$0xff]
      %v420 = vld [vmem:[%s0 + $0x780] sm:$0xff]
      %v421 = vld [vmem:[%s0 + $0x788] sm:$0xff]
      %v422 = vld [vmem:[%s0 + $0x790] sm:$0xff]
      %v423 = vld [vmem:[%s0 + $0x798] sm:$0xff]
      %v424 = vld [vmem:[%s0 + $0x7a0] sm:$0xff]
      %v425 = vld [vmem:[%s0 + $0x7a8] sm:$0xff]
      %v426 = vld [vmem:[%s0 + $0x7b0] sm:$0xff]
      %v427 = vld [vmem:[%s0 + $0x7b8] sm:$0xff]
      %v428 = vld [vmem:[%s0 + $0x7c0] sm:$0xff]
      %v429 = vld [vmem:[%s0 + $0x7c8] sm:$0xff]
      %v430 = vld [vmem:[%s0 + $0x7d0] sm:$0xff]
      %v431 = vld [vmem:[%s0 + $0x7d8] sm:$0xff]
      %v432 = vld [vmem:[%s0 + $0x7e0] sm:$0xff]
      %v433 = vld [vmem:[%s0 + $0x7e8] sm:$0xff]
      %v434 = vld [vmem:[%s0 + $0x7f0] sm:$0xff]
      %v435 = vld [vmem:[%s0 + $0x7f8] sm:$0xff]
      %v436 = vld [vmem:[%s0 + $0x800] sm:$0xff]
      %v437 = vld [vmem:[%s0 + $0x808] sm:$0xff]
      %v438 = vld [vmem:[%s0 + $0x810] sm:$0xff]
      %v439 = vld [vmem:[%s0 + $0x818] sm:$0xff]
      %v440 = vld [vmem:[%s0 + $0x820] sm:$0xff]
      %v441 = vld [vmem:[%s0 + $0x828] sm:$0xff]
      %v442 = vld [vmem:[%s0 + $0x830] sm:$0xff]
      %v443 = vld [vmem:[%s0 + $0x838] sm:$0xff]
      %v444 = vld [vmem:[%s0 + $0x840] sm:$0xff]
      %v445 = vld [vmem:[%s0 + $0x848] sm:$0xff]
      %v446 = vld [vmem:[%s0 + $0x850] sm:$0xff]
      %v447 = vld [vmem:[%s0 + $0x858] sm:$0xff]
      %v448 = vld [vmem:[%s0 + $0x860] sm:$0xff]
      %v449 = vld [vmem:[%s0 + $0x868] sm:$0xff]
      %v450 = vld [vmem:[%s0 + $0x870] sm:$0xff]
      %v451 = vld [vmem:[%s0 + $0x878] sm:$0xff]
      %v452 = vld [vmem:[%s0 + $0x880] sm:$0xff]
      %v453 = vld [vmem:[%s0 + $0x888] sm:$0xff]
      %v454 = vld [vmem:[%s0 + $0x890] sm:$0xff]
      %v455 = vld [vmem:[%s0 + $0x898] sm:$0xff]
      %v456 = vld [vmem:[%s0 + $0x8a0] sm:$0xff]
      %v457 = vld [vmem:[%s0 + $0x8a8] sm:$0xff]
      %v458 = vld [vmem:[%s0 + $0x8b0] sm:$0xff]
      %v459 = vld [vmem:[%s0 + $0x8b8] sm:$0xff]
      %v460 = vld [vmem:[%s0 + $0x8c0] sm:$0xff]
      %v461 = vld [vmem:[%s0 + $0x8c8] sm:$0xff]
      %v462 = vld [vmem:[%s0 + $0x8d0] sm:$0xff]
      %v463 = vld [vmem:[%s0 + $0x8d8] sm:$0xff]
      %v464 = vld [vmem:[%s0 + $0x8e0] sm:$0xff]
      %v465 = vld [vmem:[%s0 + $0x8e8] sm:$0xff]
      %v466 = vld [vmem:[%s0 + $0x8f0] sm:$0xff]
      %v467 = vld [vmem:[%s0 + $0x8f8] sm:$0xff]
      %v468 = vld [vmem:[%s0 + $0x900] sm:$0xff]
      %v469 = vld [vmem:[%s0 + $0x908] sm:$0xff]
      %v470 = vld [vmem:[%s0 + $0x910] sm:$0xff]
      %v471 = vld [vmem:[%s0 + $0x918] sm:$0xff]
      %v472 = vld [vmem:[%s0 + $0x920] sm:$0xff]
      %v473 = vld [vmem:[%s0 + $0x928] sm:$0xff]
      %v474 = vld [vmem:[%s0 + $0x930] sm:$0xff]
      %v475 = vld [vmem:[%s0 + $0x938] sm:$0xff]
      %v476 = vld [vmem:[%s0 + $0x940] sm:$0xff]
      %v477 = vld [vmem:[%s0 + $0x948] sm:$0xff]
      %v478 = vld [vmem:[%s0 + $0x950] sm:$0xff]
      %v479 = vld [vmem:[%s0 + $0x958] sm:$0xff]
      %v480 = vld [vmem:[%s0 + $0x960] sm:$0xff]
      %v481 = vld [vmem:[%s0 + $0x968] sm:$0xff]
      %v482 = vld [vmem:[%s0 + $0x970] sm:$0xff]
      %v483 = vld [vmem:[%s0 + $0x978] sm:$0xff]
      %v484 = vld [vmem:[%s0 + $0x980] sm:$0xff]
      %v485 = vld [vmem:[%s0 + $0x988] sm:$0xff]
      %v486 = vld [vmem:[%s0 + $0x990] sm:$0xff]
      %v487 = vld [vmem:[%s0 + $0x998] sm:$0xff]
      %v488 = vld [vmem:[%s0 + $0x9a0] sm:$0xff]
      %v489 = vld [vmem:[%s0 + $0x9a8] sm:$0xff]
      %v490 = vld [vmem:[%s0 + $0x9b0] sm:$0xff]
      %v491 = vld [vmem:[%s0 + $0x9b8] sm:$0xff]
      %v492 = vld [vmem:[%s0 + $0x9c0] sm:$0xff]
      %v493 = vld [vmem:[%s0 + $0x9c8] sm:$0xff]
      %v494 = vld [vmem:[%s0 + $0x9d0] sm:$0xff]
      %v495 = vld [vmem:[%s0 + $0x9d8] sm:$0xff]
      %v496 = vld [vmem:[%s0 + $0x9e0] sm:$0xff]
      %v497 = vld [vmem:[%s0 + $0x9e8] sm:$0xff]
      %v498 = vld [vmem:[%s0 + $0x9f0] sm:$0xff]
      %v499 = vld [vmem:[%s0 + $0x9f8] sm:$0xff]
      %v500 = vld [vmem:[%s0 + $0xa00] sm:$0xff]
      %v501 = vld [vmem:[%s0 + $0xa08] sm:$0xff]
      %v502 = vld [vmem:[%s0 + $0xa10] sm:$0xff]
      %v503 = vld [vmem:[%s0 + $0xa18] sm:$0xff]
      %v504 = vld [vmem:[%s0 + $0xa20] sm:$0xff]
      %v505 = vld [vmem:[%s0 + $0xa28] sm:$0xff]
      %v506 = vld [vmem:[%s0 + $0xa30] sm:$0xff]
      %v507 = vld [vmem:[%s0 + $0xa38] sm:$0xff]
      %v508 = vld [vmem:[%s0 + $0xa40] sm:$0xff]
      %v509 = vld [vmem:[%s0 + $0xa48] sm:$0xff]
      %v510 = vld [vmem:[%s0 + $0xa50] sm:$0xff]
      %v511 = vld [vmem:[%s0 + $0xa58] sm:$0xff]
      %v512 = vld [vmem:[%s0 + $0xa60] sm:$0xff]
      %v513 = vld [vmem:[%s0 + $0xa68] sm:$0xff]
      %v514 = vld [vmem:[%s0 + $0xa70] sm:$0xff]
      %v515 = vld [vmem:[%s0 + $0xa78] sm:$0xff]
      %v516 = vld [vmem:[%s0 + $0xa80] sm:$0xff]
      %v517 = vld [vmem:[%s0 + $0xa88] sm:$0xff]
      %v518 = vld [vmem:[%s0 + $0xa90] sm:$0xff]
      %v519 = vld [vmem:[%s0 + $0xa98] sm:$0xff]
      %v520 = vld [vmem:[%s0 + $0xaa0] sm:$0xff]
      %v521 = vld [vmem:[%s0 + $0xaa8] sm:$0xff]
      %v522 = vld [vmem:[%s0 + $0xab0] sm:$0xff]
      %v523 = vld [vmem:[%s0 + $0xab8] sm:$0xff]
      %v524 = vld [vmem:[%s0 + $0xac0] sm:$0xff]
      %v525 = vld [vmem:[%s0 + $0xac8] sm:$0xff]
      %v526 = vld [vmem:[%s0 + $0xad0] sm:$0xff]
      %v527 = vld [vmem:[%s0 + $0xad8] sm:$0xff]
      %v528 = vld [vmem:[%s0 + $0xae0] sm:$0xff]
      %v529 = vld [vmem:[%s0 + $0xae8] sm:$0xff]
      %v530 = vld [vmem:[%s0 + $0xaf0] sm:$0xff]
      %v531 = vld [vmem:[%s0 + $0xaf8] sm:$0xff]
      %v532 = vld [vmem:[%s0 + $0xb00] sm:$0xff]
      %v533 = vld [vmem:[%s0 + $0xb08] sm:$0xff]
      %v534 = vld [vmem:[%s0 + $0xb10] sm:$0xff]
      %v535 = vld [vmem:[%s0 + $0xb18] sm:$0xff]
      %v536 = vld [vmem:[%s0 + $0xb20] sm:$0xff]
      %v537 = vld [vmem:[%s0 + $0xb28] sm:$0xff]
      %v538 = vld [vmem:[%s0 + $0xb30] sm:$0xff]
      %v539 = vld [vmem:[%s0 + $0xb38] sm:$0xff]
      %v540 = vld [vmem:[%s0 + $0xb40] sm:$0xff]
      %v541 = vld [vmem:[%s0 + $0xb48] sm:$0xff]
      %v542 = vld [vmem:[%s0 + $0xb50] sm:$0xff]
      %v543 = vld [vmem:[%s0 + $0xb58] sm:$0xff]
      %v544 = vld [vmem:[%s0 + $0xb60] sm:$0xff]
      %v545 = vld [vmem:[%s0 + $0xb68] sm:$0xff]
      %v546 = vld [vmem:[%s0 + $0xb70] sm:$0xff]
      %v547 = vld [vmem:[%s0 + $0xb78] sm:$0xff]
      %v548 = vld [vmem:[%s0 + $0xb80] sm:$0xff]
      %v549 = vld [vmem:[%s0 + $0xb88] sm:$0xff]
      %v550 = vld [vmem:[%s0 + $0xb90] sm:$0xff]
      %v551 = vld [vmem:[%s0 + $0xb98] sm:$0xff]
      %v552 = vld [vmem:[%s0 + $0xba0] sm:$0xff]
      %v553 = vld [vmem:[%s0 + $0xba8] sm:$0xff]
      %v554 = vld [vmem:[%s0 + $0xbb0] sm:$0xff]
      %v555 = vld [vmem:[%s0 + $0xbb8] sm:$0xff]
      %v556 = vld [vmem:[%s0 + $0xbc0] sm:$0xff]
      %v557 = vld [vmem:[%s0 + $0xbc8] sm:$0xff]
      %v558 = vld [vmem:[%s0 + $0xbd0] sm:$0xff]
      %v559 = vld [vmem:[%s0 + $0xbd8] sm:$0xff]
      %v560 = vld [vmem:[%s0 + $0xbe0] sm:$0xff]
      %v561 = vld [vmem:[%s0 + $0xbe8] sm:$0xff]
      %v562 = vld [vmem:[%s0 + $0xbf0] sm:$0xff]
      %v563 = vld [vmem:[%s0 + $0xbf8] sm:$0xff]
      %v564 = vld [vmem:[%s0 + $0xc00] sm:$0xff]
      %v565 = vld [vmem:[%s0 + $0xc08] sm:$0xff]
      %v566 = vld [vmem:[%s0 + $0xc10] sm:$0xff]
      %v567 = vld [vmem:[%s0 + $0xc18] sm:$0xff]
      %v568 = vld [vmem:[%s0 + $0xc20] sm:$0xff]
      %v569 = vld [vmem:[%s0 + $0xc28] sm:$0xff]
      %v570 = vld [vmem:[%s0 + $0xc30] sm:$0xff]
      %v571 = vld [vmem:[%s0 + $0xc38] sm:$0xff]
      %v572 = vld [vmem:[%s0 + $0xc40] sm:$0xff]
      %v573 = vld [vmem:[%s0 + $0xc48] sm:$0xff]
      %v574 = vld [vmem:[%s0 + $0xc50] sm:$0xff]
      %v575 = vld [vmem:[%s0 + $0xc58] sm:$0xff]
      %v576 = vld [vmem:[%s0 + $0xc60] sm:$0xff]
      %v577 = vld [vmem:[%s0 + $0xc68] sm:$0xff]
      %v578 = vld [vmem:[%s0 + $0xc70] sm:$0xff]
      %v579 = vld [vmem:[%s0 + $0xc78] sm:$0xff]
      %v580 = vld [vmem:[%s0 + $0xc80] sm:$0xff]
      %v581 = vld [vmem:[%s0 + $0xc88] sm:$0xff]
      %v582 = vld [vmem:[%s0 + $0xc90] sm:$0xff]
      %v583 = vld [vmem:[%s0 + $0xc98] sm:$0xff]
      %v584 = vld [vmem:[%s0 + $0xca0] sm:$0xff]
      %v585 = vld [vmem:[%s0 + $0xca8] sm:$0xff]
      %v586 = vld [vmem:[%s0 + $0xcb0] sm:$0xff]
      %v587 = vld [vmem:[%s0 + $0xcb8] sm:$0xff]
      %v588 = vld [vmem:[%s0 + $0xcc0] sm:$0xff]
      %v589 = vld [vmem:[%s0 + $0xcc8] sm:$0xff]
      %v590 = vld [vmem:[%s0 + $0xcd0] sm:$0xff]
      %v591 = vld [vmem:[%s0 + $0xcd8] sm:$0xff]
      %v592 = vld [vmem:[%s0 + $0xce0] sm:$0xff]
      %v593 = vld [vmem:[%s0 + $0xce8] sm:$0xff]
      %v594 = vld [vmem:[%s0 + $0xcf0] sm:$0xff]
      %v595 = vld [vmem:[%s0 + $0xcf8] sm:$0xff]
      %v596 = vld [vmem:[%s0 + $0xd00] sm:$0xff]
      %v597 = vld [vmem:[%s0 + $0xd08] sm:$0xff]
      %v598 = vld [vmem:[%s0 + $0xd10] sm:$0xff]
      %v599 = vld [vmem:[%s0 + $0xd18] sm:$0xff]
      %v600 = vld [vmem:[%s0 + $0xd20] sm:$0xff]
      %v601 = vld [vmem:[%s0 + $0xd28] sm:$0xff]
      %v602 = vld [vmem:[%s0 + $0xd30] sm:$0xff]
      %v603 = vld [vmem:[%s0 + $0xd38] sm:$0xff]
      %v604 = vld [vmem:[%s0 + $0xd40] sm:$0xff]
      %v605 = vld [vmem:[%s0 + $0xd48] sm:$0xff]
      %v606 = vld [vmem:[%s0 + $0xd50] sm:$0xff]
      %v607 = vld [vmem:[%s0 + $0xd58] sm:$0xff]
      %v608 = vld [vmem:[%s0 + $0xd60] sm:$0xff]
      %v609 = vld [vmem:[%s0 + $0xd68] sm:$0xff]
      %v610 = vld [vmem:[%s0 + $0xd70] sm:$0xff]
      %v611 = vld [vmem:[%s0 + $0xd78] sm:$0xff]
      %v612 = vld [vmem:[%s0 + $0xd80] sm:$0xff]
      %v613 = vld [vmem:[%s0 + $0xd88] sm:$0xff]
      %v614 = vld [vmem:[%s0 + $0xd90] sm:$0xff]
      %v615 = vld [vmem:[%s0 + $0xd98] sm:$0xff]
      %v616 = vld [vmem:[%s0 + $0xda0] sm:$0xff]
      %v617 = vld [vmem:[%s0 + $0xda8] sm:$0xff]
      %v618 = vld [vmem:[%s0 + $0xdb0] sm:$0xff]
      %v619 = vld [vmem:[%s0 + $0xdb8] sm:$0xff]
      %v620 = vld [vmem:[%s0 + $0xdc0] sm:$0xff]
      %v621 = vld [vmem:[%s0 + $0xdc8] sm:$0xff]
      %v622 = vld [vmem:[%s0 + $0xdd0] sm:$0xff]
      %v623 = vld [vmem:[%s0 + $0xdd8] sm:$0xff]
      %v624 = vld [vmem:[%s0 + $0xde0] sm:$0xff]
      %v625 = vld [vmem:[%s0 + $0xde8] sm:$0xff]
      %v626 = vld [vmem:[%s0 + $0xdf0] sm:$0xff]
      %v627 = vld [vmem:[%s0 + $0xdf8] sm:$0xff]
      %v628 = vld [vmem:[%s0 + $0xe00] sm:$0xff]
      %v629 = vld [vmem:[%s0 + $0xe08] sm:$0xff]
      %v630 = vld [vmem:[%s0 + $0xe10] sm:$0xff]
      %v631 = vld [vmem:[%s0 + $0xe18] sm:$0xff]
      %v632 = vld [vmem:[%s0 + $0xe20] sm:$0xff]
      %v633 = vld [vmem:[%s0 + $0xe28] sm:$0xff]
      %v634 = vld [vmem:[%s0 + $0xe30] sm:$0xff]
      %v635 = vld [vmem:[%s0 + $0xe38] sm:$0xff]
      %v636 = vld [vmem:[%s0 + $0xe40] sm:$0xff]
      %v637 = vld [vmem:[%s0 + $0xe48] sm:$0xff]
      %v638 = vld [vmem:[%s0 + $0xe50] sm:$0xff]
      %v639 = vld [vmem:[%s0 + $0xe58] sm:$0xff]
      %v640 = vld [vmem:[%s0 + $0xe60] sm:$0xff]
      %v641 = vld [vmem:[%s0 + $0xe68] sm:$0xff]
      %v642 = vld [vmem:[%s0 + $0xe70] sm:$0xff]
      %v643 = vld [vmem:[%s0 + $0xe78] sm:$0xff]
      %v644 = vld [vmem:[%s0 + $0xe80] sm:$0xff]
      %v645 = vld [vmem:[%s0 + $0xe88] sm:$0xff]
      %v646 = vld [vmem:[%s0 + $0xe90] sm:$0xff]
      %v647 = vld [vmem:[%s0 + $0xe98] sm:$0xff]
      %v648 = vld [vmem:[%s0 + $0xea0] sm:$0xff]
      %v649 = vld [vmem:[%s0 + $0xea8] sm:$0xff]
      %v650 = vld [vmem:[%s0 + $0xeb0] sm:$0xff]
      %v651 = vld [vmem:[%s0 + $0xeb8] sm:$0xff]
      %v652 = vld [vmem:[%s0 + $0xec0] sm:$0xff]
      %v653 = vld [vmem:[%s0 + $0xec8] sm:$0xff]
      %v654 = vld [vmem:[%s0 + $0xed0] sm:$0xff]
      %v655 = vld [vmem:[%s0 + $0xed8] sm:$0xff]
      %v656 = vld [vmem:[%s0 + $0xee0] sm:$0xff]
      %v657 = vld [vmem:[%s0 + $0xee8] sm:$0xff]
      %v658 = vld [vmem:[%s0 + $0xef0] sm:$0xff]
      %v659 = vld [vmem:[%s0 + $0xef8] sm:$0xff]
      %v660 = vld [vmem:[%s0 + $0xf00] sm:$0xff]
      %v661 = vld [vmem:[%s0 + $0xf08] sm:$0xff]
      %v662 = vld [vmem:[%s0 + $0xf10] sm:$0xff]
      %v663 = vld [vmem:[%s0 + $0xf18] sm:$0xff]
      %v664 = vld [vmem:[%s0 + $0xf20] sm:$0xff]
      %v665 = vld [vmem:[%s0 + $0xf28] sm:$0xff]
      %v666 = vld [vmem:[%s0 + $0xf30] sm:$0xff]
      %v667 = vld [vmem:[%s0 + $0xf38] sm:$0xff]
      %v668 = vld [vmem:[%s0 + $0xf40] sm:$0xff]
      %v669 = vld [vmem:[%s0 + $0xf48] sm:$0xff]
      %v670 = vld [vmem:[%s0 + $0xf50] sm:$0xff]
      %v671 = vld [vmem:[%s0 + $0xf58] sm:$0xff]
      %v672 = vld [vmem:[%s0 + $0xf60] sm:$0xff]
      %v673 = vld [vmem:[%s0 + $0xf68] sm:$0xff]
      %v674 = vld [vmem:[%s0 + $0xf70] sm:$0xff]
      %v675 = vld [vmem:[%s0 + $0xf78] sm:$0xff]
      %v676 = vld [vmem:[%s0 + $0xf80] sm:$0xff]
      %v677 = vld [vmem:[%s0 + $0xf88] sm:$0xff]
      %v678 = vld [vmem:[%s0 + $0xf90] sm:$0xff]
      %v679 = vld [vmem:[%s0 + $0xf98] sm:$0xff]
      %v680 = vld [vmem:[%s0 + $0xfa0] sm:$0xff]
      %v681 = vld [vmem:[%s0 + $0xfa8] sm:$0xff]
      %v682 = vld [vmem:[%s0 + $0xfb0] sm:$0xff]
      %v683 = vld [vmem:[%s0 + $0xfb8] sm:$0xff]
      %v684 = vld [vmem:[%s0 + $0xfc0] sm:$0xff]
      %v685 = vld [vmem:[%s0 + $0xfc8] sm:$0xff]
      %v686 = vld [vmem:[%s0 + $0xfd0] sm:$0xff]
      %v687 = vld [vmem:[%s0 + $0xfd8] sm:$0xff]
      %v688 = vld [vmem:[%s0 + $0xfe0] sm:$0xff]
      %v689 = vld [vmem:[%s0 + $0xfe8] sm:$0xff]
      %v690 = vld [vmem:[%s0 + $0xff0] sm:$0xff]
      %v691 = vld [vmem:[%s0 + $0xff8] sm:$0xff]
      %v692 = vld [vmem:[%s0 + $0x1000] sm:$0xff]
      %v693 = vld [vmem:[%s0 + $0x1008] sm:$0xff]
      %v694 = vld [vmem:[%s0 + $0x1010] sm:$0xff]
      %v695 = vld [vmem:[%s0 + $0x1018] sm:$0xff]
      %v696 = vld [vmem:[%s0 + $0x1020] sm:$0xff]
      %v697 = vld [vmem:[%s0 + $0x1028] sm:$0xff]
      %v698 = vld [vmem:[%s0 + $0x1030] sm:$0xff]
      %v699 = vld [vmem:[%s0 + $0x1038] sm:$0xff]
      %v700 = vld [vmem:[%s0 + $0x1040] sm:$0xff]
      %v701 = vld [vmem:[%s0 + $0x1048] sm:$0xff]
      %v702 = vld [vmem:[%s0 + $0x1050] sm:$0xff]
      %v703 = vld [vmem:[%s0 + $0x1058] sm:$0xff]
      %v704 = vld [vmem:[%s0 + $0x1060] sm:$0xff]
      %v705 = vld [vmem:[%s0 + $0x1068] sm:$0xff]
      %v706 = vld [vmem:[%s0 + $0x1070] sm:$0xff]
      %v707 = vld [vmem:[%s0 + $0x1078] sm:$0xff]
      %v708 = vld [vmem:[%s0 + $0x1080] sm:$0xff]
      %v709 = vld [vmem:[%s0 + $0x1088] sm:$0xff]
      %v710 = vld [vmem:[%s0 + $0x1090] sm:$0xff]
      %v711 = vld [vmem:[%s0 + $0x1098] sm:$0xff]
      %v712 = vld [vmem:[%s0 + $0x10a0] sm:$0xff]
      %v713 = vld [vmem:[%s0 + $0x10a8] sm:$0xff]
      %v714 = vld [vmem:[%s0 + $0x10b0] sm:$0xff]
      %v715 = vld [vmem:[%s0 + $0x10b8] sm:$0xff]
      %v716 = vld [vmem:[%s0 + $0x10c0] sm:$0xff]
      %v717 = vld [vmem:[%s0 + $0x10c8] sm:$0xff]
      %v718 = vld [vmem:[%s0 + $0x10d0] sm:$0xff]
      %v719 = vld [vmem:[%s0 + $0x10d8] sm:$0xff]
      %v720 = vld [vmem:[%s0 + $0x10e0] sm:$0xff]
      %v721 = vld [vmem:[%s0 + $0x10e8] sm:$0xff]
      %v722 = vld [vmem:[%s0 + $0x10f0] sm:$0xff]
      %v723 = vld [vmem:[%s0 + $0x10f8] sm:$0xff]
      %v724 = vld [vmem:[%s0 + $0x1100] sm:$0xff]
      %v725 = vld [vmem:[%s0 + $0x1108] sm:$0xff]
      %v726 = vld [vmem:[%s0 + $0x1110] sm:$0xff]
      %v727 = vld [vmem:[%s0 + $0x1118] sm:$0xff]
      %v728 = vld [vmem:[%s0 + $0x1120] sm:$0xff]
      %v729 = vld [vmem:[%s0 + $0x1128] sm:$0xff]
      %v730 = vld [vmem:[%s0 + $0x1130] sm:$0xff]
      %v731 = vld [vmem:[%s0 + $0x1138] sm:$0xff]
      %v732 = vld [vmem:[%s0 + $0x1140] sm:$0xff]
      %v733 = vld [vmem:[%s0 + $0x1148] sm:$0xff]
      %v734 = vld [vmem:[%s0 + $0x1150] sm:$0xff]
      %v735 = vld [vmem:[%s0 + $0x1158] sm:$0xff]
      %v736 = vld [vmem:[%s0 + $0x1160] sm:$0xff]
      %v737 = vld [vmem:[%s0 + $0x1168] sm:$0xff]
      %v738 = vld [vmem:[%s0 + $0x1170] sm:$0xff]
      %v739 = vld [vmem:[%s0 + $0x1178] sm:$0xff]
      %v740 = vld [vmem:[%s0 + $0x1180] sm:$0xff]
      %v741 = vld [vmem:[%s0 + $0x1188] sm:$0xff]
      %v742 = vld [vmem:[%s0 + $0x1190] sm:$0xff]
      %v743 = vld [vmem:[%s0 + $0x1198] sm:$0xff]
      %v744 = vld [vmem:[%s0 + $0x11a0] sm:$0xff]
      %v745 = vld [vmem:[%s0 + $0x11a8] sm:$0xff]
      %v746 = vld [vmem:[%s0 + $0x11b0] sm:$0xff]
      %v747 = vld [vmem:[%s0 + $0x11b8] sm:$0xff]
      %v748 = vld [vmem:[%s0 + $0x11c0] sm:$0xff]
      %v749 = vld [vmem:[%s0 + $0x11c8] sm:$0xff]
      %v750 = vld [vmem:[%s0 + $0x11d0] sm:$0xff]
      %v751 = vld [vmem:[%s0 + $0x11d8] sm:$0xff]
      %v752 = vld [vmem:[%s0 + $0x11e0] sm:$0xff]
      %v753 = vld [vmem:[%s0 + $0x11e8] sm:$0xff]
      %v754 = vld [vmem:[%s0 + $0x11f0] sm:$0xff]
      %v755 = vld [vmem:[%s0 + $0x11f8] sm:$0xff]
      %v756 = vld [vmem:[%s0 + $0x1200] sm:$0xff]
      %v757 = vld [vmem:[%s0 + $0x1208] sm:$0xff]
      %v758 = vld [vmem:[%s0 + $0x1210] sm:$0xff]
      %v759 = vld [vmem:[%s0 + $0x1218] sm:$0xff]
      %v760 = vld [vmem:[%s0 + $0x1220] sm:$0xff]
      %v761 = vld [vmem:[%s0 + $0x1228] sm:$0xff]
      %v762 = vld [vmem:[%s0 + $0x1230] sm:$0xff]
      %v763 = vld [vmem:[%s0 + $0x1238] sm:$0xff]
      %v764 = vld [vmem:[%s0 + $0x1240] sm:$0xff]
      %v765 = vld [vmem:[%s0 + $0x1248] sm:$0xff]
      %v766 = vld [vmem:[%s0 + $0x1250] sm:$0xff]
      %v767 = vld [vmem:[%s0 + $0x1258] sm:$0xff]
      %v768 = vld [vmem:[%s0 + $0x1260] sm:$0xff]
      %v769 = vld [vmem:[%s0 + $0x1268] sm:$0xff]
      %v770 = vld [vmem:[%s0 + $0x1270] sm:$0xff]
      %v771 = vld [vmem:[%s0 + $0x1278] sm:$0xff]
      %v772 = vld [vmem:[%s0 + $0x1280] sm:$0xff]
      %v773 = vld [vmem:[%s0 + $0x1288] sm:$0xff]
      %v774 = vld [vmem:[%s0 + $0x1290] sm:$0xff]
      %v775 = vld [vmem:[%s0 + $0x1298] sm:$0xff]
      %v776 = vld [vmem:[%s0 + $0x12a0] sm:$0xff]
      %v777 = vld [vmem:[%s0 + $0x12a8] sm:$0xff]
      %v778 = vld [vmem:[%s0 + $0x12b0] sm:$0xff]
      %v779 = vld [vmem:[%s0 + $0x12b8] sm:$0xff]
      %v780 = vld [vmem:[%s0 + $0x12c0] sm:$0xff]
      %v781 = vld [vmem:[%s0 + $0x12c8] sm:$0xff]
      %v782 = vld [vmem:[%s0 + $0x12d0] sm:$0xff]
      %v783 = vld [vmem:[%s0 + $0x12d8] sm:$0xff]
      %v784 = vld [vmem:[%s0 + $0x12e0] sm:$0xff]
      %v785 = vld [vmem:[%s0 + $0x12e8] sm:$0xff]
      %v786 = vld [vmem:[%s0 + $0x12f0] sm:$0xff]
      %v787 = vld [vmem:[%s0 + $0x12f8] sm:$0xff]
      %v788 = vld [vmem:[%s0 + $0x1300] sm:$0xff]
      %v789 = vld [vmem:[%s1] sm:$0xff]
      %v790 = vld [vmem:[%s1 + $0x8] sm:$0xff]
      %v791 = vld [vmem:[%s1 + $0x10] sm:$0xff]
      %v792 = vld [vmem:[%s1 + $0x18] sm:$0xff]
      %v793 = vld [vmem:[%s1 + $0x20] sm:$0xff]
      %v794 = vld [vmem:[%s1 + $0x28] sm:$0xff]
      %v795 = vld [vmem:[%s1 + $0x30] sm:$0xff]
      %v796 = vld [vmem:[%s1 + $0x38] sm:$0xff]
      %v797 = vld [vmem:[%s1 + $0x40] sm:$0xff]
      %v798 = vld [vmem:[%s1 + $0x48] sm:$0xff]
      %v799 = vld [vmem:[%s1 + $0x50] sm:$0xff]
      %v800 = vld [vmem:[%s1 + $0x58] sm:$0xff]
      %v801 = vld [vmem:[%s1 + $0x60] sm:$0xff]
      %v802 = vld [vmem:[%s1 + $0x68] sm:$0xff]
      %v803 = vld [vmem:[%s1 + $0x70] sm:$0xff]
      %v804 = vld [vmem:[%s1 + $0x78] sm:$0xff]
      %v805 = vld [vmem:[%s1 + $0x80] sm:$0xff]
      %v806 = vld [vmem:[%s1 + $0x88] sm:$0xff]
      %v807 = vld [vmem:[%s1 + $0x90] sm:$0xff]
      %v808 = vld [vmem:[%s1 + $0x98] sm:$0xff]
      %v809 = vld [vmem:[%s1 + $0xa0] sm:$0xff]
      %v810 = vld [vmem:[%s1 + $0xa8] sm:$0xff]
      %v811 = vld [vmem:[%s1 + $0xb0] sm:$0xff]
      %v812 = vld [vmem:[%s1 + $0xb8] sm:$0xff]
      %v813 = vld [vmem:[%s1 + $0xc0] sm:$0xff]
      %v814 = vld [vmem:[%s1 + $0xc8] sm:$0xff]
      %v815 = vld [vmem:[%s1 + $0xd0] sm:$0xff]
      %v816 = vld [vmem:[%s1 + $0xd8] sm:$0xff]
      %v817 = vld [vmem:[%s1 + $0xe0] sm:$0xff]
      %v818 = vld [vmem:[%s1 + $0xe8] sm:$0xff]
      %v819 = vld [vmem:[%s1 + $0xf0] sm:$0xff]
      %v820 = vld [vmem:[%s1 + $0xf8] sm:$0xff]
      %v821 = vld [vmem:[%s1 + $0x100] sm:$0xff]
      %v822 = vld [vmem:[%s1 + $0x108] sm:$0xff]
      %v823 = vld [vmem:[%s1 + $0x110] sm:$0xff]
      %v824 = vld [vmem:[%s1 + $0x118] sm:$0xff]
      %v825 = vld [vmem:[%s1 + $0x120] sm:$0xff]
      %v826 = vld [vmem:[%s1 + $0x128] sm:$0xff]
      %v827 = vld [vmem:[%s1 + $0x130] sm:$0xff]
      %v828 = vld [vmem:[%s1 + $0x138] sm:$0xff]
      %v829 = vld [vmem:[%s1 + $0x140] sm:$0xff]
      %v830 = vld [vmem:[%s1 + $0x148] sm:$0xff]
      %v831 = vld [vmem:[%s1 + $0x150] sm:$0xff]
      %v832 = vld [vmem:[%s1 + $0x158] sm:$0xff]
      %v833 = vld [vmem:[%s1 + $0x160] sm:$0xff]
      %v834 = vld [vmem:[%s1 + $0x168] sm:$0xff]
      %v835 = vld [vmem:[%s1 + $0x170] sm:$0xff]
      %v836 = vld [vmem:[%s1 + $0x178] sm:$0xff]
      %v837 = vld [vmem:[%s1 + $0x180] sm:$0xff]
      %v838 = vld [vmem:[%s1 + $0x188] sm:$0xff]
      %v839 = vld [vmem:[%s1 + $0x190] sm:$0xff]
      %v840 = vld [vmem:[%s1 + $0x198] sm:$0xff]
      %v841 = vld [vmem:[%s1 + $0x1a0] sm:$0xff]
      %v842 = vld [vmem:[%s1 + $0x1a8] sm:$0xff]
      %v843 = vld [vmem:[%s1 + $0x1b0] sm:$0xff]
      %v844 = vld [vmem:[%s1 + $0x1b8] sm:$0xff]
      %v845 = vld [vmem:[%s1 + $0x1c0] sm:$0xff]
      %v846 = vld [vmem:[%s1 + $0x1c8] sm:$0xff]
      %v847 = vld [vmem:[%s1 + $0x1d0] sm:$0xff]
      %v848 = vld [vmem:[%s1 + $0x1d8] sm:$0xff]
      %v849 = vld [vmem:[%s1 + $0x1e0] sm:$0xff]
      %v850 = vld [vmem:[%s1 + $0x1e8] sm:$0xff]
      %v851 = vld [vmem:[%s1 + $0x1f0] sm:$0xff]
      %v852 = vld [vmem:[%s1 + $0x1f8] sm:$0xff]
      %v853 = vld [vmem:[%s1 + $0x200] sm:$0xff]
      %v854 = vld [vmem:[%s1 + $0x208] sm:$0xff]
      %v855 = vld [vmem:[%s1 + $0x210] sm:$0xff]
      %v856 = vld [vmem:[%s1 + $0x218] sm:$0xff]
      %v857 = vld [vmem:[%s1 + $0x220] sm:$0xff]
      %v858 = vld [vmem:[%s1 + $0x228] sm:$0xff]
      %v859 = vld [vmem:[%s1 + $0x230] sm:$0xff]
      %v860 = vld [vmem:[%s1 + $0x238] sm:$0xff]
      %v861 = vld [vmem:[%s1 + $0x240] sm:$0xff]
      %v862 = vld [vmem:[%s1 + $0x248] sm:$0xff]
      %v863 = vld [vmem:[%s1 + $0x250] sm:$0xff]
      %v864 = vld [vmem:[%s1 + $0x258] sm:$0xff]
      %v865 = vld [vmem:[%s1 + $0x260] sm:$0xff]
      %v866 = vld [vmem:[%s1 + $0x268] sm:$0xff]
      %v867 = vld [vmem:[%s1 + $0x270] sm:$0xff]
      %v868 = vld [vmem:[%s1 + $0x278] sm:$0xff]
      %v869 = vld [vmem:[%s1 + $0x280] sm:$0xff]
      %v870 = vld [vmem:[%s1 + $0x288] sm:$0xff]
      %v871 = vld [vmem:[%s1 + $0x290] sm:$0xff]
      %v872 = vld [vmem:[%s1 + $0x298] sm:$0xff]
      %v873 = vld [vmem:[%s1 + $0x2a0] sm:$0xff]
      %v874 = vld [vmem:[%s1 + $0x2a8] sm:$0xff]
      %v875 = vld [vmem:[%s1 + $0x2b0] sm:$0xff]
      %v876 = vld [vmem:[%s1 + $0x2b8] sm:$0xff]
      %v877 = vld [vmem:[%s1 + $0x2c0] sm:$0xff]
      %v878 = vld [vmem:[%s1 + $0x2c8] sm:$0xff]
      %v879 = vld [vmem:[%s1 + $0x2d0] sm:$0xff]
      %v880 = vld [vmem:[%s1 + $0x2d8] sm:$0xff]
      %v881 = vld [vmem:[%s1 + $0x2e0] sm:$0xff]
      %v882 = vld [vmem:[%s1 + $0x2e8] sm:$0xff]
      %v883 = vld [vmem:[%s1 + $0x2f0] sm:$0xff]
      %v884 = vld [vmem:[%s1 + $0x2f8] sm:$0xff]
      %v885 = vld [vmem:[%s1 + $0x300] sm:$0xff]
      %v886 = vld [vmem:[%s1 + $0x308] sm:$0xff]
      %v887 = vld [vmem:[%s1 + $0x310] sm:$0xff]
      %v888 = vld [vmem:[%s1 + $0x318] sm:$0xff]
      %v889 = vld [vmem:[%s1 + $0x320] sm:$0xff]
      %v890 = vld [vmem:[%s1 + $0x328] sm:$0xff]
      %v891 = vld [vmem:[%s1 + $0x330] sm:$0xff]
      %v892 = vld [vmem:[%s1 + $0x338] sm:$0xff]
      %v893 = vld [vmem:[%s1 + $0x340] sm:$0xff]
      %v894 = vld [vmem:[%s1 + $0x348] sm:$0xff]
      %v895 = vld [vmem:[%s1 + $0x350] sm:$0xff]
      %v896 = vld [vmem:[%s1 + $0x358] sm:$0xff]
      %v897 = vld [vmem:[%s1 + $0x360] sm:$0xff]
      %v898 = vld [vmem:[%s1 + $0x368] sm:$0xff]
      %v899 = vld [vmem:[%s1 + $0x370] sm:$0xff]
      %v900 = vld [vmem:[%s1 + $0x378] sm:$0xff]
      %v901 = vld [vmem:[%s1 + $0x380] sm:$0xff]
      %v902 = vld [vmem:[%s1 + $0x388] sm:$0xff]
      %v903 = vld [vmem:[%s1 + $0x390] sm:$0xff]
      %v904 = vld [vmem:[%s1 + $0x398] sm:$0xff]
      %v905 = vld [vmem:[%s1 + $0x3a0] sm:$0xff]
      %v906 = vld [vmem:[%s1 + $0x3a8] sm:$0xff]
      %v907 = vld [vmem:[%s1 + $0x3b0] sm:$0xff]
      %v908 = vld [vmem:[%s1 + $0x3b8] sm:$0xff]
      %v909 = vld [vmem:[%s1 + $0x3c0] sm:$0xff]
      %v910 = vld [vmem:[%s1 + $0x3c8] sm:$0xff]
      %v911 = vld [vmem:[%s1 + $0x3d0] sm:$0xff]
      %v912 = vld [vmem:[%s1 + $0x3d8] sm:$0xff]
      %v913 = vld [vmem:[%s1 + $0x3e0] sm:$0xff]
      %v914 = vld [vmem:[%s1 + $0x3e8] sm:$0xff]
      %v915 = vld [vmem:[%s1 + $0x3f0] sm:$0xff]
      %v916 = vld [vmem:[%s1 + $0x3f8] sm:$0xff]
      %v917 = vld [vmem:[%s1 + $0x400] sm:$0xff]
      %v918 = vld [vmem:[%s1 + $0x408] sm:$0xff]
      %v919 = vld [vmem:[%s1 + $0x410] sm:$0xff]
      %v920 = vld [vmem:[%s1 + $0x418] sm:$0xff]
      %v921 = vld [vmem:[%s1 + $0x420] sm:$0xff]
      %v922 = vld [vmem:[%s1 + $0x428] sm:$0xff]
      %v923 = vld [vmem:[%s1 + $0x430] sm:$0xff]
      %v924 = vld [vmem:[%s1 + $0x438] sm:$0xff]
      %v925 = vld [vmem:[%s1 + $0x440] sm:$0xff]
      %v926 = vld [vmem:[%s1 + $0x448] sm:$0xff]
      %v927 = vld [vmem:[%s1 + $0x450] sm:$0xff]
      %v928 = vld [vmem:[%s1 + $0x458] sm:$0xff]
      %v929 = vld [vmem:[%s1 + $0x460] sm:$0xff]
      %v930 = vld [vmem:[%s1 + $0x468] sm:$0xff]
      %v931 = vld [vmem:[%s1 + $0x470] sm:$0xff]
      %v932 = vld [vmem:[%s1 + $0x478] sm:$0xff]
      %v933 = vld [vmem:[%s1 + $0x480] sm:$0xff]
      %v934 = vld [vmem:[%s1 + $0x488] sm:$0xff]
      %v935 = vld [vmem:[%s1 + $0x490] sm:$0xff]
      %v936 = vld [vmem:[%s1 + $0x498] sm:$0xff]
      %v937 = vld [vmem:[%s1 + $0x4a0] sm:$0xff]
      %v938 = vld [vmem:[%s1 + $0x4a8] sm:$0xff]
      %v939 = vld [vmem:[%s1 + $0x4b0] sm:$0xff]
      %v940 = vld [vmem:[%s1 + $0x4b8] sm:$0xff]
      %v941 = vld [vmem:[%s1 + $0x4c0] sm:$0xff]
      %v942 = vld [vmem:[%s1 + $0x4c8] sm:$0xff]
      %v943 = vld [vmem:[%s1 + $0x4d0] sm:$0xff]
      %v944 = vld [vmem:[%s1 + $0x4d8] sm:$0xff]
      %v945 = vld [vmem:[%s1 + $0x4e0] sm:$0xff]
      %v946 = vld [vmem:[%s1 + $0x4e8] sm:$0xff]
      %v947 = vld [vmem:[%s1 + $0x4f0] sm:$0xff]
      %v948 = vld [vmem:[%s1 + $0x4f8] sm:$0xff]
      %v949 = vld [vmem:[%s1 + $0x500] sm:$0xff]
      %v950 = vld [vmem:[%s1 + $0x508] sm:$0xff]
      %v951 = vld [vmem:[%s1 + $0x510] sm:$0xff]
      %v952 = vld [vmem:[%s1 + $0x518] sm:$0xff]
      %v953 = vld [vmem:[%s1 + $0x520] sm:$0xff]
      %v954 = vld [vmem:[%s1 + $0x528] sm:$0xff]
      %v955 = vld [vmem:[%s1 + $0x530] sm:$0xff]
      %v956 = vld [vmem:[%s1 + $0x538] sm:$0xff]
      %v957 = vld [vmem:[%s1 + $0x540] sm:$0xff]
      %v958 = vld [vmem:[%s1 + $0x548] sm:$0xff]
      %v959 = vld [vmem:[%s1 + $0x550] sm:$0xff]
      %v960 = vld [vmem:[%s1 + $0x558] sm:$0xff]
      %v961 = vld [vmem:[%s1 + $0x560] sm:$0xff]
      %v962 = vld [vmem:[%s1 + $0x568] sm:$0xff]
      %v963 = vld [vmem:[%s1 + $0x570] sm:$0xff]
      %v964 = vld [vmem:[%s1 + $0x578] sm:$0xff]
      %v965 = vld [vmem:[%s1 + $0x580] sm:$0xff]
      %v966 = vld [vmem:[%s1 + $0x588] sm:$0xff]
      %v967 = vld [vmem:[%s1 + $0x590] sm:$0xff]
      %v968 = vld [vmem:[%s1 + $0x598] sm:$0xff]
      %v969 = vld [vmem:[%s1 + $0x5a0] sm:$0xff]
      %v970 = vld [vmem:[%s1 + $0x5a8] sm:$0xff]
      %v971 = vld [vmem:[%s1 + $0x5b0] sm:$0xff]
      %v972 = vld [vmem:[%s1 + $0x5b8] sm:$0xff]
      %v973 = vld [vmem:[%s1 + $0x5c0] sm:$0xff]
      %v974 = vld [vmem:[%s1 + $0x5c8] sm:$0xff]
      %v975 = vld [vmem:[%s1 + $0x5d0] sm:$0xff]
      %v976 = vld [vmem:[%s1 + $0x5d8] sm:$0xff]
      %v977 = vld [vmem:[%s1 + $0x5e0] sm:$0xff]
      %v978 = vld [vmem:[%s1 + $0x5e8] sm:$0xff]
      %v979 = vld [vmem:[%s1 + $0x5f0] sm:$0xff]
      %v980 = vld [vmem:[%s1 + $0x5f8] sm:$0xff]
      %v981 = vld [vmem:[%s1 + $0x600] sm:$0xff]
      %v982 = vld [vmem:[%s1 + $0x608] sm:$0xff]
      %v983 = vld [vmem:[%s1 + $0x610] sm:$0xff]
      %v984 = vld [vmem:[%s1 + $0x618] sm:$0xff]
      %v985 = vld [vmem:[%s1 + $0x620] sm:$0xff]
      %v986 = vld [vmem:[%s1 + $0x628] sm:$0xff]
      %v987 = vld [vmem:[%s1 + $0x630] sm:$0xff]
      %v988 = vld [vmem:[%s1 + $0x638] sm:$0xff]
      %v989 = vld [vmem:[%s1 + $0x640] sm:$0xff]
      %v990 = vld [vmem:[%s1 + $0x648] sm:$0xff]
      %v991 = vld [vmem:[%s1 + $0x650] sm:$0xff]
      %v992 = vld [vmem:[%s1 + $0x658] sm:$0xff]
      %v993 = vld [vmem:[%s1 + $0x660] sm:$0xff]
      %v994 = vld [vmem:[%s1 + $0x668] sm:$0xff]
      %v995 = vld [vmem:[%s1 + $0x670] sm:$0xff]
      %v996 = vld [vmem:[%s1 + $0x678] sm:$0xff]
      %v997 = vld [vmem:[%s1 + $0x680] sm:$0xff]
      %v998 = vld [vmem:[%s1 + $0x688] sm:$0xff]
      %v999 = vld [vmem:[%s1 + $0x690] sm:$0xff]
      %v1000 = vld [vmem:[%s1 + $0x698] sm:$0xff]
      %v1001 = vld [vmem:[%s1 + $0x6a0] sm:$0xff]
      %v1002 = vld [vmem:[%s1 + $0x6a8] sm:$0xff]
      %v1003 = vld [vmem:[%s1 + $0x6b0] sm:$0xff]
      %v1004 = vld [vmem:[%s1 + $0x6b8] sm:$0xff]
      %v1005 = vld [vmem:[%s1 + $0x6c0] sm:$0xff]
      %v1006 = vld [vmem:[%s1 + $0x6c8] sm:$0xff]
      %v1007 = vld [vmem:[%s1 + $0x6d0] sm:$0xff]
      %v1008 = vld [vmem:[%s1 + $0x6d8] sm:$0xff]
      %v1009 = vld [vmem:[%s1 + $0x6e0] sm:$0xff]
      %v1010 = vld [vmem:[%s1 + $0x6e8] sm:$0xff]
      %v1011 = vld [vmem:[%s1 + $0x6f0] sm:$0xff]
      %v1012 = vld [vmem:[%s1 + $0x6f8] sm:$0xff]
      %v1013 = vld [vmem:[%s1 + $0x700] sm:$0xff]
      %v1014 = vld [vmem:[%s1 + $0x708] sm:$0xff]
      %v1015 = vld [vmem:[%s1 + $0x710] sm:$0xff]
      %v1016 = vld [vmem:[%s1 + $0x718] sm:$0xff]
      %v1017 = vld [vmem:[%s1 + $0x720] sm:$0xff]
      %v1018 = vld [vmem:[%s1 + $0x728] sm:$0xff]
      %v1019 = vld [vmem:[%s1 + $0x730] sm:$0xff]
      %v1020 = vld [vmem:[%s1 + $0x738] sm:$0xff]
      %v1021 = vld [vmem:[%s1 + $0x740] sm:$0xff]
      %v1022 = vld [vmem:[%s1 + $0x748] sm:$0xff]
      %v1023 = vld [vmem:[%s1 + $0x750] sm:$0xff]
      %v1024 = vld [vmem:[%s1 + $0x758] sm:$0xff]
      %v1025 = vld [vmem:[%s1 + $0x760] sm:$0xff]
      %v1026 = vld [vmem:[%s1 + $0x768] sm:$0xff]
      %v1027 = vld [vmem:[%s1 + $0x770] sm:$0xff]
      %v1028 = vld [vmem:[%s1 + $0x778] sm:$0xff]
      %v1029 = vld [vmem:[%s1 + $0x780] sm:$0xff]
      %v1030 = vld [vmem:[%s1 + $0x788] sm:$0xff]
      %v1031 = vld [vmem:[%s1 + $0x790] sm:$0xff]
      %v1032 = vld [vmem:[%s1 + $0x798] sm:$0xff]
      %v1033 = vld [vmem:[%s1 + $0x7a0] sm:$0xff]
      %v1034 = vld [vmem:[%s1 + $0x7a8] sm:$0xff]
      %v1035 = vld [vmem:[%s1 + $0x7b0] sm:$0xff]
      %v1036 = vld [vmem:[%s1 + $0x7b8] sm:$0xff]
      %v1037 = vld [vmem:[%s1 + $0x7c0] sm:$0xff]
      %v1038 = vld [vmem:[%s1 + $0x7c8] sm:$0xff]
      %v1039 = vld [vmem:[%s1 + $0x7d0] sm:$0xff]
      %v1040 = vld [vmem:[%s1 + $0x7d8] sm:$0xff]
      %v1041 = vld [vmem:[%s1 + $0x7e0] sm:$0xff]
      %v1042 = vld [vmem:[%s1 + $0x7e8] sm:$0xff]
      %v1043 = vld [vmem:[%s1 + $0x7f0] sm:$0xff]
      %v1044 = vld [vmem:[%s1 + $0x7f8] sm:$0xff]
      %v1045 = vld [vmem:[%s1 + $0x800] sm:$0xff]
      %v1046 = vld [vmem:[%s1 + $0x808] sm:$0xff]
      %v1047 = vld [vmem:[%s1 + $0x810] sm:$0xff]
      %v1048 = vld [vmem:[%s1 + $0x818] sm:$0xff]
      %v1049 = vld [vmem:[%s1 + $0x820] sm:$0xff]
      %v1050 = vld [vmem:[%s1 + $0x828] sm:$0xff]
      %v1051 = vld [vmem:[%s1 + $0x830] sm:$0xff]
      %v1052 = vld [vmem:[%s1 + $0x838] sm:$0xff]
      %v1053 = vld [vmem:[%s1 + $0x840] sm:$0xff]
      %v1054 = vld [vmem:[%s1 + $0x848] sm:$0xff]
      %v1055 = vld [vmem:[%s1 + $0x850] sm:$0xff]
      %v1056 = vld [vmem:[%s1 + $0x858] sm:$0xff]
      %v1057 = vld [vmem:[%s1 + $0x860] sm:$0xff]
      %v1058 = vld [vmem:[%s1 + $0x868] sm:$0xff]
      %v1059 = vld [vmem:[%s1 + $0x870] sm:$0xff]
      %v1060 = vld [vmem:[%s1 + $0x878] sm:$0xff]
      %v1061 = vld [vmem:[%s1 + $0x880] sm:$0xff]
      %v1062 = vld [vmem:[%s1 + $0x888] sm:$0xff]
      %v1063 = vld [vmem:[%s1 + $0x890] sm:$0xff]
      %v1064 = vld [vmem:[%s1 + $0x898] sm:$0xff]
      %v1065 = vld [vmem:[%s1 + $0x8a0] sm:$0xff]
      %v1066 = vld [vmem:[%s1 + $0x8a8] sm:$0xff]
      %v1067 = vld [vmem:[%s1 + $0x8b0] sm:$0xff]
      %v1068 = vld [vmem:[%s1 + $0x8b8] sm:$0xff]
      %v1069 = vld [vmem:[%s1 + $0x8c0] sm:$0xff]
      %v1070 = vld [vmem:[%s1 + $0x8c8] sm:$0xff]
      %v1071 = vld [vmem:[%s1 + $0x8d0] sm:$0xff]
      %v1072 = vld [vmem:[%s1 + $0x8d8] sm:$0xff]
      %v1073 = vld [vmem:[%s1 + $0x8e0] sm:$0xff]
      %v1074 = vld [vmem:[%s1 + $0x8e8] sm:$0xff]
      %v1075 = vld [vmem:[%s1 + $0x8f0] sm:$0xff]
      %v1076 = vld [vmem:[%s1 + $0x8f8] sm:$0xff]
      %v1077 = vld [vmem:[%s1 + $0x900] sm:$0xff]
      %v1078 = vld [vmem:[%s1 + $0x908] sm:$0xff]
      %v1079 = vld [vmem:[%s1 + $0x910] sm:$0xff]
      %v1080 = vld [vmem:[%s1 + $0x918] sm:$0xff]
      %v1081 = vld [vmem:[%s1 + $0x920] sm:$0xff]
      %v1082 = vld [vmem:[%s1 + $0x928] sm:$0xff]
      %v1083 = vld [vmem:[%s1 + $0x930] sm:$0xff]
      %v1084 = vld [vmem:[%s1 + $0x938] sm:$0xff]
      %v1085 = vld [vmem:[%s1 + $0x940] sm:$0xff]
      %v1086 = vld [vmem:[%s1 + $0x948] sm:$0xff]
      %v1087 = vld [vmem:[%s1 + $0x950] sm:$0xff]
      %v1088 = vld [vmem:[%s1 + $0x958] sm:$0xff]
      %v1089 = vld [vmem:[%s1 + $0x960] sm:$0xff]
      %v1090 = vld [vmem:[%s1 + $0x968] sm:$0xff]
      %v1091 = vld [vmem:[%s1 + $0x970] sm:$0xff]
      %v1092 = vld [vmem:[%s1 + $0x978] sm:$0xff]
      %v1093 = vld [vmem:[%s1 + $0x980] sm:$0xff]
      %v1094 = vld [vmem:[%s1 + $0x988] sm:$0xff]
      %v1095 = vld [vmem:[%s1 + $0x990] sm:$0xff]
      %v1096 = vld [vmem:[%s1 + $0x998] sm:$0xff]
      %v1097 = vld [vmem:[%s1 + $0x9a0] sm:$0xff]
      %v1098 = vld [vmem:[%s1 + $0x9a8] sm:$0xff]
      %v1099 = vld [vmem:[%s1 + $0x9b0] sm:$0xff]
      %v1100 = vld [vmem:[%s1 + $0x9b8] sm:$0xff]
      %v1101 = vld [vmem:[%s1 + $0x9c0] sm:$0xff]
      %v1102 = vld [vmem:[%s1 + $0x9c8] sm:$0xff]
      %v1103 = vld [vmem:[%s1 + $0x9d0] sm:$0xff]
      %v1104 = vld [vmem:[%s1 + $0x9d8] sm:$0xff]
      %v1105 = vld [vmem:[%s1 + $0x9e0] sm:$0xff]
      %v1106 = vld [vmem:[%s1 + $0x9e8] sm:$0xff]
      %v1107 = vld [vmem:[%s1 + $0x9f0] sm:$0xff]
      %v1108 = vld [vmem:[%s1 + $0x9f8] sm:$0xff]
      %v1109 = vld [vmem:[%s1 + $0xa00] sm:$0xff]
      %v1110 = vld [vmem:[%s1 + $0xa08] sm:$0xff]
      %v1111 = vld [vmem:[%s1 + $0xa10] sm:$0xff]
      %v1112 = vld [vmem:[%s1 + $0xa18] sm:$0xff]
      %v1113 = vld [vmem:[%s1 + $0xa20] sm:$0xff]
      %v1114 = vld [vmem:[%s1 + $0xa28] sm:$0xff]
      %v1115 = vld [vmem:[%s1 + $0xa30] sm:$0xff]
      %v1116 = vld [vmem:[%s1 + $0xa38] sm:$0xff]
      %v1117 = vld [vmem:[%s1 + $0xa40] sm:$0xff]
      %v1118 = vld [vmem:[%s1 + $0xa48] sm:$0xff]
      %v1119 = vld [vmem:[%s1 + $0xa50] sm:$0xff]
      %v1120 = vld [vmem:[%s1 + $0xa58] sm:$0xff]
      %v1121 = vld [vmem:[%s1 + $0xa60] sm:$0xff]
      %v1122 = vld [vmem:[%s1 + $0xa68] sm:$0xff]
      %v1123 = vld [vmem:[%s1 + $0xa70] sm:$0xff]
      %v1124 = vld [vmem:[%s1 + $0xa78] sm:$0xff]
      %v1125 = vld [vmem:[%s1 + $0xa80] sm:$0xff]
      %v1126 = vld [vmem:[%s1 + $0xa88] sm:$0xff]
      %v1127 = vld [vmem:[%s1 + $0xa90] sm:$0xff]
      %v1128 = vld [vmem:[%s1 + $0xa98] sm:$0xff]
      %v1129 = vld [vmem:[%s1 + $0xaa0] sm:$0xff]
      %v1130 = vld [vmem:[%s1 + $0xaa8] sm:$0xff]
      %v1131 = vld [vmem:[%s1 + $0xab0] sm:$0xff]
      %v1132 = vld [vmem:[%s1 + $0xab8] sm:$0xff]
      %v1133 = vld [vmem:[%s1 + $0xac0] sm:$0xff]
      %v1134 = vld [vmem:[%s1 + $0xac8] sm:$0xff]
      %v1135 = vld [vmem:[%s1 + $0xad0] sm:$0xff]
      %v1136 = vld [vmem:[%s1 + $0xad8] sm:$0xff]
      %v1137 = vld [vmem:[%s1 + $0xae0] sm:$0xff]
      %v1138 = vld [vmem:[%s1 + $0xae8] sm:$0xff]
      %v1139 = vld [vmem:[%s1 + $0xaf0] sm:$0xff]
      %v1140 = vld [vmem:[%s1 + $0xaf8] sm:$0xff]
      %v1141 = vld [vmem:[%s1 + $0xb00] sm:$0xff]
      %v1142 = vld [vmem:[%s1 + $0xb08] sm:$0xff]
      %v1143 = vld [vmem:[%s1 + $0xb10] sm:$0xff]
      %v1144 = vld [vmem:[%s1 + $0xb18] sm:$0xff]
      %v1145 = vld [vmem:[%s1 + $0xb20] sm:$0xff]
      %v1146 = vld [vmem:[%s1 + $0xb28] sm:$0xff]
      %v1147 = vld [vmem:[%s1 + $0xb30] sm:$0xff]
      %v1148 = vld [vmem:[%s1 + $0xb38] sm:$0xff]
      %v1149 = vld [vmem:[%s1 + $0xb40] sm:$0xff]
      %v1150 = vld [vmem:[%s1 + $0xb48] sm:$0xff]
      %v1151 = vld [vmem:[%s1 + $0xb50] sm:$0xff]
      %v1152 = vld [vmem:[%s1 + $0xb58] sm:$0xff]
      %v1153 = vld [vmem:[%s1 + $0xb60] sm:$0xff]
      %v1154 = vld [vmem:[%s1 + $0xb68] sm:$0xff]
      %v1155 = vld [vmem:[%s1 + $0xb70] sm:$0xff]
      %v1156 = vld [vmem:[%s1 + $0xb78] sm:$0xff]
      %v1157 = vld [vmem:[%s1 + $0xb80] sm:$0xff]
      %v1158 = vld [vmem:[%s1 + $0xb88] sm:$0xff]
      %v1159 = vld [vmem:[%s1 + $0xb90] sm:$0xff]
      %v1160 = vld [vmem:[%s1 + $0xb98] sm:$0xff]
      %v1161 = vld [vmem:[%s1 + $0xba0] sm:$0xff]
      %v1162 = vld [vmem:[%s1 + $0xba8] sm:$0xff]
      %v1163 = vld [vmem:[%s1 + $0xbb0] sm:$0xff]
      %v1164 = vld [vmem:[%s1 + $0xbb8] sm:$0xff]
      %v1165 = vld [vmem:[%s1 + $0xbc0] sm:$0xff]
      %v1166 = vld [vmem:[%s1 + $0xbc8] sm:$0xff]
      %v1167 = vld [vmem:[%s1 + $0xbd0] sm:$0xff]
      %v1168 = vld [vmem:[%s1 + $0xbd8] sm:$0xff]
      %v1169 = vld [vmem:[%s1 + $0xbe0] sm:$0xff]
      %v1170 = vld [vmem:[%s1 + $0xbe8] sm:$0xff]
      %v1171 = vld [vmem:[%s1 + $0xbf0] sm:$0xff]
      %v1172 = vld [vmem:[%s1 + $0xbf8] sm:$0xff]
      %v1173 = vld [vmem:[%s1 + $0xc00] sm:$0xff]
      %v1174 = vld [vmem:[%s1 + $0xc08] sm:$0xff]
      %v1175 = vld [vmem:[%s1 + $0xc10] sm:$0xff]
      %v1176 = vld [vmem:[%s1 + $0xc18] sm:$0xff]
      %v1177 = vld [vmem:[%s1 + $0xc20] sm:$0xff]
      %v1178 = vld [vmem:[%s1 + $0xc28] sm:$0xff]
      %v1179 = vld [vmem:[%s1 + $0xc30] sm:$0xff]
      %v1180 = vld [vmem:[%s1 + $0xc38] sm:$0xff]
      %v1181 = vld [vmem:[%s1 + $0xc40] sm:$0xff]
      %v1182 = vld [vmem:[%s1 + $0xc48] sm:$0xff]
      %v1183 = vld [vmem:[%s1 + $0xc50] sm:$0xff]
      %v1184 = vld [vmem:[%s1 + $0xc58] sm:$0xff]
      %v1185 = vld [vmem:[%s1 + $0xc60] sm:$0xff]
      %v1186 = vld [vmem:[%s1 + $0xc68] sm:$0xff]
      %v1187 = vld [vmem:[%s1 + $0xc70] sm:$0xff]
      %v1188 = vld [vmem:[%s1 + $0xc78] sm:$0xff]
      %v1189 = vld [vmem:[%s1 + $0xc80] sm:$0xff]
      %v1190 = vld [vmem:[%s1 + $0xc88] sm:$0xff]
      %v1191 = vld [vmem:[%s1 + $0xc90] sm:$0xff]
      %v1192 = vld [vmem:[%s1 + $0xc98] sm:$0xff]
      %v1193 = vld [vmem:[%s1 + $0xca0] sm:$0xff]
      %v1194 = vld [vmem:[%s1 + $0xca8] sm:$0xff]
      %v1195 = vld [vmem:[%s1 + $0xcb0] sm:$0xff]
      %v1196 = vld [vmem:[%s1 + $0xcb8] sm:$0xff]
      %v1197 = vld [vmem:[%s1 + $0xcc0] sm:$0xff]
      %v1198 = vld [vmem:[%s1 + $0xcc8] sm:$0xff]
      %v1199 = vld [vmem:[%s1 + $0xcd0] sm:$0xff]
      %v1200 = vld [vmem:[%s1 + $0xcd8] sm:$0xff]
      %v1201 = vld [vmem:[%s1 + $0xce0] sm:$0xff]
      %v1202 = vld [vmem:[%s1 + $0xce8] sm:$0xff]
      %v1203 = vld [vmem:[%s1 + $0xcf0] sm:$0xff]
      %v1204 = vld [vmem:[%s1 + $0xcf8] sm:$0xff]
      %v1205 = vld [vmem:[%s1 + $0xd00] sm:$0xff]
      %v1206 = vld [vmem:[%s1 + $0xd08] sm:$0xff]
      %v1207 = vld [vmem:[%s1 + $0xd10] sm:$0xff]
      %v1208 = vld [vmem:[%s1 + $0xd18] sm:$0xff]
      %v1209 = vld [vmem:[%s1 + $0xd20] sm:$0xff]
      %v1210 = vld [vmem:[%s1 + $0xd28] sm:$0xff]
      %v1211 = vld [vmem:[%s1 + $0xd30] sm:$0xff]
      %v1212 = vld [vmem:[%s1 + $0xd38] sm:$0xff]
      %v1213 = vld [vmem:[%s1 + $0xd40] sm:$0xff]
      %v1214 = vld [vmem:[%s1 + $0xd48] sm:$0xff]
      %v1215 = vld [vmem:[%s1 + $0xd50] sm:$0xff]
      %v1216 = vld [vmem:[%s1 + $0xd58] sm:$0xff]
      %v1217 = vld [vmem:[%s1 + $0xd60] sm:$0xff]
      %v1218 = vld [vmem:[%s1 + $0xd68] sm:$0xff]
      %v1219 = vld [vmem:[%s1 + $0xd70] sm:$0xff]
      %v1220 = vld [vmem:[%s1 + $0xd78] sm:$0xff]
      %v1221 = vld [vmem:[%s1 + $0xd80] sm:$0xff]
      %v1222 = vld [vmem:[%s1 + $0xd88] sm:$0xff]
      %v1223 = vld [vmem:[%s1 + $0xd90] sm:$0xff]
      %v1224 = vld [vmem:[%s1 + $0xd98] sm:$0xff]
      %v1225 = vld [vmem:[%s1 + $0xda0] sm:$0xff]
      %v1226 = vld [vmem:[%s1 + $0xda8] sm:$0xff]
      %v1227 = vld [vmem:[%s1 + $0xdb0] sm:$0xff]
      %v1228 = vld [vmem:[%s1 + $0xdb8] sm:$0xff]
      %v1229 = vld [vmem:[%s1 + $0xdc0] sm:$0xff]
      %v1230 = vld [vmem:[%s1 + $0xdc8] sm:$0xff]
      %v1231 = vld [vmem:[%s1 + $0xdd0] sm:$0xff]
      %v1232 = vld [vmem:[%s1 + $0xdd8] sm:$0xff]
      %v1233 = vld [vmem:[%s1 + $0xde0] sm:$0xff]
      %v1234 = vld [vmem:[%s1 + $0xde8] sm:$0xff]
      %v1235 = vld [vmem:[%s1 + $0xdf0] sm:$0xff]
      %v1236 = vld [vmem:[%s1 + $0xdf8] sm:$0xff]
      %v1237 = vld [vmem:[%s1 + $0xe00] sm:$0xff]
      %v1238 = vld [vmem:[%s1 + $0xe08] sm:$0xff]
      %v1239 = vld [vmem:[%s1 + $0xe10] sm:$0xff]
      %v1240 = vld [vmem:[%s1 + $0xe18] sm:$0xff]
      %v1241 = vld [vmem:[%s1 + $0xe20] sm:$0xff]
      %v1242 = vld [vmem:[%s1 + $0xe28] sm:$0xff]
      %v1243 = vld [vmem:[%s1 + $0xe30] sm:$0xff]
      %v1244 = vld [vmem:[%s1 + $0xe38] sm:$0xff]
      %v1245 = vld [vmem:[%s1 + $0xe40] sm:$0xff]
      %v1246 = vld [vmem:[%s1 + $0xe48] sm:$0xff]
      %v1247 = vld [vmem:[%s1 + $0xe50] sm:$0xff]
      %v1248 = vld [vmem:[%s1 + $0xe58] sm:$0xff]
      %v1249 = vld [vmem:[%s1 + $0xe60] sm:$0xff]
      %v1250 = vld [vmem:[%s1 + $0xe68] sm:$0xff]
      %v1251 = vld [vmem:[%s1 + $0xe70] sm:$0xff]
      %v1252 = vld [vmem:[%s1 + $0xe78] sm:$0xff]
      %v1253 = vld [vmem:[%s1 + $0xe80] sm:$0xff]
      %v1254 = vld [vmem:[%s1 + $0xe88] sm:$0xff]
      %v1255 = vld [vmem:[%s1 + $0xe90] sm:$0xff]
      %v1256 = vld [vmem:[%s1 + $0xe98] sm:$0xff]
      %v1257 = vld [vmem:[%s1 + $0xea0] sm:$0xff]
      %v1258 = vld [vmem:[%s1 + $0xea8] sm:$0xff]
      %v1259 = vld [vmem:[%s1 + $0xeb0] sm:$0xff]
      %v1260 = vld [vmem:[%s1 + $0xeb8] sm:$0xff]
      %v1261 = vld [vmem:[%s1 + $0xec0] sm:$0xff]
      %v1262 = vld [vmem:[%s1 + $0xec8] sm:$0xff]
      %v1263 = vld [vmem:[%s1 + $0xed0] sm:$0xff]
      %v1264 = vld [vmem:[%s1 + $0xed8] sm:$0xff]
      %v1265 = vld [vmem:[%s1 + $0xee0] sm:$0xff]
      %v1266 = vld [vmem:[%s1 + $0xee8] sm:$0xff]
      %v1267 = vld [vmem:[%s1 + $0xef0] sm:$0xff]
      %v1268 = vld [vmem:[%s1 + $0xef8] sm:$0xff]
      %v1269 = vld [vmem:[%s1 + $0xf00] sm:$0xff]
      %v1270 = vld [vmem:[%s1 + $0xf08] sm:$0xff]
      %v1271 = vld [vmem:[%s1 + $0xf10] sm:$0xff]
      %v1272 = vld [vmem:[%s1 + $0xf18] sm:$0xff]
      %v1273 = vld [vmem:[%s1 + $0xf20] sm:$0xff]
      %v1274 = vld [vmem:[%s1 + $0xf28] sm:$0xff]
      %v1275 = vld [vmem:[%s1 + $0xf30] sm:$0xff]
      %v1276 = vld [vmem:[%s1 + $0xf38] sm:$0xff]
      %v1277 = vld [vmem:[%s1 + $0xf40] sm:$0xff]
      %v1278 = vld [vmem:[%s1 + $0xf48] sm:$0xff]
      %v1279 = vld [vmem:[%s1 + $0xf50] sm:$0xff]
      %v1280 = vld [vmem:[%s1 + $0xf58] sm:$0xff]
      %v1281 = vld [vmem:[%s1 + $0xf60] sm:$0xff]
      %v1282 = vld [vmem:[%s1 + $0xf68] sm:$0xff]
      %v1283 = vld [vmem:[%s1 + $0xf70] sm:$0xff]
      %v1284 = vld [vmem:[%s1 + $0xf78] sm:$0xff]
      %v1285 = vld [vmem:[%s1 + $0xf80] sm:$0xff]
      %v1286 = vld [vmem:[%s1 + $0xf88] sm:$0xff]
      %v1287 = vld [vmem:[%s1 + $0xf90] sm:$0xff]
      %v1288 = vld [vmem:[%s1 + $0xf98] sm:$0xff]
      %v1289 = vld [vmem:[%s1 + $0xfa0] sm:$0xff]
      %v1290 = vld [vmem:[%s1 + $0xfa8] sm:$0xff]
      %v1291 = vld [vmem:[%s1 + $0xfb0] sm:$0xff]
      %v1292 = vld [vmem:[%s1 + $0xfb8] sm:$0xff]
      %v1293 = vld [vmem:[%s1 + $0xfc0] sm:$0xff]
      %v1294 = vld [vmem:[%s1 + $0xfc8] sm:$0xff]
      %v1295 = vld [vmem:[%s1 + $0xfd0] sm:$0xff]
      %v1296 = vld [vmem:[%s1 + $0xfd8] sm:$0xff]
      %v1297 = vld [vmem:[%s1 + $0xfe0] sm:$0xff]
      %v1298 = vld [vmem:[%s1 + $0xfe8] sm:$0xff]
      %v1299 = vld [vmem:[%s1 + $0xff0] sm:$0xff]
      %v1300 = vld [vmem:[%s1 + $0xff8] sm:$0xff]
      %v1301 = vld [vmem:[%s1 + $0x1000] sm:$0xff]
      %v1302 = vld [vmem:[%s1 + $0x1008] sm:$0xff]
      %v1303 = vld [vmem:[%s1 + $0x1010] sm:$0xff]
      %v1304 = vld [vmem:[%s1 + $0x1018] sm:$0xff]
      %v1305 = vld [vmem:[%s1 + $0x1020] sm:$0xff]
      %v1306 = vld [vmem:[%s1 + $0x1028] sm:$0xff]
      %v1307 = vld [vmem:[%s1 + $0x1030] sm:$0xff]
      %v1308 = vld [vmem:[%s1 + $0x1038] sm:$0xff]
      %v1309 = vld [vmem:[%s1 + $0x1040] sm:$0xff]
      %v1310 = vld [vmem:[%s1 + $0x1048] sm:$0xff]
      %v1311 = vld [vmem:[%s1 + $0x1050] sm:$0xff]
      %v1312 = vld [vmem:[%s1 + $0x1058] sm:$0xff]
      %v1313 = vld [vmem:[%s1 + $0x1060] sm:$0xff]
      %v1314 = vld [vmem:[%s1 + $0x1068] sm:$0xff]
      %v1315 = vld [vmem:[%s1 + $0x1070] sm:$0xff]
      %v1316 = vld [vmem:[%s1 + $0x1078] sm:$0xff]
      %v1317 = vld [vmem:[%s1 + $0x1080] sm:$0xff]
      %v1318 = vld [vmem:[%s1 + $0x1088] sm:$0xff]
      %v1319 = vld [vmem:[%s1 + $0x1090] sm:$0xff]
      %v1320 = vld [vmem:[%s1 + $0x1098] sm:$0xff]
      %v1321 = vld [vmem:[%s1 + $0x10a0] sm:$0xff]
      %v1322 = vld [vmem:[%s1 + $0x10a8] sm:$0xff]
      %v1323 = vld [vmem:[%s1 + $0x10b0] sm:$0xff]
      %v1324 = vld [vmem:[%s1 + $0x10b8] sm:$0xff]
      %v1325 = vld [vmem:[%s1 + $0x10c0] sm:$0xff]
      %v1326 = vld [vmem:[%s1 + $0x10c8] sm:$0xff]
      %v1327 = vld [vmem:[%s1 + $0x10d0] sm:$0xff]
      %v1328 = vld [vmem:[%s1 + $0x10d8] sm:$0xff]
      %v1329 = vld [vmem:[%s1 + $0x10e0] sm:$0xff]
      %v1330 = vld [vmem:[%s1 + $0x10e8] sm:$0xff]
      %v1331 = vld [vmem:[%s1 + $0x10f0] sm:$0xff]
      %v1332 = vld [vmem:[%s1 + $0x10f8] sm:$0xff]
      %v1333 = vld [vmem:[%s1 + $0x1100] sm:$0xff]
      %v1334 = vld [vmem:[%s1 + $0x1108] sm:$0xff]
      %v1335 = vld [vmem:[%s1 + $0x1110] sm:$0xff]
      %v1336 = vld [vmem:[%s1 + $0x1118] sm:$0xff]
      %v1337 = vld [vmem:[%s1 + $0x1120] sm:$0xff]
      %v1338 = vld [vmem:[%s1 + $0x1128] sm:$0xff]
      %v1339 = vld [vmem:[%s1 + $0x1130] sm:$0xff]
      %v1340 = vld [vmem:[%s1 + $0x1138] sm:$0xff]
      %v1341 = vld [vmem:[%s1 + $0x1140] sm:$0xff]
      %v1342 = vld [vmem:[%s1 + $0x1148] sm:$0xff]
      %v1343 = vld [vmem:[%s1 + $0x1150] sm:$0xff]
      %v1344 = vld [vmem:[%s1 + $0x1158] sm:$0xff]
      %v1345 = vld [vmem:[%s1 + $0x1160] sm:$0xff]
      %v1346 = vld [vmem:[%s1 + $0x1168] sm:$0xff]
      %v1347 = vld [vmem:[%s1 + $0x1170] sm:$0xff]
      %v1348 = vld [vmem:[%s1 + $0x1178] sm:$0xff]
      %v1349 = vld [vmem:[%s1 + $0x1180] sm:$0xff]
      %v1350 = vld [vmem:[%s1 + $0x1188] sm:$0xff]
      %v1351 = vld [vmem:[%s1 + $0x1190] sm:$0xff]
      %v1352 = vld [vmem:[%s1 + $0x1198] sm:$0xff]
      %v1353 = vld [vmem:[%s1 + $0x11a0] sm:$0xff]
      %v1354 = vld [vmem:[%s1 + $0x11a8] sm:$0xff]
      %v1355 = vld [vmem:[%s1 + $0x11b0] sm:$0xff]
      %v1356 = vld [vmem:[%s1 + $0x11b8] sm:$0xff]
      %v1357 = vld [vmem:[%s1 + $0x11c0] sm:$0xff]
      %v1358 = vld [vmem:[%s1 + $0x11c8] sm:$0xff]
      %v1359 = vld [vmem:[%s1 + $0x11d0] sm:$0xff]
      %v1360 = vld [vmem:[%s1 + $0x11d8] sm:$0xff]
      %v1361 = vld [vmem:[%s1 + $0x11e0] sm:$0xff]
      %v1362 = vld [vmem:[%s1 + $0x11e8] sm:$0xff]
      %v1363 = vld [vmem:[%s1 + $0x11f0] sm:$0xff]
      %v1364 = vld [vmem:[%s1 + $0x11f8] sm:$0xff]
      %v1365 = vld [vmem:[%s1 + $0x1200] sm:$0xff]
      %v1366 = vld [vmem:[%s1 + $0x1208] sm:$0xff]
      %v1367 = vld [vmem:[%s1 + $0x1210] sm:$0xff]
      %v1368 = vld [vmem:[%s1 + $0x1218] sm:$0xff]
      %v1369 = vld [vmem:[%s1 + $0x1220] sm:$0xff]
      %v1370 = vld [vmem:[%s1 + $0x1228] sm:$0xff]
      %v1371 = vld [vmem:[%s1 + $0x1230] sm:$0xff]
      %v1372 = vld [vmem:[%s1 + $0x1238] sm:$0xff]
      %v1373 = vld [vmem:[%s1 + $0x1240] sm:$0xff]
      %v1374 = vld [vmem:[%s1 + $0x1248] sm:$0xff]
      %v1375 = vld [vmem:[%s1 + $0x1250] sm:$0xff]
      %v1376 = vld [vmem:[%s1 + $0x1258] sm:$0xff]
      %v1377 = vld [vmem:[%s1 + $0x1260] sm:$0xff]
      %v1378 = vld [vmem:[%s1 + $0x1268] sm:$0xff]
      %v1379 = vld [vmem:[%s1 + $0x1270] sm:$0xff]
      %v1380 = vld [vmem:[%s1 + $0x1278] sm:$0xff]
      %v1381 = vld [vmem:[%s1 + $0x1280] sm:$0xff]
      %v1382 = vld [vmem:[%s1 + $0x1288] sm:$0xff]
      %v1383 = vld [vmem:[%s1 + $0x1290] sm:$0xff]
      %v1384 = vld [vmem:[%s1 + $0x1298] sm:$0xff]
      %v1385 = vld [vmem:[%s1 + $0x12a0] sm:$0xff]
      %v1386 = vld [vmem:[%s1 + $0x12a8] sm:$0xff]
      %v1387 = vld [vmem:[%s1 + $0x12b0] sm:$0xff]
      %v1388 = vld [vmem:[%s1 + $0x12b8] sm:$0xff]
      %v1389 = vld [vmem:[%s1 + $0x12c0] sm:$0xff]
      %v1390 = vld [vmem:[%s1 + $0x12c8] sm:$0xff]
      %v1391 = vld [vmem:[%s1 + $0x12d0] sm:$0xff]
      %v1392 = vld [vmem:[%s1 + $0x12d8] sm:$0xff]
      %v1393 = vld [vmem:[%s1 + $0x12e0] sm:$0xff]
      %v1394 = vld [vmem:[%s1 + $0x12e8] sm:$0xff]
      %v1395 = vld [vmem:[%s1 + $0x12f0] sm:$0xff]
      %v1396 = vld [vmem:[%s1 + $0x12f8] sm:$0xff]
      %v1397 = vld [vmem:[%s1 + $0x1300] sm:$0xff]
      %v1398 = vadd.f32 %v180, %v789
      %v1399 = vadd.f32 %v181, %v790
      %v1400 = vadd.f32 %v182, %v791
      %v1401 = vadd.f32 %v183, %v792
      %v1402 = vadd.f32 %v184, %v793
      %v1403 = vadd.f32 %v185, %v794
      %v1404 = vadd.f32 %v186, %v795
      %v1405 = vadd.f32 %v187, %v796
      %v1406 = vadd.f32 %v188, %v797
      %v1407 = vadd.f32 %v189, %v798
      %v1408 = vadd.f32 %v190, %v799
      %v1409 = vadd.f32 %v191, %v800
      %v1410 = vadd.f32 %v192, %v801
      %v1411 = vadd.f32 %v193, %v802
      %v1412 = vadd.f32 %v194, %v803
      %v1413 = vadd.f32 %v195, %v804
      %v1414 = vadd.f32 %v196, %v805
      %v1415 = vadd.f32 %v197, %v806
      %v1416 = vadd.f32 %v198, %v807
      %v1417 = vadd.f32 %v199, %v808
      %v1418 = vadd.f32 %v200, %v809
      %v1419 = vadd.f32 %v201, %v810
      %v1420 = vadd.f32 %v202, %v811
      %v1421 = vadd.f32 %v203, %v812
      %v1422 = vadd.f32 %v204, %v813
      %v1423 = vadd.f32 %v205, %v814
      %v1424 = vadd.f32 %v206, %v815
      %v1425 = vadd.f32 %v207, %v816
      %v1426 = vadd.f32 %v208, %v817
      %v1427 = vadd.f32 %v209, %v818
      %v1428 = vadd.f32 %v210, %v819
      %v1429 = vadd.f32 %v211, %v820
      %v1430 = vadd.f32 %v212, %v821
      %v1431 = vadd.f32 %v213, %v822
      %v1432 = vadd.f32 %v214, %v823
      %v1433 = vadd.f32 %v215, %v824
      %v1434 = vadd.f32 %v216, %v825
      %v1435 = vadd.f32 %v217, %v826
      %v1436 = vadd.f32 %v218, %v827
      %v1437 = vadd.f32 %v219, %v828
      %v1438 = vadd.f32 %v220, %v829
      %v1439 = vadd.f32 %v221, %v830
      %v1440 = vadd.f32 %v222, %v831
      %v1441 = vadd.f32 %v223, %v832
      %v1442 = vadd.f32 %v224, %v833
      %v1443 = vadd.f32 %v225, %v834
      %v1444 = vadd.f32 %v226, %v835
      %v1445 = vadd.f32 %v227, %v836
      %v1446 = vadd.f32 %v228, %v837
      %v1447 = vadd.f32 %v229, %v838
      %v1448 = vadd.f32 %v230, %v839
      %v1449 = vadd.f32 %v231, %v840
      %v1450 = vadd.f32 %v232, %v841
      %v1451 = vadd.f32 %v233, %v842
      %v1452 = vadd.f32 %v234, %v843
      %v1453 = vadd.f32 %v235, %v844
      %v1454 = vadd.f32 %v236, %v845
      %v1455 = vadd.f32 %v237, %v846
      %v1456 = vadd.f32 %v238, %v847
      %v1457 = vadd.f32 %v239, %v848
      %v1458 = vadd.f32 %v240, %v849
      %v1459 = vadd.f32 %v241, %v850
      %v1460 = vadd.f32 %v242, %v851
      %v1461 = vadd.f32 %v243, %v852
      %v1462 = vadd.f32 %v244, %v853
      %v1463 = vadd.f32 %v245, %v854
      %v1464 = vadd.f32 %v246, %v855
      %v1465 = vadd.f32 %v247, %v856
      %v1466 = vadd.f32 %v248, %v857
      %v1467 = vadd.f32 %v249, %v858
      %v1468 = vadd.f32 %v250, %v859
      %v1469 = vadd.f32 %v251, %v860
      %v1470 = vadd.f32 %v252, %v861
      %v1471 = vadd.f32 %v253, %v862
      %v1472 = vadd.f32 %v254, %v863
      %v1473 = vadd.f32 %v255, %v864
      %v1474 = vadd.f32 %v256, %v865
      %v1475 = vadd.f32 %v257, %v866
      %v1476 = vadd.f32 %v258, %v867
      %v1477 = vadd.f32 %v259, %v868
      %v1478 = vadd.f32 %v260, %v869
      %v1479 = vadd.f32 %v261, %v870
      %v1480 = vadd.f32 %v262, %v871
      %v1481 = vadd.f32 %v263, %v872
      %v1482 = vadd.f32 %v264, %v873
      %v1483 = vadd.f32 %v265, %v874
      %v1484 = vadd.f32 %v266, %v875
      %v1485 = vadd.f32 %v267, %v876
      %v1486 = vadd.f32 %v268, %v877
      %v1487 = vadd.f32 %v269, %v878
      %v1488 = vadd.f32 %v270, %v879
      %v1489 = vadd.f32 %v271, %v880
      %v1490 = vadd.f32 %v272, %v881
      %v1491 = vadd.f32 %v273, %v882
      %v1492 = vadd.f32 %v274, %v883
      %v1493 = vadd.f32 %v275, %v884
      %v1494 = vadd.f32 %v276, %v885
      %v1495 = vadd.f32 %v277, %v886
      %v1496 = vadd.f32 %v278, %v887
      %v1497 = vadd.f32 %v279, %v888
      %v1498 = vadd.f32 %v280, %v889
      %v1499 = vadd.f32 %v281, %v890
      %v1500 = vadd.f32 %v282, %v891
      %v1501 = vadd.f32 %v283, %v892
      %v1502 = vadd.f32 %v284, %v893
      %v1503 = vadd.f32 %v285, %v894
      %v1504 = vadd.f32 %v286, %v895
      %v1505 = vadd.f32 %v287, %v896
      %v1506 = vadd.f32 %v288, %v897
      %v1507 = vadd.f32 %v289, %v898
      %v1508 = vadd.f32 %v290, %v899
      %v1509 = vadd.f32 %v291, %v900
      %v1510 = vadd.f32 %v292, %v901
      %v1511 = vadd.f32 %v293, %v902
      %v1512 = vadd.f32 %v294, %v903
      %v1513 = vadd.f32 %v295, %v904
      %v1514 = vadd.f32 %v296, %v905
      %v1515 = vadd.f32 %v297, %v906
      %v1516 = vadd.f32 %v298, %v907
      %v1517 = vadd.f32 %v299, %v908
      %v1518 = vadd.f32 %v300, %v909
      %v1519 = vadd.f32 %v301, %v910
      %v1520 = vadd.f32 %v302, %v911
      %v1521 = vadd.f32 %v303, %v912
      %v1522 = vadd.f32 %v304, %v913
      %v1523 = vadd.f32 %v305, %v914
      %v1524 = vadd.f32 %v306, %v915
      %v1525 = vadd.f32 %v307, %v916
      %v1526 = vadd.f32 %v308, %v917
      %v1527 = vadd.f32 %v309, %v918
      %v1528 = vadd.f32 %v310, %v919
      %v1529 = vadd.f32 %v311, %v920
      %v1530 = vadd.f32 %v312, %v921
      %v1531 = vadd.f32 %v313, %v922
      %v1532 = vadd.f32 %v314, %v923
      %v1533 = vadd.f32 %v315, %v924
      %v1534 = vadd.f32 %v316, %v925
      %v1535 = vadd.f32 %v317, %v926
      %v1536 = vadd.f32 %v318, %v927
      %v1537 = vadd.f32 %v319, %v928
      %v1538 = vadd.f32 %v320, %v929
      %v1539 = vadd.f32 %v321, %v930
      %v1540 = vadd.f32 %v322, %v931
      %v1541 = vadd.f32 %v323, %v932
      %v1542 = vadd.f32 %v324, %v933
      %v1543 = vadd.f32 %v325, %v934
      %v1544 = vadd.f32 %v326, %v935
      %v1545 = vadd.f32 %v327, %v936
      %v1546 = vadd.f32 %v328, %v937
      %v1547 = vadd.f32 %v329, %v938
      %v1548 = vadd.f32 %v330, %v939
      %v1549 = vadd.f32 %v331, %v940
      %v1550 = vadd.f32 %v332, %v941
      %v1551 = vadd.f32 %v333, %v942
      %v1552 = vadd.f32 %v334, %v943
      %v1553 = vadd.f32 %v335, %v944
      %v1554 = vadd.f32 %v336, %v945
      %v1555 = vadd.f32 %v337, %v946
      %v1556 = vadd.f32 %v338, %v947
      %v1557 = vadd.f32 %v339, %v948
      %v1558 = vadd.f32 %v340, %v949
      %v1559 = vadd.f32 %v341, %v950
      %v1560 = vadd.f32 %v342, %v951
      %v1561 = vadd.f32 %v343, %v952
      %v1562 = vadd.f32 %v344, %v953
      %v1563 = vadd.f32 %v345, %v954
      %v1564 = vadd.f32 %v346, %v955
      %v1565 = vadd.f32 %v347, %v956
      %v1566 = vadd.f32 %v348, %v957
      %v1567 = vadd.f32 %v349, %v958
      %v1568 = vadd.f32 %v350, %v959
      %v1569 = vadd.f32 %v351, %v960
      %v1570 = vadd.f32 %v352, %v961
      %v1571 = vadd.f32 %v353, %v962
      %v1572 = vadd.f32 %v354, %v963
      %v1573 = vadd.f32 %v355, %v964
      %v1574 = vadd.f32 %v356, %v965
      %v1575 = vadd.f32 %v357, %v966
      %v1576 = vadd.f32 %v358, %v967
      %v1577 = vadd.f32 %v359, %v968
      %v1578 = vadd.f32 %v360, %v969
      %v1579 = vadd.f32 %v361, %v970
      %v1580 = vadd.f32 %v362, %v971
      %v1581 = vadd.f32 %v363, %v972
      %v1582 = vadd.f32 %v364, %v973
      %v1583 = vadd.f32 %v365, %v974
      %v1584 = vadd.f32 %v366, %v975
      %v1585 = vadd.f32 %v367, %v976
      %v1586 = vadd.f32 %v368, %v977
      %v1587 = vadd.f32 %v369, %v978
      %v1588 = vadd.f32 %v370, %v979
      %v1589 = vadd.f32 %v371, %v980
      %v1590 = vadd.f32 %v372, %v981
      %v1591 = vadd.f32 %v373, %v982
      %v1592 = vadd.f32 %v374, %v983
      %v1593 = vadd.f32 %v375, %v984
      %v1594 = vadd.f32 %v376, %v985
      %v1595 = vadd.f32 %v377, %v986
      %v1596 = vadd.f32 %v378, %v987
      %v1597 = vadd.f32 %v379, %v988
      %v1598 = vadd.f32 %v380, %v989
      %v1599 = vadd.f32 %v381, %v990
      %v1600 = vadd.f32 %v382, %v991
      %v1601 = vadd.f32 %v383, %v992
      %v1602 = vadd.f32 %v384, %v993
      %v1603 = vadd.f32 %v385, %v994
      %v1604 = vadd.f32 %v386, %v995
      %v1605 = vadd.f32 %v387, %v996
      %v1606 = vadd.f32 %v388, %v997
      %v1607 = vadd.f32 %v389, %v998
      %v1608 = vadd.f32 %v390, %v999
      %v1609 = vadd.f32 %v391, %v1000
      %v1610 = vadd.f32 %v392, %v1001
      %v1611 = vadd.f32 %v393, %v1002
      %v1612 = vadd.f32 %v394, %v1003
      %v1613 = vadd.f32 %v395, %v1004
      %v1614 = vadd.f32 %v396, %v1005
      %v1615 = vadd.f32 %v397, %v1006
      %v1616 = vadd.f32 %v398, %v1007
      %v1617 = vadd.f32 %v399, %v1008
      %v1618 = vadd.f32 %v400, %v1009
      %v1619 = vadd.f32 %v401, %v1010
      %v1620 = vadd.f32 %v402, %v1011
      %v1621 = vadd.f32 %v403, %v1012
      %v1622 = vadd.f32 %v404, %v1013
      %v1623 = vadd.f32 %v405, %v1014
      %v1624 = vadd.f32 %v406, %v1015
      %v1625 = vadd.f32 %v407, %v1016
      %v1626 = vadd.f32 %v408, %v1017
      %v1627 = vadd.f32 %v409, %v1018
      %v1628 = vadd.f32 %v410, %v1019
      %v1629 = vadd.f32 %v411, %v1020
      %v1630 = vadd.f32 %v412, %v1021
      %v1631 = vadd.f32 %v413, %v1022
      %v1632 = vadd.f32 %v414, %v1023
      %v1633 = vadd.f32 %v415, %v1024
      %v1634 = vadd.f32 %v416, %v1025
      %v1635 = vadd.f32 %v417, %v1026
      %v1636 = vadd.f32 %v418, %v1027
      %v1637 = vadd.f32 %v419, %v1028
      %v1638 = vadd.f32 %v420, %v1029
      %v1639 = vadd.f32 %v421, %v1030
      %v1640 = vadd.f32 %v422, %v1031
      %v1641 = vadd.f32 %v423, %v1032
      %v1642 = vadd.f32 %v424, %v1033
      %v1643 = vadd.f32 %v425, %v1034
      %v1644 = vadd.f32 %v426, %v1035
      %v1645 = vadd.f32 %v427, %v1036
      %v1646 = vadd.f32 %v428, %v1037
      %v1647 = vadd.f32 %v429, %v1038
      %v1648 = vadd.f32 %v430, %v1039
      %v1649 = vadd.f32 %v431, %v1040
      %v1650 = vadd.f32 %v432, %v1041
      %v1651 = vadd.f32 %v433, %v1042
      %v1652 = vadd.f32 %v434, %v1043
      %v1653 = vadd.f32 %v435, %v1044
      %v1654 = vadd.f32 %v436, %v1045
      %v1655 = vadd.f32 %v437, %v1046
      %v1656 = vadd.f32 %v438, %v1047
      %v1657 = vadd.f32 %v439, %v1048
      %v1658 = vadd.f32 %v440, %v1049
      %v1659 = vadd.f32 %v441, %v1050
      %v1660 = vadd.f32 %v442, %v1051
      %v1661 = vadd.f32 %v443, %v1052
      %v1662 = vadd.f32 %v444, %v1053
      %v1663 = vadd.f32 %v445, %v1054
      %v1664 = vadd.f32 %v446, %v1055
      %v1665 = vadd.f32 %v447, %v1056
      %v1666 = vadd.f32 %v448, %v1057
      %v1667 = vadd.f32 %v449, %v1058
      %v1668 = vadd.f32 %v450, %v1059
      %v1669 = vadd.f32 %v451, %v1060
      %v1670 = vadd.f32 %v452, %v1061
      %v1671 = vadd.f32 %v453, %v1062
      %v1672 = vadd.f32 %v454, %v1063
      %v1673 = vadd.f32 %v455, %v1064
      %v1674 = vadd.f32 %v456, %v1065
      %v1675 = vadd.f32 %v457, %v1066
      %v1676 = vadd.f32 %v458, %v1067
      %v1677 = vadd.f32 %v459, %v1068
      %v1678 = vadd.f32 %v460, %v1069
      %v1679 = vadd.f32 %v461, %v1070
      %v1680 = vadd.f32 %v462, %v1071
      %v1681 = vadd.f32 %v463, %v1072
      %v1682 = vadd.f32 %v464, %v1073
      %v1683 = vadd.f32 %v465, %v1074
      %v1684 = vadd.f32 %v466, %v1075
      %v1685 = vadd.f32 %v467, %v1076
      %v1686 = vadd.f32 %v468, %v1077
      %v1687 = vadd.f32 %v469, %v1078
      %v1688 = vadd.f32 %v470, %v1079
      %v1689 = vadd.f32 %v471, %v1080
      %v1690 = vadd.f32 %v472, %v1081
      %v1691 = vadd.f32 %v473, %v1082
      %v1692 = vadd.f32 %v474, %v1083
      %v1693 = vadd.f32 %v475, %v1084
      %v1694 = vadd.f32 %v476, %v1085
      %v1695 = vadd.f32 %v477, %v1086
      %v1696 = vadd.f32 %v478, %v1087
      %v1697 = vadd.f32 %v479, %v1088
      %v1698 = vadd.f32 %v480, %v1089
      %v1699 = vadd.f32 %v481, %v1090
      %v1700 = vadd.f32 %v482, %v1091
      %v1701 = vadd.f32 %v483, %v1092
      %v1702 = vadd.f32 %v484, %v1093
      %v1703 = vadd.f32 %v485, %v1094
      %v1704 = vadd.f32 %v486, %v1095
      %v1705 = vadd.f32 %v487, %v1096
      %v1706 = vadd.f32 %v488, %v1097
      %v1707 = vadd.f32 %v489, %v1098
      %v1708 = vadd.f32 %v490, %v1099
      %v1709 = vadd.f32 %v491, %v1100
      %v1710 = vadd.f32 %v492, %v1101
      %v1711 = vadd.f32 %v493, %v1102
      %v1712 = vadd.f32 %v494, %v1103
      %v1713 = vadd.f32 %v495, %v1104
      %v1714 = vadd.f32 %v496, %v1105
      %v1715 = vadd.f32 %v497, %v1106
      %v1716 = vadd.f32 %v498, %v1107
      %v1717 = vadd.f32 %v499, %v1108
      %v1718 = vadd.f32 %v500, %v1109
      %v1719 = vadd.f32 %v501, %v1110
      %v1720 = vadd.f32 %v502, %v1111
      %v1721 = vadd.f32 %v503, %v1112
      %v1722 = vadd.f32 %v504, %v1113
      %v1723 = vadd.f32 %v505, %v1114
      %v1724 = vadd.f32 %v506, %v1115
      %v1725 = vadd.f32 %v507, %v1116
      %v1726 = vadd.f32 %v508, %v1117
      %v1727 = vadd.f32 %v509, %v1118
      %v1728 = vadd.f32 %v510, %v1119
      %v1729 = vadd.f32 %v511, %v1120
      %v1730 = vadd.f32 %v512, %v1121
      %v1731 = vadd.f32 %v513, %v1122
      %v1732 = vadd.f32 %v514, %v1123
      %v1733 = vadd.f32 %v515, %v1124
      %v1734 = vadd.f32 %v516, %v1125
      %v1735 = vadd.f32 %v517, %v1126
      %v1736 = vadd.f32 %v518, %v1127
      %v1737 = vadd.f32 %v519, %v1128
      %v1738 = vadd.f32 %v520, %v1129
      %v1739 = vadd.f32 %v521, %v1130
      %v1740 = vadd.f32 %v522, %v1131
      %v1741 = vadd.f32 %v523, %v1132
      %v1742 = vadd.f32 %v524, %v1133
      %v1743 = vadd.f32 %v525, %v1134
      %v1744 = vadd.f32 %v526, %v1135
      %v1745 = vadd.f32 %v527, %v1136
      %v1746 = vadd.f32 %v528, %v1137
      %v1747 = vadd.f32 %v529, %v1138
      %v1748 = vadd.f32 %v530, %v1139
      %v1749 = vadd.f32 %v531, %v1140
      %v1750 = vadd.f32 %v532, %v1141
      %v1751 = vadd.f32 %v533, %v1142
      %v1752 = vadd.f32 %v534, %v1143
      %v1753 = vadd.f32 %v535, %v1144
      %v1754 = vadd.f32 %v536, %v1145
      %v1755 = vadd.f32 %v537, %v1146
      %v1756 = vadd.f32 %v538, %v1147
      %v1757 = vadd.f32 %v539, %v1148
      %v1758 = vadd.f32 %v540, %v1149
      %v1759 = vadd.f32 %v541, %v1150
      %v1760 = vadd.f32 %v542, %v1151
      %v1761 = vadd.f32 %v543, %v1152
      %v1762 = vadd.f32 %v544, %v1153
      %v1763 = vadd.f32 %v545, %v1154
      %v1764 = vadd.f32 %v546, %v1155
      %v1765 = vadd.f32 %v547, %v1156
      %v1766 = vadd.f32 %v548, %v1157
      %v1767 = vadd.f32 %v549, %v1158
      %v1768 = vadd.f32 %v550, %v1159
      %v1769 = vadd.f32 %v551, %v1160
      %v1770 = vadd.f32 %v552, %v1161
      %v1771 = vadd.f32 %v553, %v1162
      %v1772 = vadd.f32 %v554, %v1163
      %v1773 = vadd.f32 %v555, %v1164
      %v1774 = vadd.f32 %v556, %v1165
      %v1775 = vadd.f32 %v557, %v1166
      %v1776 = vadd.f32 %v558, %v1167
      %v1777 = vadd.f32 %v559, %v1168
      %v1778 = vadd.f32 %v560, %v1169
      %v1779 = vadd.f32 %v561, %v1170
      %v1780 = vadd.f32 %v562, %v1171
      %v1781 = vadd.f32 %v563, %v1172
      %v1782 = vadd.f32 %v564, %v1173
      %v1783 = vadd.f32 %v565, %v1174
      %v1784 = vadd.f32 %v566, %v1175
      %v1785 = vadd.f32 %v567, %v1176
      %v1786 = vadd.f32 %v568, %v1177
      %v1787 = vadd.f32 %v569, %v1178
      %v1788 = vadd.f32 %v570, %v1179
      %v1789 = vadd.f32 %v571, %v1180
      %v1790 = vadd.f32 %v572, %v1181
      %v1791 = vadd.f32 %v573, %v1182
      %v1792 = vadd.f32 %v574, %v1183
      %v1793 = vadd.f32 %v575, %v1184
      %v1794 = vadd.f32 %v576, %v1185
      %v1795 = vadd.f32 %v577, %v1186
      %v1796 = vadd.f32 %v578, %v1187
      %v1797 = vadd.f32 %v579, %v1188
      %v1798 = vadd.f32 %v580, %v1189
      %v1799 = vadd.f32 %v581, %v1190
      %v1800 = vadd.f32 %v582, %v1191
      %v1801 = vadd.f32 %v583, %v1192
      %v1802 = vadd.f32 %v584, %v1193
      %v1803 = vadd.f32 %v585, %v1194
      %v1804 = vadd.f32 %v586, %v1195
      %v1805 = vadd.f32 %v587, %v1196
      %v1806 = vadd.f32 %v588, %v1197
      %v1807 = vadd.f32 %v589, %v1198
      %v1808 = vadd.f32 %v590, %v1199
      %v1809 = vadd.f32 %v591, %v1200
      %v1810 = vadd.f32 %v592, %v1201
      %v1811 = vadd.f32 %v593, %v1202
      %v1812 = vadd.f32 %v594, %v1203
      %v1813 = vadd.f32 %v595, %v1204
      %v1814 = vadd.f32 %v596, %v1205
      %v1815 = vadd.f32 %v597, %v1206
      %v1816 = vadd.f32 %v598, %v1207
      %v1817 = vadd.f32 %v599, %v1208
      %v1818 = vadd.f32 %v600, %v1209
      %v1819 = vadd.f32 %v601, %v1210
      %v1820 = vadd.f32 %v602, %v1211
      %v1821 = vadd.f32 %v603, %v1212
      %v1822 = vadd.f32 %v604, %v1213
      %v1823 = vadd.f32 %v605, %v1214
      %v1824 = vadd.f32 %v606, %v1215
      %v1825 = vadd.f32 %v607, %v1216
      %v1826 = vadd.f32 %v608, %v1217
      %v1827 = vadd.f32 %v609, %v1218
      %v1828 = vadd.f32 %v610, %v1219
      %v1829 = vadd.f32 %v611, %v1220
      %v1830 = vadd.f32 %v612, %v1221
      %v1831 = vadd.f32 %v613, %v1222
      %v1832 = vadd.f32 %v614, %v1223
      %v1833 = vadd.f32 %v615, %v1224
      %v1834 = vadd.f32 %v616, %v1225
      %v1835 = vadd.f32 %v617, %v1226
      %v1836 = vadd.f32 %v618, %v1227
      %v1837 = vadd.f32 %v619, %v1228
      %v1838 = vadd.f32 %v620, %v1229
      %v1839 = vadd.f32 %v621, %v1230
      %v1840 = vadd.f32 %v622, %v1231
      %v1841 = vadd.f32 %v623, %v1232
      %v1842 = vadd.f32 %v624, %v1233
      %v1843 = vadd.f32 %v625, %v1234
      %v1844 = vadd.f32 %v626, %v1235
      %v1845 = vadd.f32 %v627, %v1236
      %v1846 = vadd.f32 %v628, %v1237
      %v1847 = vadd.f32 %v629, %v1238
      %v1848 = vadd.f32 %v630, %v1239
      %v1849 = vadd.f32 %v631, %v1240
      %v1850 = vadd.f32 %v632, %v1241
      %v1851 = vadd.f32 %v633, %v1242
      %v1852 = vadd.f32 %v634, %v1243
      %v1853 = vadd.f32 %v635, %v1244
      %v1854 = vadd.f32 %v636, %v1245
      %v1855 = vadd.f32 %v637, %v1246
      %v1856 = vadd.f32 %v638, %v1247
      %v1857 = vadd.f32 %v639, %v1248
      %v1858 = vadd.f32 %v640, %v1249
      %v1859 = vadd.f32 %v641, %v1250
      %v1860 = vadd.f32 %v642, %v1251
      %v1861 = vadd.f32 %v643, %v1252
      %v1862 = vadd.f32 %v644, %v1253
      %v1863 = vadd.f32 %v645, %v1254
      %v1864 = vadd.f32 %v646, %v1255
      %v1865 = vadd.f32 %v647, %v1256
      %v1866 = vadd.f32 %v648, %v1257
      %v1867 = vadd.f32 %v649, %v1258
      %v1868 = vadd.f32 %v650, %v1259
      %v1869 = vadd.f32 %v651, %v1260
      %v1870 = vadd.f32 %v652, %v1261
      %v1871 = vadd.f32 %v653, %v1262
      %v1872 = vadd.f32 %v654, %v1263
      %v1873 = vadd.f32 %v655, %v1264
      %v1874 = vadd.f32 %v656, %v1265
      %v1875 = vadd.f32 %v657, %v1266
      %v1876 = vadd.f32 %v658, %v1267
      %v1877 = vadd.f32 %v659, %v1268
      %v1878 = vadd.f32 %v660, %v1269
      %v1879 = vadd.f32 %v661, %v1270
      %v1880 = vadd.f32 %v662, %v1271
      %v1881 = vadd.f32 %v663, %v1272
      %v1882 = vadd.f32 %v664, %v1273
      %v1883 = vadd.f32 %v665, %v1274
      %v1884 = vadd.f32 %v666, %v1275
      %v1885 = vadd.f32 %v667, %v1276
      %v1886 = vadd.f32 %v668, %v1277
      %v1887 = vadd.f32 %v669, %v1278
      %v1888 = vadd.f32 %v670, %v1279
      %v1889 = vadd.f32 %v671, %v1280
      %v1890 = vadd.f32 %v672, %v1281
      %v1891 = vadd.f32 %v673, %v1282
      %v1892 = vadd.f32 %v674, %v1283
      %v1893 = vadd.f32 %v675, %v1284
      %v1894 = vadd.f32 %v676, %v1285
      %v1895 = vadd.f32 %v677, %v1286
      %v1896 = vadd.f32 %v678, %v1287
      %v1897 = vadd.f32 %v679, %v1288
      %v1898 = vadd.f32 %v680, %v1289
      %v1899 = vadd.f32 %v681, %v1290
      %v1900 = vadd.f32 %v682, %v1291
      %v1901 = vadd.f32 %v683, %v1292
      %v1902 = vadd.f32 %v684, %v1293
      %v1903 = vadd.f32 %v685, %v1294
      %v1904 = vadd.f32 %v686, %v1295
      %v1905 = vadd.f32 %v687, %v1296
      %v1906 = vadd.f32 %v688, %v1297
      %v1907 = vadd.f32 %v689, %v1298
      %v1908 = vadd.f32 %v690, %v1299
      %v1909 = vadd.f32 %v691, %v1300
      %v1910 = vadd.f32 %v692, %v1301
      %v1911 = vadd.f32 %v693, %v1302
      %v1912 = vadd.f32 %v694, %v1303
      %v1913 = vadd.f32 %v695, %v1304
      %v1914 = vadd.f32 %v696, %v1305
      %v1915 = vadd.f32 %v697, %v1306
      %v1916 = vadd.f32 %v698, %v1307
      %v1917 = vadd.f32 %v699, %v1308
      %v1918 = vadd.f32 %v700, %v1309
      %v1919 = vadd.f32 %v701, %v1310
      %v1920 = vadd.f32 %v702, %v1311
      %v1921 = vadd.f32 %v703, %v1312
      %v1922 = vadd.f32 %v704, %v1313
      %v1923 = vadd.f32 %v705, %v1314
      %v1924 = vadd.f32 %v706, %v1315
      %v1925 = vadd.f32 %v707, %v1316
      %v1926 = vadd.f32 %v708, %v1317
      %v1927 = vadd.f32 %v709, %v1318
      %v1928 = vadd.f32 %v710, %v1319
      %v1929 = vadd.f32 %v711, %v1320
      %v1930 = vadd.f32 %v712, %v1321
      %v1931 = vadd.f32 %v713, %v1322
      %v1932 = vadd.f32 %v714, %v1323
      %v1933 = vadd.f32 %v715, %v1324
      %v1934 = vadd.f32 %v716, %v1325
      %v1935 = vadd.f32 %v717, %v1326
      %v1936 = vadd.f32 %v718, %v1327
      %v1937 = vadd.f32 %v719, %v1328
      %v1938 = vadd.f32 %v720, %v1329
      %v1939 = vadd.f32 %v721, %v1330
      %v1940 = vadd.f32 %v722, %v1331
      %v1941 = vadd.f32 %v723, %v1332
      %v1942 = vadd.f32 %v724, %v1333
      %v1943 = vadd.f32 %v725, %v1334
      %v1944 = vadd.f32 %v726, %v1335
      %v1945 = vadd.f32 %v727, %v1336
      %v1946 = vadd.f32 %v728, %v1337
      %v1947 = vadd.f32 %v729, %v1338
      %v1948 = vadd.f32 %v730, %v1339
      %v1949 = vadd.f32 %v731, %v1340
      %v1950 = vadd.f32 %v732, %v1341
      %v1951 = vadd.f32 %v733, %v1342
      %v1952 = vadd.f32 %v734, %v1343
      %v1953 = vadd.f32 %v735, %v1344
      %v1954 = vadd.f32 %v736, %v1345
      %v1955 = vadd.f32 %v737, %v1346
      %v1956 = vadd.f32 %v738, %v1347
      %v1957 = vadd.f32 %v739, %v1348
      %v1958 = vadd.f32 %v740, %v1349
      %v1959 = vadd.f32 %v741, %v1350
      %v1960 = vadd.f32 %v742, %v1351
      %v1961 = vadd.f32 %v743, %v1352
      %v1962 = vadd.f32 %v744, %v1353
      %v1963 = vadd.f32 %v745, %v1354
      %v1964 = vadd.f32 %v746, %v1355
      %v1965 = vadd.f32 %v747, %v1356
      %v1966 = vadd.f32 %v748, %v1357
      %v1967 = vadd.f32 %v749, %v1358
      %v1968 = vadd.f32 %v750, %v1359
      %v1969 = vadd.f32 %v751, %v1360
      %v1970 = vadd.f32 %v752, %v1361
      %v1971 = vadd.f32 %v753, %v1362
      %v1972 = vadd.f32 %v754, %v1363
      %v1973 = vadd.f32 %v755, %v1364
      %v1974 = vadd.f32 %v756, %v1365
      %v1975 = vadd.f32 %v757, %v1366
      %v1976 = vadd.f32 %v758, %v1367
      %v1977 = vadd.f32 %v759, %v1368
      %v1978 = vadd.f32 %v760, %v1369
      %v1979 = vadd.f32 %v761, %v1370
      %v1980 = vadd.f32 %v762, %v1371
      %v1981 = vadd.f32 %v763, %v1372
      %v1982 = vadd.f32 %v764, %v1373
      %v1983 = vadd.f32 %v765, %v1374
      %v1984 = vadd.f32 %v766, %v1375
      %v1985 = vadd.f32 %v767, %v1376
      %v1986 = vadd.f32 %v768, %v1377
      %v1987 = vadd.f32 %v769, %v1378
      %v1988 = vadd.f32 %v770, %v1379
      %v1989 = vadd.f32 %v771, %v1380
      %v1990 = vadd.f32 %v772, %v1381
      %v1991 = vadd.f32 %v773, %v1382
      %v1992 = vadd.f32 %v774, %v1383
      %v1993 = vadd.f32 %v775, %v1384
      %v1994 = vadd.f32 %v776, %v1385
      %v1995 = vadd.f32 %v777, %v1386
      %v1996 = vadd.f32 %v778, %v1387
      %v1997 = vadd.f32 %v779, %v1388
      %v1998 = vadd.f32 %v780, %v1389
      %v1999 = vadd.f32 %v781, %v1390
      %v2000 = vadd.f32 %v782, %v1391
      %v2001 = vadd.f32 %v783, %v1392
      %v2002 = vadd.f32 %v784, %v1393
      %v2003 = vadd.f32 %v785, %v1394
      %v2004 = vadd.f32 %v786, %v1395
      %v2005 = vadd.f32 %v787, %v1396
      %v2006 = vadd.f32 %v788, %v1397
      %v2007 = vmax.f32 %v1398, 0.0
      %v2008 = vmax.f32 %v1399, 0.0
      %v2009 = vmax.f32 %v1400, 0.0
      %v2010 = vmax.f32 %v1401, 0.0
      %v2011 = vmax.f32 %v1402, 0.0
      %v2012 = vmax.f32 %v1403, 0.0
      %v2013 = vmax.f32 %v1404, 0.0
      %v2014 = vmax.f32 %v1405, 0.0
      %v2015 = vmax.f32 %v1406, 0.0
      %v2016 = vmax.f32 %v1407, 0.0
      %v2017 = vmax.f32 %v1408, 0.0
      %v2018 = vmax.f32 %v1409, 0.0
      %v2019 = vmax.f32 %v1410, 0.0
      %v2020 = vmax.f32 %v1411, 0.0
      %v2021 = vmax.f32 %v1412, 0.0
      %v2022 = vmax.f32 %v1413, 0.0
      %v2023 = vmax.f32 %v1414, 0.0
      %v2024 = vmax.f32 %v1415, 0.0
      %v2025 = vmax.f32 %v1416, 0.0
      %v2026 = vmax.f32 %v1417, 0.0
      %v2027 = vmax.f32 %v1418, 0.0
      %v2028 = vmax.f32 %v1419, 0.0
      %v2029 = vmax.f32 %v1420, 0.0
      %v2030 = vmax.f32 %v1421, 0.0
      %v2031 = vmax.f32 %v1422, 0.0
      %v2032 = vmax.f32 %v1423, 0.0
      %v2033 = vmax.f32 %v1424, 0.0
      %v2034 = vmax.f32 %v1425, 0.0
      %v2035 = vmax.f32 %v1426, 0.0
      %v2036 = vmax.f32 %v1427, 0.0
      %v2037 = vmax.f32 %v1428, 0.0
      %v2038 = vmax.f32 %v1429, 0.0
      %v2039 = vmax.f32 %v1430, 0.0
      %v2040 = vmax.f32 %v1431, 0.0
      %v2041 = vmax.f32 %v1432, 0.0
      %v2042 = vmax.f32 %v1433, 0.0
      %v2043 = vmax.f32 %v1434, 0.0
      %v2044 = vmax.f32 %v1435, 0.0
      %v2045 = vmax.f32 %v1436, 0.0
      %v2046 = vmax.f32 %v1437, 0.0
      %v2047 = vmax.f32 %v1438, 0.0
      %v2048 = vmax.f32 %v1439, 0.0
      %v2049 = vmax.f32 %v1440, 0.0
      %v2050 = vmax.f32 %v1441, 0.0
      %v2051 = vmax.f32 %v1442, 0.0
      %v2052 = vmax.f32 %v1443, 0.0
      %v2053 = vmax.f32 %v1444, 0.0
      %v2054 = vmax.f32 %v1445, 0.0
      %v2055 = vmax.f32 %v1446, 0.0
      %v2056 = vmax.f32 %v1447, 0.0
      %v2057 = vmax.f32 %v1448, 0.0
      %v2058 = vmax.f32 %v1449, 0.0
      %v2059 = vmax.f32 %v1450, 0.0
      %v2060 = vmax.f32 %v1451, 0.0
      %v2061 = vmax.f32 %v1452, 0.0
      %v2062 = vmax.f32 %v1453, 0.0
      %v2063 = vmax.f32 %v1454, 0.0
      %v2064 = vmax.f32 %v1455, 0.0
      %v2065 = vmax.f32 %v1456, 0.0
      %v2066 = vmax.f32 %v1457, 0.0
      %v2067 = vmax.f32 %v1458, 0.0
      %v2068 = vmax.f32 %v1459, 0.0
      %v2069 = vmax.f32 %v1460, 0.0
      %v2070 = vmax.f32 %v1461, 0.0
      %v2071 = vmax.f32 %v1462, 0.0
      %v2072 = vmax.f32 %v1463, 0.0
      %v2073 = vmax.f32 %v1464, 0.0
      %v2074 = vmax.f32 %v1465, 0.0
      %v2075 = vmax.f32 %v1466, 0.0
      %v2076 = vmax.f32 %v1467, 0.0
      %v2077 = vmax.f32 %v1468, 0.0
      %v2078 = vmax.f32 %v1469, 0.0
      %v2079 = vmax.f32 %v1470, 0.0
      %v2080 = vmax.f32 %v1471, 0.0
      %v2081 = vmax.f32 %v1472, 0.0
      %v2082 = vmax.f32 %v1473, 0.0
      %v2083 = vmax.f32 %v1474, 0.0
      %v2084 = vmax.f32 %v1475, 0.0
      %v2085 = vmax.f32 %v1476, 0.0
      %v2086 = vmax.f32 %v1477, 0.0
      %v2087 = vmax.f32 %v1478, 0.0
      %v2088 = vmax.f32 %v1479, 0.0
      %v2089 = vmax.f32 %v1480, 0.0
      %v2090 = vmax.f32 %v1481, 0.0
      %v2091 = vmax.f32 %v1482, 0.0
      %v2092 = vmax.f32 %v1483, 0.0
      %v2093 = vmax.f32 %v1484, 0.0
      %v2094 = vmax.f32 %v1485, 0.0
      %v2095 = vmax.f32 %v1486, 0.0
      %v2096 = vmax.f32 %v1487, 0.0
      %v2097 = vmax.f32 %v1488, 0.0
      %v2098 = vmax.f32 %v1489, 0.0
      %v2099 = vmax.f32 %v1490, 0.0
      %v2100 = vmax.f32 %v1491, 0.0
      %v2101 = vmax.f32 %v1492, 0.0
      %v2102 = vmax.f32 %v1493, 0.0
      %v2103 = vmax.f32 %v1494, 0.0
      %v2104 = vmax.f32 %v1495, 0.0
      %v2105 = vmax.f32 %v1496, 0.0
      %v2106 = vmax.f32 %v1497, 0.0
      %v2107 = vmax.f32 %v1498, 0.0
      %v2108 = vmax.f32 %v1499, 0.0
      %v2109 = vmax.f32 %v1500, 0.0
      %v2110 = vmax.f32 %v1501, 0.0
      %v2111 = vmax.f32 %v1502, 0.0
      %v2112 = vmax.f32 %v1503, 0.0
      %v2113 = vmax.f32 %v1504, 0.0
      %v2114 = vmax.f32 %v1505, 0.0
      %v2115 = vmax.f32 %v1506, 0.0
      %v2116 = vmax.f32 %v1507, 0.0
      %v2117 = vmax.f32 %v1508, 0.0
      %v2118 = vmax.f32 %v1509, 0.0
      %v2119 = vmax.f32 %v1510, 0.0
      %v2120 = vmax.f32 %v1511, 0.0
      %v2121 = vmax.f32 %v1512, 0.0
      %v2122 = vmax.f32 %v1513, 0.0
      %v2123 = vmax.f32 %v1514, 0.0
      %v2124 = vmax.f32 %v1515, 0.0
      %v2125 = vmax.f32 %v1516, 0.0
      %v2126 = vmax.f32 %v1517, 0.0
      %v2127 = vmax.f32 %v1518, 0.0
      %v2128 = vmax.f32 %v1519, 0.0
      %v2129 = vmax.f32 %v1520, 0.0
      %v2130 = vmax.f32 %v1521, 0.0
      %v2131 = vmax.f32 %v1522, 0.0
      %v2132 = vmax.f32 %v1523, 0.0
      %v2133 = vmax.f32 %v1524, 0.0
      %v2134 = vmax.f32 %v1525, 0.0
      %v2135 = vmax.f32 %v1526, 0.0
      %v2136 = vmax.f32 %v1527, 0.0
      %v2137 = vmax.f32 %v1528, 0.0
      %v2138 = vmax.f32 %v1529, 0.0
      %v2139 = vmax.f32 %v1530, 0.0
      %v2140 = vmax.f32 %v1531, 0.0
      %v2141 = vmax.f32 %v1532, 0.0
      %v2142 = vmax.f32 %v1533, 0.0
      %v2143 = vmax.f32 %v1534, 0.0
      %v2144 = vmax.f32 %v1535, 0.0
      %v2145 = vmax.f32 %v1536, 0.0
      %v2146 = vmax.f32 %v1537, 0.0
      %v2147 = vmax.f32 %v1538, 0.0
      %v2148 = vmax.f32 %v1539, 0.0
      %v2149 = vmax.f32 %v1540, 0.0
      %v2150 = vmax.f32 %v1541, 0.0
      %v2151 = vmax.f32 %v1542, 0.0
      %v2152 = vmax.f32 %v1543, 0.0
      %v2153 = vmax.f32 %v1544, 0.0
      %v2154 = vmax.f32 %v1545, 0.0
      %v2155 = vmax.f32 %v1546, 0.0
      %v2156 = vmax.f32 %v1547, 0.0
      %v2157 = vmax.f32 %v1548, 0.0
      %v2158 = vmax.f32 %v1549, 0.0
      %v2159 = vmax.f32 %v1550, 0.0
      %v2160 = vmax.f32 %v1551, 0.0
      %v2161 = vmax.f32 %v1552, 0.0
      %v2162 = vmax.f32 %v1553, 0.0
      %v2163 = vmax.f32 %v1554, 0.0
      %v2164 = vmax.f32 %v1555, 0.0
      %v2165 = vmax.f32 %v1556, 0.0
      %v2166 = vmax.f32 %v1557, 0.0
      %v2167 = vmax.f32 %v1558, 0.0
      %v2168 = vmax.f32 %v1559, 0.0
      %v2169 = vmax.f32 %v1560, 0.0
      %v2170 = vmax.f32 %v1561, 0.0
      %v2171 = vmax.f32 %v1562, 0.0
      %v2172 = vmax.f32 %v1563, 0.0
      %v2173 = vmax.f32 %v1564, 0.0
      %v2174 = vmax.f32 %v1565, 0.0
      %v2175 = vmax.f32 %v1566, 0.0
      %v2176 = vmax.f32 %v1567, 0.0
      %v2177 = vmax.f32 %v1568, 0.0
      %v2178 = vmax.f32 %v1569, 0.0
      %v2179 = vmax.f32 %v1570, 0.0
      %v2180 = vmax.f32 %v1571, 0.0
      %v2181 = vmax.f32 %v1572, 0.0
      %v2182 = vmax.f32 %v1573, 0.0
      %v2183 = vmax.f32 %v1574, 0.0
      %v2184 = vmax.f32 %v1575, 0.0
      %v2185 = vmax.f32 %v1576, 0.0
      %v2186 = vmax.f32 %v1577, 0.0
      %v2187 = vmax.f32 %v1578, 0.0
      %v2188 = vmax.f32 %v1579, 0.0
      %v2189 = vmax.f32 %v1580, 0.0
      %v2190 = vmax.f32 %v1581, 0.0
      %v2191 = vmax.f32 %v1582, 0.0
      %v2192 = vmax.f32 %v1583, 0.0
      %v2193 = vmax.f32 %v1584, 0.0
      %v2194 = vmax.f32 %v1585, 0.0
      %v2195 = vmax.f32 %v1586, 0.0
      %v2196 = vmax.f32 %v1587, 0.0
      %v2197 = vmax.f32 %v1588, 0.0
      %v2198 = vmax.f32 %v1589, 0.0
      %v2199 = vmax.f32 %v1590, 0.0
      %v2200 = vmax.f32 %v1591, 0.0
      %v2201 = vmax.f32 %v1592, 0.0
      %v2202 = vmax.f32 %v1593, 0.0
      %v2203 = vmax.f32 %v1594, 0.0
      %v2204 = vmax.f32 %v1595, 0.0
      %v2205 = vmax.f32 %v1596, 0.0
      %v2206 = vmax.f32 %v1597, 0.0
      %v2207 = vmax.f32 %v1598, 0.0
      %v2208 = vmax.f32 %v1599, 0.0
      %v2209 = vmax.f32 %v1600, 0.0
      %v2210 = vmax.f32 %v1601, 0.0
      %v2211 = vmax.f32 %v1602, 0.0
      %v2212 = vmax.f32 %v1603, 0.0
      %v2213 = vmax.f32 %v1604, 0.0
      %v2214 = vmax.f32 %v1605, 0.0
      %v2215 = vmax.f32 %v1606, 0.0
      %v2216 = vmax.f32 %v1607, 0.0
      %v2217 = vmax.f32 %v1608, 0.0
      %v2218 = vmax.f32 %v1609, 0.0
      %v2219 = vmax.f32 %v1610, 0.0
      %v2220 = vmax.f32 %v1611, 0.0
      %v2221 = vmax.f32 %v1612, 0.0
      %v2222 = vmax.f32 %v1613, 0.0
      %v2223 = vmax.f32 %v1614, 0.0
      %v2224 = vmax.f32 %v1615, 0.0
      %v2225 = vmax.f32 %v1616, 0.0
      %v2226 = vmax.f32 %v1617, 0.0
      %v2227 = vmax.f32 %v1618, 0.0
      %v2228 = vmax.f32 %v1619, 0.0
      %v2229 = vmax.f32 %v1620, 0.0
      %v2230 = vmax.f32 %v1621, 0.0
      %v2231 = vmax.f32 %v1622, 0.0
      %v2232 = vmax.f32 %v1623, 0.0
      %v2233 = vmax.f32 %v1624, 0.0
      %v2234 = vmax.f32 %v1625, 0.0
      %v2235 = vmax.f32 %v1626, 0.0
      %v2236 = vmax.f32 %v1627, 0.0
      %v2237 = vmax.f32 %v1628, 0.0
      %v2238 = vmax.f32 %v1629, 0.0
      %v2239 = vmax.f32 %v1630, 0.0
      %v2240 = vmax.f32 %v1631, 0.0
      %v2241 = vmax.f32 %v1632, 0.0
      %v2242 = vmax.f32 %v1633, 0.0
      %v2243 = vmax.f32 %v1634, 0.0
      %v2244 = vmax.f32 %v1635, 0.0
      %v2245 = vmax.f32 %v1636, 0.0
      %v2246 = vmax.f32 %v1637, 0.0
      %v2247 = vmax.f32 %v1638, 0.0
      %v2248 = vmax.f32 %v1639, 0.0
      %v2249 = vmax.f32 %v1640, 0.0
      %v2250 = vmax.f32 %v1641, 0.0
      %v2251 = vmax.f32 %v1642, 0.0
      %v2252 = vmax.f32 %v1643, 0.0
      %v2253 = vmax.f32 %v1644, 0.0
      %v2254 = vmax.f32 %v1645, 0.0
      %v2255 = vmax.f32 %v1646, 0.0
      %v2256 = vmax.f32 %v1647, 0.0
      %v2257 = vmax.f32 %v1648, 0.0
      %v2258 = vmax.f32 %v1649, 0.0
      %v2259 = vmax.f32 %v1650, 0.0
      %v2260 = vmax.f32 %v1651, 0.0
      %v2261 = vmax.f32 %v1652, 0.0
      %v2262 = vmax.f32 %v1653, 0.0
      %v2263 = vmax.f32 %v1654, 0.0
      %v2264 = vmax.f32 %v1655, 0.0
      %v2265 = vmax.f32 %v1656, 0.0
      %v2266 = vmax.f32 %v1657, 0.0
      %v2267 = vmax.f32 %v1658, 0.0
      %v2268 = vmax.f32 %v1659, 0.0
      %v2269 = vmax.f32 %v1660, 0.0
      %v2270 = vmax.f32 %v1661, 0.0
      %v2271 = vmax.f32 %v1662, 0.0
      %v2272 = vmax.f32 %v1663, 0.0
      %v2273 = vmax.f32 %v1664, 0.0
      %v2274 = vmax.f32 %v1665, 0.0
      %v2275 = vmax.f32 %v1666, 0.0
      %v2276 = vmax.f32 %v1667, 0.0
      %v2277 = vmax.f32 %v1668, 0.0
      %v2278 = vmax.f32 %v1669, 0.0
      %v2279 = vmax.f32 %v1670, 0.0
      %v2280 = vmax.f32 %v1671, 0.0
      %v2281 = vmax.f32 %v1672, 0.0
      %v2282 = vmax.f32 %v1673, 0.0
      %v2283 = vmax.f32 %v1674, 0.0
      %v2284 = vmax.f32 %v1675, 0.0
      %v2285 = vmax.f32 %v1676, 0.0
      %v2286 = vmax.f32 %v1677, 0.0
      %v2287 = vmax.f32 %v1678, 0.0
      %v2288 = vmax.f32 %v1679, 0.0
      %v2289 = vmax.f32 %v1680, 0.0
      %v2290 = vmax.f32 %v1681, 0.0
      %v2291 = vmax.f32 %v1682, 0.0
      %v2292 = vmax.f32 %v1683, 0.0
      %v2293 = vmax.f32 %v1684, 0.0
      %v2294 = vmax.f32 %v1685, 0.0
      %v2295 = vmax.f32 %v1686, 0.0
      %v2296 = vmax.f32 %v1687, 0.0
      %v2297 = vmax.f32 %v1688, 0.0
      %v2298 = vmax.f32 %v1689, 0.0
      %v2299 = vmax.f32 %v1690, 0.0
      %v2300 = vmax.f32 %v1691, 0.0
      %v2301 = vmax.f32 %v1692, 0.0
      %v2302 = vmax.f32 %v1693, 0.0
      %v2303 = vmax.f32 %v1694, 0.0
      %v2304 = vmax.f32 %v1695, 0.0
      %v2305 = vmax.f32 %v1696, 0.0
      %v2306 = vmax.f32 %v1697, 0.0
      %v2307 = vmax.f32 %v1698, 0.0
      %v2308 = vmax.f32 %v1699, 0.0
      %v2309 = vmax.f32 %v1700, 0.0
      %v2310 = vmax.f32 %v1701, 0.0
      %v2311 = vmax.f32 %v1702, 0.0
      %v2312 = vmax.f32 %v1703, 0.0
      %v2313 = vmax.f32 %v1704, 0.0
      %v2314 = vmax.f32 %v1705, 0.0
      %v2315 = vmax.f32 %v1706, 0.0
      %v2316 = vmax.f32 %v1707, 0.0
      %v2317 = vmax.f32 %v1708, 0.0
      %v2318 = vmax.f32 %v1709, 0.0
      %v2319 = vmax.f32 %v1710, 0.0
      %v2320 = vmax.f32 %v1711, 0.0
      %v2321 = vmax.f32 %v1712, 0.0
      %v2322 = vmax.f32 %v1713, 0.0
      %v2323 = vmax.f32 %v1714, 0.0
      %v2324 = vmax.f32 %v1715, 0.0
      %v2325 = vmax.f32 %v1716, 0.0
      %v2326 = vmax.f32 %v1717, 0.0
      %v2327 = vmax.f32 %v1718, 0.0
      %v2328 = vmax.f32 %v1719, 0.0
      %v2329 = vmax.f32 %v1720, 0.0
      %v2330 = vmax.f32 %v1721, 0.0
      %v2331 = vmax.f32 %v1722, 0.0
      %v2332 = vmax.f32 %v1723, 0.0
      %v2333 = vmax.f32 %v1724, 0.0
      %v2334 = vmax.f32 %v1725, 0.0
      %v2335 = vmax.f32 %v1726, 0.0
      %v2336 = vmax.f32 %v1727, 0.0
      %v2337 = vmax.f32 %v1728, 0.0
      %v2338 = vmax.f32 %v1729, 0.0
      %v2339 = vmax.f32 %v1730, 0.0
      %v2340 = vmax.f32 %v1731, 0.0
      %v2341 = vmax.f32 %v1732, 0.0
      %v2342 = vmax.f32 %v1733, 0.0
      %v2343 = vmax.f32 %v1734, 0.0
      %v2344 = vmax.f32 %v1735, 0.0
      %v2345 = vmax.f32 %v1736, 0.0
      %v2346 = vmax.f32 %v1737, 0.0
      %v2347 = vmax.f32 %v1738, 0.0
      %v2348 = vmax.f32 %v1739, 0.0
      %v2349 = vmax.f32 %v1740, 0.0
      %v2350 = vmax.f32 %v1741, 0.0
      %v2351 = vmax.f32 %v1742, 0.0
      %v2352 = vmax.f32 %v1743, 0.0
      %v2353 = vmax.f32 %v1744, 0.0
      %v2354 = vmax.f32 %v1745, 0.0
      %v2355 = vmax.f32 %v1746, 0.0
      %v2356 = vmax.f32 %v1747, 0.0
      %v2357 = vmax.f32 %v1748, 0.0
      %v2358 = vmax.f32 %v1749, 0.0
      %v2359 = vmax.f32 %v1750, 0.0
      %v2360 = vmax.f32 %v1751, 0.0
      %v2361 = vmax.f32 %v1752, 0.0
      %v2362 = vmax.f32 %v1753, 0.0
      %v2363 = vmax.f32 %v1754, 0.0
      %v2364 = vmax.f32 %v1755, 0.0
      %v2365 = vmax.f32 %v1756, 0.0
      %v2366 = vmax.f32 %v1757, 0.0
      %v2367 = vmax.f32 %v1758, 0.0
      %v2368 = vmax.f32 %v1759, 0.0
      %v2369 = vmax.f32 %v1760, 0.0
      %v2370 = vmax.f32 %v1761, 0.0
      %v2371 = vmax.f32 %v1762, 0.0
      %v2372 = vmax.f32 %v1763, 0.0
      %v2373 = vmax.f32 %v1764, 0.0
      %v2374 = vmax.f32 %v1765, 0.0
      %v2375 = vmax.f32 %v1766, 0.0
      %v2376 = vmax.f32 %v1767, 0.0
      %v2377 = vmax.f32 %v1768, 0.0
      %v2378 = vmax.f32 %v1769, 0.0
      %v2379 = vmax.f32 %v1770, 0.0
      %v2380 = vmax.f32 %v1771, 0.0
      %v2381 = vmax.f32 %v1772, 0.0
      %v2382 = vmax.f32 %v1773, 0.0
      %v2383 = vmax.f32 %v1774, 0.0
      %v2384 = vmax.f32 %v1775, 0.0
      %v2385 = vmax.f32 %v1776, 0.0
      %v2386 = vmax.f32 %v1777, 0.0
      %v2387 = vmax.f32 %v1778, 0.0
      %v2388 = vmax.f32 %v1779, 0.0
      %v2389 = vmax.f32 %v1780, 0.0
      %v2390 = vmax.f32 %v1781, 0.0
      %v2391 = vmax.f32 %v1782, 0.0
      %v2392 = vmax.f32 %v1783, 0.0
      %v2393 = vmax.f32 %v1784, 0.0
      %v2394 = vmax.f32 %v1785, 0.0
      %v2395 = vmax.f32 %v1786, 0.0
      %v2396 = vmax.f32 %v1787, 0.0
      %v2397 = vmax.f32 %v1788, 0.0
      %v2398 = vmax.f32 %v1789, 0.0
      %v2399 = vmax.f32 %v1790, 0.0
      %v2400 = vmax.f32 %v1791, 0.0
      %v2401 = vmax.f32 %v1792, 0.0
      %v2402 = vmax.f32 %v1793, 0.0
      %v2403 = vmax.f32 %v1794, 0.0
      %v2404 = vmax.f32 %v1795, 0.0
      %v2405 = vmax.f32 %v1796, 0.0
      %v2406 = vmax.f32 %v1797, 0.0
      %v2407 = vmax.f32 %v1798, 0.0
      %v2408 = vmax.f32 %v1799, 0.0
      %v2409 = vmax.f32 %v1800, 0.0
      %v2410 = vmax.f32 %v1801, 0.0
      %v2411 = vmax.f32 %v1802, 0.0
      %v2412 = vmax.f32 %v1803, 0.0
      %v2413 = vmax.f32 %v1804, 0.0
      %v2414 = vmax.f32 %v1805, 0.0
      %v2415 = vmax.f32 %v1806, 0.0
      %v2416 = vmax.f32 %v1807, 0.0
      %v2417 = vmax.f32 %v1808, 0.0
      %v2418 = vmax.f32 %v1809, 0.0
      %v2419 = vmax.f32 %v1810, 0.0
      %v2420 = vmax.f32 %v1811, 0.0
      %v2421 = vmax.f32 %v1812, 0.0
      %v2422 = vmax.f32 %v1813, 0.0
      %v2423 = vmax.f32 %v1814, 0.0
      %v2424 = vmax.f32 %v1815, 0.0
      %v2425 = vmax.f32 %v1816, 0.0
      %v2426 = vmax.f32 %v1817, 0.0
      %v2427 = vmax.f32 %v1818, 0.0
      %v2428 = vmax.f32 %v1819, 0.0
      %v2429 = vmax.f32 %v1820, 0.0
      %v2430 = vmax.f32 %v1821, 0.0
      %v2431 = vmax.f32 %v1822, 0.0
      %v2432 = vmax.f32 %v1823, 0.0
      %v2433 = vmax.f32 %v1824, 0.0
      %v2434 = vmax.f32 %v1825, 0.0
      %v2435 = vmax.f32 %v1826, 0.0
      %v2436 = vmax.f32 %v1827, 0.0
      %v2437 = vmax.f32 %v1828, 0.0
      %v2438 = vmax.f32 %v1829, 0.0
      %v2439 = vmax.f32 %v1830, 0.0
      %v2440 = vmax.f32 %v1831, 0.0
      %v2441 = vmax.f32 %v1832, 0.0
      %v2442 = vmax.f32 %v1833, 0.0
      %v2443 = vmax.f32 %v1834, 0.0
      %v2444 = vmax.f32 %v1835, 0.0
      %v2445 = vmax.f32 %v1836, 0.0
      %v2446 = vmax.f32 %v1837, 0.0
      %v2447 = vmax.f32 %v1838, 0.0
      %v2448 = vmax.f32 %v1839, 0.0
      %v2449 = vmax.f32 %v1840, 0.0
      %v2450 = vmax.f32 %v1841, 0.0
      %v2451 = vmax.f32 %v1842, 0.0
      %v2452 = vmax.f32 %v1843, 0.0
      %v2453 = vmax.f32 %v1844, 0.0
      %v2454 = vmax.f32 %v1845, 0.0
      %v2455 = vmax.f32 %v1846, 0.0
      %v2456 = vmax.f32 %v1847, 0.0
      %v2457 = vmax.f32 %v1848, 0.0
      %v2458 = vmax.f32 %v1849, 0.0
      %v2459 = vmax.f32 %v1850, 0.0
      %v2460 = vmax.f32 %v1851, 0.0
      %v2461 = vmax.f32 %v1852, 0.0
      %v2462 = vmax.f32 %v1853, 0.0
      %v2463 = vmax.f32 %v1854, 0.0
      %v2464 = vmax.f32 %v1855, 0.0
      %v2465 = vmax.f32 %v1856, 0.0
      %v2466 = vmax.f32 %v1857, 0.0
      %v2467 = vmax.f32 %v1858, 0.0
      %v2468 = vmax.f32 %v1859, 0.0
      %v2469 = vmax.f32 %v1860, 0.0
      %v2470 = vmax.f32 %v1861, 0.0
      %v2471 = vmax.f32 %v1862, 0.0
      %v2472 = vmax.f32 %v1863, 0.0
      %v2473 = vmax.f32 %v1864, 0.0
      %v2474 = vmax.f32 %v1865, 0.0
      %v2475 = vmax.f32 %v1866, 0.0
      %v2476 = vmax.f32 %v1867, 0.0
      %v2477 = vmax.f32 %v1868, 0.0
      %v2478 = vmax.f32 %v1869, 0.0
      %v2479 = vmax.f32 %v1870, 0.0
      %v2480 = vmax.f32 %v1871, 0.0
      %v2481 = vmax.f32 %v1872, 0.0
      %v2482 = vmax.f32 %v1873, 0.0
      %v2483 = vmax.f32 %v1874, 0.0
      %v2484 = vmax.f32 %v1875, 0.0
      %v2485 = vmax.f32 %v1876, 0.0
      %v2486 = vmax.f32 %v1877, 0.0
      %v2487 = vmax.f32 %v1878, 0.0
      %v2488 = vmax.f32 %v1879, 0.0
      %v2489 = vmax.f32 %v1880, 0.0
      %v2490 = vmax.f32 %v1881, 0.0
      %v2491 = vmax.f32 %v1882, 0.0
      %v2492 = vmax.f32 %v1883, 0.0
      %v2493 = vmax.f32 %v1884, 0.0
      %v2494 = vmax.f32 %v1885, 0.0
      %v2495 = vmax.f32 %v1886, 0.0
      %v2496 = vmax.f32 %v1887, 0.0
      %v2497 = vmax.f32 %v1888, 0.0
      %v2498 = vmax.f32 %v1889, 0.0
      %v2499 = vmax.f32 %v1890, 0.0
      %v2500 = vmax.f32 %v1891, 0.0
      %v2501 = vmax.f32 %v1892, 0.0
      %v2502 = vmax.f32 %v1893, 0.0
      %v2503 = vmax.f32 %v1894, 0.0
      %v2504 = vmax.f32 %v1895, 0.0
      %v2505 = vmax.f32 %v1896, 0.0
      %v2506 = vmax.f32 %v1897, 0.0
      %v2507 = vmax.f32 %v1898, 0.0
      %v2508 = vmax.f32 %v1899, 0.0
      %v2509 = vmax.f32 %v1900, 0.0
      %v2510 = vmax.f32 %v1901, 0.0
      %v2511 = vmax.f32 %v1902, 0.0
      %v2512 = vmax.f32 %v1903, 0.0
      %v2513 = vmax.f32 %v1904, 0.0
      %v2514 = vmax.f32 %v1905, 0.0
      %v2515 = vmax.f32 %v1906, 0.0
      %v2516 = vmax.f32 %v1907, 0.0
      %v2517 = vmax.f32 %v1908, 0.0
      %v2518 = vmax.f32 %v1909, 0.0
      %v2519 = vmax.f32 %v1910, 0.0
      %v2520 = vmax.f32 %v1911, 0.0
      %v2521 = vmax.f32 %v1912, 0.0
      %v2522 = vmax.f32 %v1913, 0.0
      %v2523 = vmax.f32 %v1914, 0.0
      %v2524 = vmax.f32 %v1915, 0.0
      %v2525 = vmax.f32 %v1916, 0.0
      %v2526 = vmax.f32 %v1917, 0.0
      %v2527 = vmax.f32 %v1918, 0.0
      %v2528 = vmax.f32 %v1919, 0.0
      %v2529 = vmax.f32 %v1920, 0.0
      %v2530 = vmax.f32 %v1921, 0.0
      %v2531 = vmax.f32 %v1922, 0.0
      %v2532 = vmax.f32 %v1923, 0.0
      %v2533 = vmax.f32 %v1924, 0.0
      %v2534 = vmax.f32 %v1925, 0.0
      %v2535 = vmax.f32 %v1926, 0.0
      %v2536 = vmax.f32 %v1927, 0.0
      %v2537 = vmax.f32 %v1928, 0.0
      %v2538 = vmax.f32 %v1929, 0.0
      %v2539 = vmax.f32 %v1930, 0.0
      %v2540 = vmax.f32 %v1931, 0.0
      %v2541 = vmax.f32 %v1932, 0.0
      %v2542 = vmax.f32 %v1933, 0.0
      %v2543 = vmax.f32 %v1934, 0.0
      %v2544 = vmax.f32 %v1935, 0.0
      %v2545 = vmax.f32 %v1936, 0.0
      %v2546 = vmax.f32 %v1937, 0.0
      %v2547 = vmax.f32 %v1938, 0.0
      %v2548 = vmax.f32 %v1939, 0.0
      %v2549 = vmax.f32 %v1940, 0.0
      %v2550 = vmax.f32 %v1941, 0.0
      %v2551 = vmax.f32 %v1942, 0.0
      %v2552 = vmax.f32 %v1943, 0.0
      %v2553 = vmax.f32 %v1944, 0.0
      %v2554 = vmax.f32 %v1945, 0.0
      %v2555 = vmax.f32 %v1946, 0.0
      %v2556 = vmax.f32 %v1947, 0.0
      %v2557 = vmax.f32 %v1948, 0.0
      %v2558 = vmax.f32 %v1949, 0.0
      %v2559 = vmax.f32 %v1950, 0.0
      %v2560 = vmax.f32 %v1951, 0.0
      %v2561 = vmax.f32 %v1952, 0.0
      %v2562 = vmax.f32 %v1953, 0.0
      %v2563 = vmax.f32 %v1954, 0.0
      %v2564 = vmax.f32 %v1955, 0.0
      %v2565 = vmax.f32 %v1956, 0.0
      %v2566 = vmax.f32 %v1957, 0.0
      %v2567 = vmax.f32 %v1958, 0.0
      %v2568 = vmax.f32 %v1959, 0.0
      %v2569 = vmax.f32 %v1960, 0.0
      %v2570 = vmax.f32 %v1961, 0.0
      %v2571 = vmax.f32 %v1962, 0.0
      %v2572 = vmax.f32 %v1963, 0.0
      %v2573 = vmax.f32 %v1964, 0.0
      %v2574 = vmax.f32 %v1965, 0.0
      %v2575 = vmax.f32 %v1966, 0.0
      %v2576 = vmax.f32 %v1967, 0.0
      %v2577 = vmax.f32 %v1968, 0.0
      %v2578 = vmax.f32 %v1969, 0.0
      %v2579 = vmax.f32 %v1970, 0.0
      %v2580 = vmax.f32 %v1971, 0.0
      %v2581 = vmax.f32 %v1972, 0.0
      %v2582 = vmax.f32 %v1973, 0.0
      %v2583 = vmax.f32 %v1974, 0.0
      %v2584 = vmax.f32 %v1975, 0.0
      %v2585 = vmax.f32 %v1976, 0.0
      %v2586 = vmax.f32 %v1977, 0.0
      %v2587 = vmax.f32 %v1978, 0.0
      %v2588 = vmax.f32 %v1979, 0.0
      %v2589 = vmax.f32 %v1980, 0.0
      %v2590 = vmax.f32 %v1981, 0.0
      %v2591 = vmax.f32 %v1982, 0.0
      %v2592 = vmax.f32 %v1983, 0.0
      %v2593 = vmax.f32 %v1984, 0.0
      %v2594 = vmax.f32 %v1985, 0.0
      %v2595 = vmax.f32 %v1986, 0.0
      %v2596 = vmax.f32 %v1987, 0.0
      %v2597 = vmax.f32 %v1988, 0.0
      %v2598 = vmax.f32 %v1989, 0.0
      %v2599 = vmax.f32 %v1990, 0.0
      %v2600 = vmax.f32 %v1991, 0.0
      %v2601 = vmax.f32 %v1992, 0.0
      %v2602 = vmax.f32 %v1993, 0.0
      %v2603 = vmax.f32 %v1994, 0.0
      %v2604 = vmax.f32 %v1995, 0.0
      %v2605 = vmax.f32 %v1996, 0.0
      %v2606 = vmax.f32 %v1997, 0.0
      %v2607 = vmax.f32 %v1998, 0.0
      %v2608 = vmax.f32 %v1999, 0.0
      %v2609 = vmax.f32 %v2000, 0.0
      %v2610 = vmax.f32 %v2001, 0.0
      %v2611 = vmax.f32 %v2002, 0.0
      %v2612 = vmax.f32 %v2003, 0.0
      %v2613 = vmax.f32 %v2004, 0.0
      %v2614 = vmax.f32 %v2005, 0.0
      %v2615 = vmax.f32 %v2006, 0.0
      %v2616 = vpack.c.bf16 %v2014, %v2007
      %v2617 = vpack.c.bf16 %v2015, %v2008
      %v2618 = vpack.c.bf16 %v2016, %v2009
      %v2619 = vpack.c.bf16 %v2017, %v2010
      %v2620 = vpack.c.bf16 %v2018, %v2011
      %v2621 = vpack.c.bf16 %v2019, %v2012
      %v2622 = vpack.c.bf16 %v2020, %v2013
      %v2623 = vpack.c.bf16 %v2028, %v2021
      %v2624 = vpack.c.bf16 %v2029, %v2022
      %v2625 = vpack.c.bf16 %v2030, %v2023
      %v2626 = vpack.c.bf16 %v2031, %v2024
      %v2627 = vpack.c.bf16 %v2032, %v2025
      %v2628 = vpack.c.bf16 %v2033, %v2026
      %v2629 = vpack.c.bf16 %v2034, %v2027
      %v2630 = vpack.c.bf16 %v2042, %v2035
      %v2631 = vpack.c.bf16 %v2043, %v2036
      %v2632 = vpack.c.bf16 %v2044, %v2037
      %v2633 = vpack.c.bf16 %v2045, %v2038
      %v2634 = vpack.c.bf16 %v2046, %v2039
      %v2635 = vpack.c.bf16 %v2047, %v2040
      %v2636 = vpack.c.bf16 %v2048, %v2041
      %v2637 = vpack.c.bf16 %v2056, %v2049
      %v2638 = vpack.c.bf16 %v2057, %v2050
      %v2639 = vpack.c.bf16 %v2058, %v2051
      %v2640 = vpack.c.bf16 %v2059, %v2052
      %v2641 = vpack.c.bf16 %v2060, %v2053
      %v2642 = vpack.c.bf16 %v2061, %v2054
      %v2643 = vpack.c.bf16 %v2062, %v2055
      %v2644 = vpack.c.bf16 %v2070, %v2063
      %v2645 = vpack.c.bf16 %v2071, %v2064
      %v2646 = vpack.c.bf16 %v2072, %v2065
      %v2647 = vpack.c.bf16 %v2073, %v2066
      %v2648 = vpack.c.bf16 %v2074, %v2067
      %v2649 = vpack.c.bf16 %v2075, %v2068
      %v2650 = vpack.c.bf16 %v2076, %v2069
      %v2651 = vpack.c.bf16 %v2084, %v2077
      %v2652 = vpack.c.bf16 %v2085, %v2078
      %v2653 = vpack.c.bf16 %v2086, %v2079
      %v2654 = vpack.c.bf16 %v2087, %v2080
      %v2655 = vpack.c.bf16 %v2088, %v2081
      %v2656 = vpack.c.bf16 %v2089, %v2082
      %v2657 = vpack.c.bf16 %v2090, %v2083
      %v2658 = vpack.c.bf16 %v2098, %v2091
      %v2659 = vpack.c.bf16 %v2099, %v2092
      %v2660 = vpack.c.bf16 %v2100, %v2093
      %v2661 = vpack.c.bf16 %v2101, %v2094
      %v2662 = vpack.c.bf16 %v2102, %v2095
      %v2663 = vpack.c.bf16 %v2103, %v2096
      %v2664 = vpack.c.bf16 %v2104, %v2097
      %v2665 = vpack.c.bf16 %v2112, %v2105
      %v2666 = vpack.c.bf16 %v2113, %v2106
      %v2667 = vpack.c.bf16 %v2114, %v2107
      %v2668 = vpack.c.bf16 %v2115, %v2108
      %v2669 = vpack.c.bf16 %v2116, %v2109
      %v2670 = vpack.c.bf16 %v2117, %v2110
      %v2671 = vpack.c.bf16 %v2118, %v2111
      %v2672 = vpack.c.bf16 %v2126, %v2119
      %v2673 = vpack.c.bf16 %v2127, %v2120
      %v2674 = vpack.c.bf16 %v2128, %v2121
      %v2675 = vpack.c.bf16 %v2129, %v2122
      %v2676 = vpack.c.bf16 %v2130, %v2123
      %v2677 = vpack.c.bf16 %v2131, %v2124
      %v2678 = vpack.c.bf16 %v2132, %v2125
      %v2679 = vpack.c.bf16 %v2140, %v2133
      %v2680 = vpack.c.bf16 %v2141, %v2134
      %v2681 = vpack.c.bf16 %v2142, %v2135
      %v2682 = vpack.c.bf16 %v2143, %v2136
      %v2683 = vpack.c.bf16 %v2144, %v2137
      %v2684 = vpack.c.bf16 %v2145, %v2138
      %v2685 = vpack.c.bf16 %v2146, %v2139
      %v2686 = vpack.c.bf16 %v2154, %v2147
      %v2687 = vpack.c.bf16 %v2155, %v2148
      %v2688 = vpack.c.bf16 %v2156, %v2149
      %v2689 = vpack.c.bf16 %v2157, %v2150
      %v2690 = vpack.c.bf16 %v2158, %v2151
      %v2691 = vpack.c.bf16 %v2159, %v2152
      %v2692 = vpack.c.bf16 %v2160, %v2153
      %v2693 = vpack.c.bf16 %v2168, %v2161
      %v2694 = vpack.c.bf16 %v2169, %v2162
      %v2695 = vpack.c.bf16 %v2170, %v2163
      %v2696 = vpack.c.bf16 %v2171, %v2164
      %v2697 = vpack.c.bf16 %v2172, %v2165
      %v2698 = vpack.c.bf16 %v2173, %v2166
      %v2699 = vpack.c.bf16 %v2174, %v2167
      %v2700 = vpack.c.bf16 %v2182, %v2175
      %v2701 = vpack.c.bf16 %v2183, %v2176
      %v2702 = vpack.c.bf16 %v2184, %v2177
      %v2703 = vpack.c.bf16 %v2185, %v2178
      %v2704 = vpack.c.bf16 %v2186, %v2179
      %v2705 = vpack.c.bf16 %v2187, %v2180
      %v2706 = vpack.c.bf16 %v2188, %v2181
      %v2707 = vpack.c.bf16 %v2196, %v2189
      %v2708 = vpack.c.bf16 %v2197, %v2190
      %v2709 = vpack.c.bf16 %v2198, %v2191
      %v2710 = vpack.c.bf16 %v2199, %v2192
      %v2711 = vpack.c.bf16 %v2200, %v2193
      %v2712 = vpack.c.bf16 %v2201, %v2194
      %v2713 = vpack.c.bf16 %v2202, %v2195
      %v2714 = vpack.c.bf16 %v2210, %v2203
      %v2715 = vpack.c.bf16 %v2211, %v2204
      %v2716 = vpack.c.bf16 %v2212, %v2205
      %v2717 = vpack.c.bf16 %v2213, %v2206
      %v2718 = vpack.c.bf16 %v2214, %v2207
      %v2719 = vpack.c.bf16 %v2215, %v2208
      %v2720 = vpack.c.bf16 %v2216, %v2209
      %v2721 = vpack.c.bf16 %v2224, %v2217
      %v2722 = vpack.c.bf16 %v2225, %v2218
      %v2723 = vpack.c.bf16 %v2226, %v2219
      %v2724 = vpack.c.bf16 %v2227, %v2220
      %v2725 = vpack.c.bf16 %v2228, %v2221
      %v2726 = vpack.c.bf16 %v2229, %v2222
      %v2727 = vpack.c.bf16 %v2230, %v2223
      %v2728 = vpack.c.bf16 %v2238, %v2231
      %v2729 = vpack.c.bf16 %v2239, %v2232
      %v2730 = vpack.c.bf16 %v2240, %v2233
      %v2731 = vpack.c.bf16 %v2241, %v2234
      %v2732 = vpack.c.bf16 %v2242, %v2235
      %v2733 = vpack.c.bf16 %v2243, %v2236
      %v2734 = vpack.c.bf16 %v2244, %v2237
      %v2735 = vpack.c.bf16 %v2252, %v2245
      %v2736 = vpack.c.bf16 %v2253, %v2246
      %v2737 = vpack.c.bf16 %v2254, %v2247
      %v2738 = vpack.c.bf16 %v2255, %v2248
      %v2739 = vpack.c.bf16 %v2256, %v2249
      %v2740 = vpack.c.bf16 %v2257, %v2250
      %v2741 = vpack.c.bf16 %v2258, %v2251
      %v2742 = vpack.c.bf16 %v2266, %v2259
      %v2743 = vpack.c.bf16 %v2267, %v2260
      %v2744 = vpack.c.bf16 %v2268, %v2261
      %v2745 = vpack.c.bf16 %v2269, %v2262
      %v2746 = vpack.c.bf16 %v2270, %v2263
      %v2747 = vpack.c.bf16 %v2271, %v2264
      %v2748 = vpack.c.bf16 %v2272, %v2265
      %v2749 = vpack.c.bf16 %v2280, %v2273
      %v2750 = vpack.c.bf16 %v2281, %v2274
      %v2751 = vpack.c.bf16 %v2282, %v2275
      %v2752 = vpack.c.bf16 %v2283, %v2276
      %v2753 = vpack.c.bf16 %v2284, %v2277
      %v2754 = vpack.c.bf16 %v2285, %v2278
      %v2755 = vpack.c.bf16 %v2286, %v2279
      %v2756 = vpack.c.bf16 %v2294, %v2287
      %v2757 = vpack.c.bf16 %v2295, %v2288
      %v2758 = vpack.c.bf16 %v2296, %v2289
      %v2759 = vpack.c.bf16 %v2297, %v2290
      %v2760 = vpack.c.bf16 %v2298, %v2291
      %v2761 = vpack.c.bf16 %v2299, %v2292
      %v2762 = vpack.c.bf16 %v2300, %v2293
      %v2763 = vpack.c.bf16 %v2308, %v2301
      %v2764 = vpack.c.bf16 %v2309, %v2302
      %v2765 = vpack.c.bf16 %v2310, %v2303
      %v2766 = vpack.c.bf16 %v2311, %v2304
      %v2767 = vpack.c.bf16 %v2312, %v2305
      %v2768 = vpack.c.bf16 %v2313, %v2306
      %v2769 = vpack.c.bf16 %v2314, %v2307
      %v2770 = vpack.c.bf16 %v2322, %v2315
      %v2771 = vpack.c.bf16 %v2323, %v2316
      %v2772 = vpack.c.bf16 %v2324, %v2317
      %v2773 = vpack.c.bf16 %v2325, %v2318
      %v2774 = vpack.c.bf16 %v2326, %v2319
      %v2775 = vpack.c.bf16 %v2327, %v2320
      %v2776 = vpack.c.bf16 %v2328, %v2321
      %v2777 = vpack.c.bf16 %v2336, %v2329
      %v2778 = vpack.c.bf16 %v2337, %v2330
      %v2779 = vpack.c.bf16 %v2338, %v2331
      %v2780 = vpack.c.bf16 %v2339, %v2332
      %v2781 = vpack.c.bf16 %v2340, %v2333
      %v2782 = vpack.c.bf16 %v2341, %v2334
      %v2783 = vpack.c.bf16 %v2342, %v2335
      %v2784 = vpack.c.bf16 %v2350, %v2343
      %v2785 = vpack.c.bf16 %v2351, %v2344
      %v2786 = vpack.c.bf16 %v2352, %v2345
      %v2787 = vpack.c.bf16 %v2353, %v2346
      %v2788 = vpack.c.bf16 %v2354, %v2347
      %v2789 = vpack.c.bf16 %v2355, %v2348
      %v2790 = vpack.c.bf16 %v2356, %v2349
      %v2791 = vpack.c.bf16 %v2364, %v2357
      %v2792 = vpack.c.bf16 %v2365, %v2358
      %v2793 = vpack.c.bf16 %v2366, %v2359
      %v2794 = vpack.c.bf16 %v2367, %v2360
      %v2795 = vpack.c.bf16 %v2368, %v2361
      %v2796 = vpack.c.bf16 %v2369, %v2362
      %v2797 = vpack.c.bf16 %v2370, %v2363
      %v2798 = vpack.c.bf16 %v2378, %v2371
      %v2799 = vpack.c.bf16 %v2379, %v2372
      %v2800 = vpack.c.bf16 %v2380, %v2373
      %v2801 = vpack.c.bf16 %v2381, %v2374
      %v2802 = vpack.c.bf16 %v2382, %v2375
      %v2803 = vpack.c.bf16 %v2383, %v2376
      %v2804 = vpack.c.bf16 %v2384, %v2377
      %v2805 = vpack.c.bf16 %v2392, %v2385
      %v2806 = vpack.c.bf16 %v2393, %v2386
      %v2807 = vpack.c.bf16 %v2394, %v2387
      %v2808 = vpack.c.bf16 %v2395, %v2388
      %v2809 = vpack.c.bf16 %v2396, %v2389
      %v2810 = vpack.c.bf16 %v2397, %v2390
      %v2811 = vpack.c.bf16 %v2398, %v2391
      %v2812 = vpack.c.bf16 %v2406, %v2399
      %v2813 = vpack.c.bf16 %v2407, %v2400
      %v2814 = vpack.c.bf16 %v2408, %v2401
      %v2815 = vpack.c.bf16 %v2409, %v2402
      %v2816 = vpack.c.bf16 %v2410, %v2403
      %v2817 = vpack.c.bf16 %v2411, %v2404
      %v2818 = vpack.c.bf16 %v2412, %v2405
      %v2819 = vpack.c.bf16 %v2420, %v2413
      %v2820 = vpack.c.bf16 %v2421, %v2414
      %v2821 = vpack.c.bf16 %v2422, %v2415
      %v2822 = vpack.c.bf16 %v2423, %v2416
      %v2823 = vpack.c.bf16 %v2424, %v2417
      %v2824 = vpack.c.bf16 %v2425, %v2418
      %v2825 = vpack.c.bf16 %v2426, %v2419
      %v2826 = vpack.c.bf16 %v2434, %v2427
      %v2827 = vpack.c.bf16 %v2435, %v2428
      %v2828 = vpack.c.bf16 %v2436, %v2429
      %v2829 = vpack.c.bf16 %v2437, %v2430
      %v2830 = vpack.c.bf16 %v2438, %v2431
      %v2831 = vpack.c.bf16 %v2439, %v2432
      %v2832 = vpack.c.bf16 %v2440, %v2433
      %v2833 = vpack.c.bf16 %v2448, %v2441
      %v2834 = vpack.c.bf16 %v2449, %v2442
      %v2835 = vpack.c.bf16 %v2450, %v2443
      %v2836 = vpack.c.bf16 %v2451, %v2444
      %v2837 = vpack.c.bf16 %v2452, %v2445
      %v2838 = vpack.c.bf16 %v2453, %v2446
      %v2839 = vpack.c.bf16 %v2454, %v2447
      %v2840 = vpack.c.bf16 %v2462, %v2455
      %v2841 = vpack.c.bf16 %v2463, %v2456
      %v2842 = vpack.c.bf16 %v2464, %v2457
      %v2843 = vpack.c.bf16 %v2465, %v2458
      %v2844 = vpack.c.bf16 %v2466, %v2459
      %v2845 = vpack.c.bf16 %v2467, %v2460
      %v2846 = vpack.c.bf16 %v2468, %v2461
      %v2847 = vpack.c.bf16 %v2476, %v2469
      %v2848 = vpack.c.bf16 %v2477, %v2470
      %v2849 = vpack.c.bf16 %v2478, %v2471
      %v2850 = vpack.c.bf16 %v2479, %v2472
      %v2851 = vpack.c.bf16 %v2480, %v2473
      %v2852 = vpack.c.bf16 %v2481, %v2474
      %v2853 = vpack.c.bf16 %v2482, %v2475
      %v2854 = vpack.c.bf16 %v2490, %v2483
      %v2855 = vpack.c.bf16 %v2491, %v2484
      %v2856 = vpack.c.bf16 %v2492, %v2485
      %v2857 = vpack.c.bf16 %v2493, %v2486
      %v2858 = vpack.c.bf16 %v2494, %v2487
      %v2859 = vpack.c.bf16 %v2495, %v2488
      %v2860 = vpack.c.bf16 %v2496, %v2489
      %v2861 = vpack.c.bf16 %v2504, %v2497
      %v2862 = vpack.c.bf16 %v2505, %v2498
      %v2863 = vpack.c.bf16 %v2506, %v2499
      %v2864 = vpack.c.bf16 %v2507, %v2500
      %v2865 = vpack.c.bf16 %v2508, %v2501
      %v2866 = vpack.c.bf16 %v2509, %v2502
      %v2867 = vpack.c.bf16 %v2510, %v2503
      %v2868 = vpack.c.bf16 %v2518, %v2511
      %v2869 = vpack.c.bf16 %v2519, %v2512
      %v2870 = vpack.c.bf16 %v2520, %v2513
      %v2871 = vpack.c.bf16 %v2521, %v2514
      %v2872 = vpack.c.bf16 %v2522, %v2515
      %v2873 = vpack.c.bf16 %v2523, %v2516
      %v2874 = vpack.c.bf16 %v2524, %v2517
      %v2875 = vpack.c.bf16 %v2532, %v2525
      %v2876 = vpack.c.bf16 %v2533, %v2526
      %v2877 = vpack.c.bf16 %v2534, %v2527
      %v2878 = vpack.c.bf16 %v2535, %v2528
      %v2879 = vpack.c.bf16 %v2536, %v2529
      %v2880 = vpack.c.bf16 %v2537, %v2530
      %v2881 = vpack.c.bf16 %v2538, %v2531
      %v2882 = vpack.c.bf16 %v2546, %v2539
      %v2883 = vpack.c.bf16 %v2547, %v2540
      %v2884 = vpack.c.bf16 %v2548, %v2541
      %v2885 = vpack.c.bf16 %v2549, %v2542
      %v2886 = vpack.c.bf16 %v2550, %v2543
      %v2887 = vpack.c.bf16 %v2551, %v2544
      %v2888 = vpack.c.bf16 %v2552, %v2545
      %v2889 = vpack.c.bf16 %v2560, %v2553
      %v2890 = vpack.c.bf16 %v2561, %v2554
      %v2891 = vpack.c.bf16 %v2562, %v2555
      %v2892 = vpack.c.bf16 %v2563, %v2556
      %v2893 = vpack.c.bf16 %v2564, %v2557
      %v2894 = vpack.c.bf16 %v2565, %v2558
      %v2895 = vpack.c.bf16 %v2566, %v2559
      %v2896 = vpack.c.bf16 %v2574, %v2567
      %v2897 = vpack.c.bf16 %v2575, %v2568
      %v2898 = vpack.c.bf16 %v2576, %v2569
      %v2899 = vpack.c.bf16 %v2577, %v2570
      %v2900 = vpack.c.bf16 %v2578, %v2571
      %v2901 = vpack.c.bf16 %v2579, %v2572
      %v2902 = vpack.c.bf16 %v2580, %v2573
      %v2903 = vpack.c.bf16 %v2588, %v2581
      %v2904 = vpack.c.bf16 %v2589, %v2582
      %v2905 = vpack.c.bf16 %v2590, %v2583
      %v2906 = vpack.c.bf16 %v2591, %v2584
      %v2907 = vpack.c.bf16 %v2592, %v2585
      %v2908 = vpack.c.bf16 %v2593, %v2586
      %v2909 = vpack.c.bf16 %v2594, %v2587
      %v2910 = vpack.c.bf16 %v2602, %v2595
      %v2911 = vpack.c.bf16 %v2603, %v2596
      %v2912 = vpack.c.bf16 %v2604, %v2597
      %v2913 = vpack.c.bf16 %v2605, %v2598
      %v2914 = vpack.c.bf16 %v2606, %v2599
      %v2915 = vpack.c.bf16 %v2607, %v2600
      %v2916 = vpack.c.bf16 %v2608, %v2601
      %v2917 = vpack.c.bf16 %v2609, %v2609
      %v2918 = vpack.c.bf16 %v2610, %v2610
      %v2919 = vpack.c.bf16 %v2611, %v2611
      %v2920 = vpack.c.bf16 %v2612, %v2612
      %v2921 = vpack.c.bf16 %v2613, %v2613
      %v2922 = vpack.c.bf16 %v2614, %v2614
      %v2923 = vpack.c.bf16 %v2615, %v2615
      %v2924 = vld [vmem:[%s170] sm:$0xff]
      %v2925 = vld [vmem:[%s170 + $0x8] sm:$0xff]
      %v2926 = vld [vmem:[%s170 + $0x10] sm:$0xff]
      %v2927 = vld [vmem:[%s170 + $0x18] sm:$0xff]
      %v2928 = vld [vmem:[%s170 + $0x20] sm:$0xff]
      %v2929 = vld [vmem:[%s170 + $0x28] sm:$0xff]
      %v2930 = vld [vmem:[%s170 + $0x30] sm:$0xff]
      %v2931 = vld [vmem:[%s170 + $0x38] sm:$0xff]
      %v2932 = vld [vmem:[%s170 + $0x40] sm:$0xff]
      %v2933 = vld [vmem:[%s170 + $0x48] sm:$0xff]
      %v2934 = vld [vmem:[%s170 + $0x50] sm:$0xff]
      %v2935 = vld [vmem:[%s170 + $0x58] sm:$0xff]
      %v2936 = vld [vmem:[%s170 + $0x60] sm:$0xff]
      %v2937 = vld [vmem:[%s170 + $0x68] sm:$0xff]
      %v2938 = vld [vmem:[%s170 + $0x70] sm:$0xff]
      %v2939 = vld [vmem:[%s170 + $0x78] sm:$0xff]
      %v2940 = vld [vmem:[%s170 + $0x80] sm:$0xff]
      %v2941 = vld [vmem:[%s170 + $0x88] sm:$0xff]
      %v2942 = vld [vmem:[%s170 + $0x90] sm:$0xff]
      %v2943 = vld [vmem:[%s170 + $0x98] sm:$0xff]
      %v2944 = vld [vmem:[%s170 + $0xa0] sm:$0xff]
      %v2945 = vld [vmem:[%s170 + $0xa8] sm:$0xff]
      %v2946 = vld [vmem:[%s170 + $0xb0] sm:$0xff]
      %v2947 = vld [vmem:[%s170 + $0xb8] sm:$0xff]
      %v2948 = vld [vmem:[%s170 + $0xc0] sm:$0xff]
      %v2949 = vld [vmem:[%s170 + $0xc8] sm:$0xff]
      %v2950 = vld [vmem:[%s170 + $0xd0] sm:$0xff]
      %v2951 = vld [vmem:[%s170 + $0xd8] sm:$0xff]
      %v2952 = vld [vmem:[%s170 + $0xe0] sm:$0xff]
      %v2953 = vld [vmem:[%s170 + $0xe8] sm:$0xff]
      %v2954 = vld [vmem:[%s170 + $0xf0] sm:$0xff]
      %v2955 = vld [vmem:[%s170 + $0xf8] sm:$0xff]
      %v2956 = vld [vmem:[%s170 + $0x100] sm:$0xff]
      %v2957 = vld [vmem:[%s170 + $0x108] sm:$0xff]
      %v2958 = vld [vmem:[%s170 + $0x110] sm:$0xff]
      %v2959 = vld [vmem:[%s170 + $0x118] sm:$0xff]
      %v2960 = vld [vmem:[%s170 + $0x120] sm:$0xff]
      %v2961 = vld [vmem:[%s170 + $0x128] sm:$0xff]
      %v2962 = vld [vmem:[%s170 + $0x130] sm:$0xff]
      %v2963 = vld [vmem:[%s170 + $0x138] sm:$0xff]
      %v2964 = vld [vmem:[%s170 + $0x140] sm:$0xff]
      %v2965 = vld [vmem:[%s170 + $0x148] sm:$0xff]
      %v2966 = vld [vmem:[%s170 + $0x150] sm:$0xff]
      %v2967 = vld [vmem:[%s170 + $0x158] sm:$0xff]
      %v2968 = vld [vmem:[%s170 + $0x160] sm:$0xff]
      %v2969 = vld [vmem:[%s170 + $0x168] sm:$0xff]
      %v2970 = vld [vmem:[%s170 + $0x170] sm:$0xff]
      %v2971 = vld [vmem:[%s170 + $0x178] sm:$0xff]
      %v2972 = vld [vmem:[%s170 + $0x180] sm:$0xff]
      %v2973 = vld [vmem:[%s170 + $0x188] sm:$0xff]
      %v2974 = vld [vmem:[%s170 + $0x190] sm:$0xff]
      %v2975 = vld [vmem:[%s170 + $0x198] sm:$0xff]
      %v2976 = vld [vmem:[%s170 + $0x1a0] sm:$0xff]
      %v2977 = vld [vmem:[%s170 + $0x1a8] sm:$0xff]
      %v2978 = vld [vmem:[%s170 + $0x1b0] sm:$0xff]
      %v2979 = vld [vmem:[%s170 + $0x1b8] sm:$0xff]
      %v2980 = vld [vmem:[%s170 + $0x1c0] sm:$0xff]
      %v2981 = vld [vmem:[%s170 + $0x1c8] sm:$0xff]
      %v2982 = vld [vmem:[%s170 + $0x1d0] sm:$0xff]
      %v2983 = vld [vmem:[%s170 + $0x1d8] sm:$0xff]
      %v2984 = vld [vmem:[%s170 + $0x1e0] sm:$0xff]
      %v2985 = vld [vmem:[%s170 + $0x1e8] sm:$0xff]
      %v2986 = vld [vmem:[%s170 + $0x1f0] sm:$0xff]
      %v2987 = vld [vmem:[%s170 + $0x1f8] sm:$0xff]
      %v2988 = vld [vmem:[%s170 + $0x200] sm:$0xff]
      %v2989 = vld [vmem:[%s170 + $0x208] sm:$0xff]
      %v2990 = vld [vmem:[%s170 + $0x210] sm:$0xff]
      %v2991 = vld [vmem:[%s170 + $0x218] sm:$0xff]
      %v2992 = vld [vmem:[%s170 + $0x220] sm:$0xff]
      %v2993 = vld [vmem:[%s170 + $0x228] sm:$0xff]
      %v2994 = vld [vmem:[%s170 + $0x230] sm:$0xff]
      %v2995 = vld [vmem:[%s170 + $0x238] sm:$0xff]
      %v2996 = vld [vmem:[%s170 + $0x240] sm:$0xff]
      %v2997 = vld [vmem:[%s170 + $0x248] sm:$0xff]
      %v2998 = vld [vmem:[%s170 + $0x250] sm:$0xff]
      %v2999 = vld [vmem:[%s170 + $0x258] sm:$0xff]
      %v3000 = vld [vmem:[%s170 + $0x260] sm:$0xff]
      %v3001 = vld [vmem:[%s170 + $0x268] sm:$0xff]
      %v3002 = vld [vmem:[%s170 + $0x270] sm:$0xff]
      %v3003 = vld [vmem:[%s170 + $0x278] sm:$0xff]
      %v3004 = vld [vmem:[%s170 + $0x280] sm:$0xff]
      %v3005 = vld [vmem:[%s170 + $0x288] sm:$0xff]
      %v3006 = vld [vmem:[%s170 + $0x290] sm:$0xff]
      %v3007 = vld [vmem:[%s170 + $0x298] sm:$0xff]
      %v3008 = vld [vmem:[%s170 + $0x2a0] sm:$0xff]
      %v3009 = vld [vmem:[%s170 + $0x2a8] sm:$0xff]
      %v3010 = vld [vmem:[%s170 + $0x2b0] sm:$0xff]
      %v3011 = vld [vmem:[%s170 + $0x2b8] sm:$0xff]
      %v3012 = vld [vmem:[%s170 + $0x2c0] sm:$0xff]
      %v3013 = vld [vmem:[%s170 + $0x2c8] sm:$0xff]
      %v3014 = vld [vmem:[%s170 + $0x2d0] sm:$0xff]
      %v3015 = vld [vmem:[%s170 + $0x2d8] sm:$0xff]
      %v3016 = vld [vmem:[%s170 + $0x2e0] sm:$0xff]
      %v3017 = vld [vmem:[%s170 + $0x2e8] sm:$0xff]
      %v3018 = vld [vmem:[%s170 + $0x2f0] sm:$0xff]
      %v3019 = vld [vmem:[%s170 + $0x2f8] sm:$0xff]
      %v3020 = vld [vmem:[%s170 + $0x300] sm:$0xff]
      %v3021 = vld [vmem:[%s170 + $0x308] sm:$0xff]
      %v3022 = vld [vmem:[%s170 + $0x310] sm:$0xff]
      %v3023 = vld [vmem:[%s170 + $0x318] sm:$0xff]
      %v3024 = vld [vmem:[%s170 + $0x320] sm:$0xff]
      %v3025 = vld [vmem:[%s170 + $0x328] sm:$0xff]
      %v3026 = vld [vmem:[%s170 + $0x330] sm:$0xff]
      %v3027 = vld [vmem:[%s170 + $0x338] sm:$0xff]
      %v3028 = vld [vmem:[%s170 + $0x340] sm:$0xff]
      %v3029 = vld [vmem:[%s170 + $0x348] sm:$0xff]
      %v3030 = vld [vmem:[%s170 + $0x350] sm:$0xff]
      %v3031 = vld [vmem:[%s170 + $0x358] sm:$0xff]
      %v3032 = vld [vmem:[%s170 + $0x360] sm:$0xff]
      %v3033 = vld [vmem:[%s170 + $0x368] sm:$0xff]
      %v3034 = vld [vmem:[%s170 + $0x370] sm:$0xff]
      %v3035 = vld [vmem:[%s170 + $0x378] sm:$0xff]
      %v3036 = vld [vmem:[%s170 + $0x380] sm:$0xff]
      %v3037 = vld [vmem:[%s170 + $0x388] sm:$0xff]
      %v3038 = vld [vmem:[%s170 + $0x390] sm:$0xff]
      %v3039 = vld [vmem:[%s170 + $0x398] sm:$0xff]
      %v3040 = vld [vmem:[%s170 + $0x3a0] sm:$0xff]
      %v3041 = vld [vmem:[%s170 + $0x3a8] sm:$0xff]
      %v3042 = vld [vmem:[%s170 + $0x3b0] sm:$0xff]
      %v3043 = vld [vmem:[%s170 + $0x3b8] sm:$0xff]
      %v3044 = vld [vmem:[%s170 + $0x3c0] sm:$0xff]
      %v3045 = vld [vmem:[%s170 + $0x3c8] sm:$0xff]
      %v3046 = vld [vmem:[%s170 + $0x3d0] sm:$0xff]
      %v3047 = vld [vmem:[%s170 + $0x3d8] sm:$0xff]
      %v3048 = vld [vmem:[%s170 + $0x3e0] sm:$0xff]
      %v3049 = vld [vmem:[%s170 + $0x3e8] sm:$0xff]
      %v3050 = vld [vmem:[%s170 + $0x3f0] sm:$0xff]
      %v3051 = vld [vmem:[%s170 + $0x3f8] sm:$0xff]
      %v3052 = vld [vmem:[%s170 + $0x400] sm:$0xff]
      %v3053 = vld [vmem:[%s170 + $0x408] sm:$0xff]
      %v3054 = vld [vmem:[%s170 + $0x410] sm:$0xff]
      %v3055 = vld [vmem:[%s170 + $0x418] sm:$0xff]
      %v3056 = vld [vmem:[%s170 + $0x420] sm:$0xff]
      %v3057 = vld [vmem:[%s170 + $0x428] sm:$0xff]
      %v3058 = vld [vmem:[%s170 + $0x430] sm:$0xff]
      %v3059 = vld [vmem:[%s170 + $0x438] sm:$0xff]
      %v3060 = vld [vmem:[%s170 + $0x440] sm:$0xff]
      %v3061 = vld [vmem:[%s170 + $0x448] sm:$0xff]
      %v3062 = vld [vmem:[%s170 + $0x450] sm:$0xff]
      %v3063 = vld [vmem:[%s170 + $0x458] sm:$0xff]
      %v3064 = vld [vmem:[%s170 + $0x460] sm:$0xff]
      %v3065 = vld [vmem:[%s170 + $0x468] sm:$0xff]
      %v3066 = vld [vmem:[%s170 + $0x470] sm:$0xff]
      %v3067 = vld [vmem:[%s170 + $0x478] sm:$0xff]
      %v3068 = vld [vmem:[%s170 + $0x480] sm:$0xff]
      %v3069 = vld [vmem:[%s170 + $0x488] sm:$0xff]
      %v3070 = vld [vmem:[%s170 + $0x490] sm:$0xff]
      %v3071 = vld [vmem:[%s170 + $0x498] sm:$0xff]
      %v3072 = vld [vmem:[%s170 + $0x4a0] sm:$0xff]
      %v3073 = vld [vmem:[%s170 + $0x4a8] sm:$0xff]
      %v3074 = vld [vmem:[%s170 + $0x4b0] sm:$0xff]
      %v3075 = vld [vmem:[%s170 + $0x4b8] sm:$0xff]
      %v3076 = vld [vmem:[%s170 + $0x4c0] sm:$0xff]
      %v3077 = vld [vmem:[%s170 + $0x4c8] sm:$0xff]
      %v3078 = vld [vmem:[%s170 + $0x4d0] sm:$0xff]
      %v3079 = vld [vmem:[%s170 + $0x4d8] sm:$0xff]
      %v3080 = vld [vmem:[%s170 + $0x4e0] sm:$0xff]
      %v3081 = vld [vmem:[%s170 + $0x4e8] sm:$0xff]
      %v3082 = vld [vmem:[%s170 + $0x4f0] sm:$0xff]
      %v3083 = vld [vmem:[%s170 + $0x4f8] sm:$0xff]
      %v3084 = vld [vmem:[%s170 + $0x500] sm:$0xff]
      %v3085 = vld [vmem:[%s170 + $0x508] sm:$0xff]
      %v3086 = vld [vmem:[%s170 + $0x510] sm:$0xff]
      %v3087 = vld [vmem:[%s170 + $0x518] sm:$0xff]
      %v3088 = vld [vmem:[%s170 + $0x520] sm:$0xff]
      %v3089 = vld [vmem:[%s170 + $0x528] sm:$0xff]
      %v3090 = vld [vmem:[%s170 + $0x530] sm:$0xff]
      %v3091 = vld [vmem:[%s170 + $0x538] sm:$0xff]
      %v3092 = vld [vmem:[%s170 + $0x540] sm:$0xff]
      %v3093 = vld [vmem:[%s170 + $0x548] sm:$0xff]
      %v3094 = vld [vmem:[%s170 + $0x550] sm:$0xff]
      %v3095 = vld [vmem:[%s170 + $0x558] sm:$0xff]
      %v3096 = vld [vmem:[%s170 + $0x560] sm:$0xff]
      %v3097 = vld [vmem:[%s170 + $0x568] sm:$0xff]
      %v3098 = vpack.c.bf16 %v2930, %v2924
      %v3099 = vpack.c.bf16 %v2931, %v2925
      %v3100 = vpack.c.bf16 %v2932, %v2926
      %v3101 = vpack.c.bf16 %v2933, %v2927
      %v3102 = vpack.c.bf16 %v2934, %v2928
      %v3103 = vpack.c.bf16 %v2935, %v2929
      %v3104 = vpack.c.bf16 %v2942, %v2936
      %v3105 = vpack.c.bf16 %v2943, %v2937
      %v3106 = vpack.c.bf16 %v2944, %v2938
      %v3107 = vpack.c.bf16 %v2945, %v2939
      %v3108 = vpack.c.bf16 %v2946, %v2940
      %v3109 = vpack.c.bf16 %v2947, %v2941
      %v3110 = vpack.c.bf16 %v2954, %v2948
      %v3111 = vpack.c.bf16 %v2955, %v2949
      %v3112 = vpack.c.bf16 %v2956, %v2950
      %v3113 = vpack.c.bf16 %v2957, %v2951
      %v3114 = vpack.c.bf16 %v2958, %v2952
      %v3115 = vpack.c.bf16 %v2959, %v2953
      %v3116 = vpack.c.bf16 %v2966, %v2960
      %v3117 = vpack.c.bf16 %v2967, %v2961
      %v3118 = vpack.c.bf16 %v2968, %v2962
      %v3119 = vpack.c.bf16 %v2969, %v2963
      %v3120 = vpack.c.bf16 %v2970, %v2964
      %v3121 = vpack.c.bf16 %v2971, %v2965
      %v3122 = vpack.c.bf16 %v2978, %v2972
      %v3123 = vpack.c.bf16 %v2979, %v2973
      %v3124 = vpack.c.bf16 %v2980, %v2974
      %v3125 = vpack.c.bf16 %v2981, %v2975
      %v3126 = vpack.c.bf16 %v2982, %v2976
      %v3127 = vpack.c.bf16 %v2983, %v2977
      %v3128 = vpack.c.bf16 %v2990, %v2984
      %v3129 = vpack.c.bf16 %v2991, %v2985
      %v3130 = vpack.c.bf16 %v2992, %v2986
      %v3131 = vpack.c.bf16 %v2993, %v2987
      %v3132 = vpack.c.bf16 %v2994, %v2988
      %v3133 = vpack.c.bf16 %v2995, %v2989
      %v3134 = vpack.c.bf16 %v3002, %v2996
      %v3135 = vpack.c.bf16 %v3003, %v2997
      %v3136 = vpack.c.bf16 %v3004, %v2998
      %v3137 = vpack.c.bf16 %v3005, %v2999
      %v3138 = vpack.c.bf16 %v3006, %v3000
      %v3139 = vpack.c.bf16 %v3007, %v3001
      %v3140 = vpack.c.bf16 %v3014, %v3008
      %v3141 = vpack.c.bf16 %v3015, %v3009
      %v3142 = vpack.c.bf16 %v3016, %v3010
      %v3143 = vpack.c.bf16 %v3017, %v3011
      %v3144 = vpack.c.bf16 %v3018, %v3012
      %v3145 = vpack.c.bf16 %v3019, %v3013
      %v3146 = vpack.c.bf16 %v3026, %v3020
      %v3147 = vpack.c.bf16 %v3027, %v3021
      %v3148 = vpack.c.bf16 %v3028, %v3022
      %v3149 = vpack.c.bf16 %v3029, %v3023
      %v3150 = vpack.c.bf16 %v3030, %v3024
      %v3151 = vpack.c.bf16 %v3031, %v3025
      %v3152 = vpack.c.bf16 %v3038, %v3032
      %v3153 = vpack.c.bf16 %v3039, %v3033
      %v3154 = vpack.c.bf16 %v3040, %v3034
      %v3155 = vpack.c.bf16 %v3041, %v3035
      %v3156 = vpack.c.bf16 %v3042, %v3036
      %v3157 = vpack.c.bf16 %v3043, %v3037
      %v3158 = vpack.c.bf16 %v3050, %v3044
      %v3159 = vpack.c.bf16 %v3051, %v3045
      %v3160 = vpack.c.bf16 %v3052, %v3046
      %v3161 = vpack.c.bf16 %v3053, %v3047
      %v3162 = vpack.c.bf16 %v3054, %v3048
      %v3163 = vpack.c.bf16 %v3055, %v3049
      %v3164 = vpack.c.bf16 %v3062, %v3056
      %v3165 = vpack.c.bf16 %v3063, %v3057
      %v3166 = vpack.c.bf16 %v3064, %v3058
      %v3167 = vpack.c.bf16 %v3065, %v3059
      %v3168 = vpack.c.bf16 %v3066, %v3060
      %v3169 = vpack.c.bf16 %v3067, %v3061
      %v3170 = vpack.c.bf16 %v3074, %v3068
      %v3171 = vpack.c.bf16 %v3075, %v3069
      %v3172 = vpack.c.bf16 %v3076, %v3070
      %v3173 = vpack.c.bf16 %v3077, %v3071
      %v3174 = vpack.c.bf16 %v3078, %v3072
      %v3175 = vpack.c.bf16 %v3079, %v3073
      %v3176 = vpack.c.bf16 %v3086, %v3080
      %v3177 = vpack.c.bf16 %v3087, %v3081
      %v3178 = vpack.c.bf16 %v3088, %v3082
      %v3179 = vpack.c.bf16 %v3089, %v3083
      %v3180 = vpack.c.bf16 %v3090, %v3084
      %v3181 = vpack.c.bf16 %v3091, %v3085
      %v3182 = vpack.c.bf16 %v3092, %v3092
      %v3183 = vpack.c.bf16 %v3093, %v3093
      %v3184 = vpack.c.bf16 %v3094, %v3094
      %v3185 = vpack.c.bf16 %v3095, %v3095
      %v3186 = vpack.c.bf16 %v3096, %v3096
      %v3187 = vpack.c.bf16 %v3097, %v3097
      %vm3188 = vcmask 457728
      %v3190 = vsel %vm3188, %v3103, 0
      %v3193 = vsel %vm3188, %v3109, 0
      %v3196 = vsel %vm3188, %v3115, 0
      %v3199 = vsel %vm3188, %v3121, 0
      %v3202 = vsel %vm3188, %v3127, 0
      %v3205 = vsel %vm3188, %v3133, 0
      %v3208 = vsel %vm3188, %v3139, 0
      %v3211 = vsel %vm3188, %v3145, 0
      %v3214 = vsel %vm3188, %v3151, 0
      %v3217 = vsel %vm3188, %v3157, 0
      %v3220 = vsel %vm3188, %v3163, 0
      %v3223 = vsel %vm3188, %v3169, 0
      %v3226 = vsel %vm3188, %v3175, 0
      %v3229 = vsel %vm3188, %v3181, 0
      %v3232 = vsel %vm3188, %v3187, 0
      %vm3234 = vcmask 1043456
      %v3236 = vsel %vm3234, %v2917, 0
      %v3239 = vsel %vm3234, %v2918, 0
      %v3242 = vsel %vm3234, %v2919, 0
      %v3245 = vsel %vm3234, %v2920, 0
      %v3248 = vsel %vm3234, %v2921, 0
      %v3251 = vsel %vm3234, %v2922, 0
      %v3254 = vsel %vm3234, %v2923, 0
      %3256 = vmatprep.subr.bf16.mxu0 %v2617
      %3257 = vmatpush1.bf16.msra.mxu0 %v2616
      %3258 = vmatprep.subr.bf16.mxu0 %v2624
      %3259 = vmatpush1.bf16.msra.mxu0 %v2623
      %3260 = vmatprep.subr.bf16.mxu0 %v2631
      %3261 = vmatpush1.bf16.msra.mxu0 %v2630
      %3262 = vmatprep.subr.bf16.mxu0 %v2638
      %3263 = vmatpush1.bf16.msra.mxu0 %v2637
      %3264 = vmatprep.subr.bf16.mxu0 %v2645
      %3265 = vmatpush1.bf16.msra.mxu0 %v2644
      %3266 = vmatprep.subr.bf16.mxu0 %v2652
      %3267 = vmatpush1.bf16.msra.mxu0 %v2651
      %3268 = vmatprep.subr.bf16.mxu0 %v2659
      %3269 = vmatpush1.bf16.msra.mxu0 %v2658
      %3270 = vmatprep.subr.bf16.mxu0 %v2666
      %3271 = vmatpush1.bf16.msra.mxu0 %v2665
      %3272 = vmatprep.subr.bf16.mxu0 %v2673
      %3273 = vmatpush1.bf16.msra.mxu0 %v2672
      %3274 = vmatprep.subr.bf16.mxu0 %v2680
      %3275 = vmatpush1.bf16.msra.mxu0 %v2679
      %3276 = vmatprep.subr.bf16.mxu0 %v2687
      %3277 = vmatpush1.bf16.msra.mxu0 %v2686
      %3278 = vmatprep.subr.bf16.mxu0 %v2694
      %3279 = vmatpush1.bf16.msra.mxu0 %v2693
      %3280 = vmatprep.subr.bf16.mxu0 %v2701
      %3281 = vmatpush1.bf16.msra.mxu0 %v2700
      %3282 = vmatprep.subr.bf16.mxu0 %v2708
      %3283 = vmatpush1.bf16.msra.mxu0 %v2707
      %3284 = vmatprep.subr.bf16.mxu0 %v2715
      %3285 = vmatpush1.bf16.msra.mxu0 %v2714
      %3286 = vmatprep.subr.bf16.mxu0 %v2722
      %3287 = vmatpush1.bf16.msra.mxu0 %v2721
      %3288 = vmatprep.mubr.bf16.mxu0 %v3099
      %3289 = vmatmul.mubr.bf16.gmra.mrb[0].mxu0 %v3098
      %v3290 = vpop.f32.mrb[0].mxu0
      %v3291 = vadd.f32 0.0, %v3290
      %v3292 = vpop.f32.mrb[0].mxu0
      %v3293 = vadd.f32 0.0, %v3292
      %v3294 = vpop.f32.mrb[0].mxu0
      %v3295 = vadd.f32 0.0, %v3294
      %v3296 = vpop.f32.mrb[0].mxu0
      %v3297 = vadd.f32 0.0, %v3296
      %3298 = vmatprep.mubr.bf16.mxu0 %v3105
      %3299 = vmatmul.mubr.bf16.gmra.mrb[0].mxu0 %v3104
      %v3300 = vpop.f32.mrb[0].mxu0
      %v3301 = vadd.f32 0.0, %v3300
      %v3302 = vpop.f32.mrb[0].mxu0
      %v3303 = vadd.f32 0.0, %v3302
      %v3304 = vpop.f32.mrb[0].mxu0
      %v3305 = vadd.f32 0.0, %v3304
      %v3306 = vpop.f32.mrb[0].mxu0
      %v3307 = vadd.f32 0.0, %v3306
      %3308 = vmatprep.mubr.bf16.mxu0 %v3111
      %3309 = vmatmul.mubr.bf16.gmra.mrb[0].mxu0 %v3110
      %v3310 = vpop.f32.mrb[0].mxu0
      %v3311 = vadd.f32 0.0, %v3310
      %v3312 = vpop.f32.mrb[0].mxu0
      %v3313 = vadd.f32 0.0, %v3312
      %v3314 = vpop.f32.mrb[0].mxu0
      %v3315 = vadd.f32 0.0, %v3314
      %v3316 = vpop.f32.mrb[0].mxu0
      %v3317 = vadd.f32 0.0, %v3316
      %3318 = vmatprep.mubr.bf16.mxu0 %v3117
      %3319 = vmatmul.mubr.bf16.gmra.mrb[0].mxu0 %v3116
      %v3320 = vpop.f32.mrb[0].mxu0
      %v3321 = vadd.f32 0.0, %v3320
      %v3322 = vpop.f32.mrb[0].mxu0
      %v3323 = vadd.f32 0.0, %v3322
      %v3324 = vpop.f32.mrb[0].mxu0
      %v3325 = vadd.f32 0.0, %v3324
      %v3326 = vpop.f32.mrb[0].mxu0
      %v3327 = vadd.f32 0.0, %v3326
      %3328 = vmatprep.mubr.bf16.mxu0 %v3123
      %3329 = vmatmul.mubr.bf16.gmra.mrb[0].mxu0 %v3122
      %v3330 = vpop.f32.mrb[0].mxu0
      %v3331 = vadd.f32 0.0, %v3330
      %v3332 = vpop.f32.mrb[0].mxu0
      %v3333 = vadd.f32 0.0, %v3332
      %v3334 = vpop.f32.mrb[0].mxu0
      %v3335 = vadd.f32 0.0, %v3334
      %v3336 = vpop.f32.mrb[0].mxu0
      %v3337 = vadd.f32 0.0, %v3336
      %3338 = vmatprep.mubr.bf16.mxu0 %v3129
      %3339 = vmatmul.mubr.bf16.gmra.mrb[0].mxu0 %v3128
      %v3340 = vpop.f32.mrb[0].mxu0
      %v3341 = vadd.f32 0.0, %v3340
      %v3342 = vpop.f32.mrb[0].mxu0
      %v3343 = vadd.f32 0.0, %v3342
      %v3344 = vpop.f32.mrb[0].mxu0
      %v3345 = vadd.f32 0.0, %v3344
      %v3346 = vpop.f32.mrb[0].mxu0
      %v3347 = vadd.f32 0.0, %v3346
      %3348 = vmatprep.mubr.bf16.mxu0 %v3135
      %3349 = vmatmul.mubr.bf16.gmra.mrb[0].mxu0 %v3134
      %v3350 = vpop.f32.mrb[0].mxu0
      %v3351 = vadd.f32 0.0, %v3350
      %v3352 = vpop.f32.mrb[0].mxu0
      %v3353 = vadd.f32 0.0, %v3352
      %v3354 = vpop.f32.mrb[0].mxu0
      %v3355 = vadd.f32 0.0, %v3354
      %v3356 = vpop.f32.mrb[0].mxu0
      %v3357 = vadd.f32 0.0, %v3356
      %3358 = vmatprep.mubr.bf16.mxu0 %v3141
      %3359 = vmatmul.mubr.bf16.gmra.mrb[0].mxu0 %v3140
      %v3360 = vpop.f32.mrb[0].mxu0
      %v3361 = vadd.f32 0.0, %v3360
      %v3362 = vpop.f32.mrb[0].mxu0
      %v3363 = vadd.f32 0.0, %v3362
      %v3364 = vpop.f32.mrb[0].mxu0
      %v3365 = vadd.f32 0.0, %v3364
      %v3366 = vpop.f32.mrb[0].mxu0
      %v3367 = vadd.f32 0.0, %v3366
      %3368 = vmatprep.mubr.bf16.mxu0 %v3147
      %3369 = vmatmul.mubr.bf16.gmra.mrb[0].mxu0 %v3146
      %v3370 = vpop.f32.mrb[0].mxu0
      %v3371 = vadd.f32 0.0, %v3370
      %v3372 = vpop.f32.mrb[0].mxu0
      %v3373 = vadd.f32 0.0, %v3372
      %v3374 = vpop.f32.mrb[0].mxu0
      %v3375 = vadd.f32 0.0, %v3374
      %v3376 = vpop.f32.mrb[0].mxu0
      %v3377 = vadd.f32 0.0, %v3376
      %3378 = vmatprep.mubr.bf16.mxu0 %v3153
      %3379 = vmatmul.mubr.bf16.gmra.mrb[0].mxu0 %v3152
      %v3380 = vpop.f32.mrb[0].mxu0
      %v3381 = vadd.f32 0.0, %v3380
      %v3382 = vpop.f32.mrb[0].mxu0
      %v3383 = vadd.f32 0.0, %v3382
      %v3384 = vpop.f32.mrb[0].mxu0
      %v3385 = vadd.f32 0.0, %v3384
      %v3386 = vpop.f32.mrb[0].mxu0
      %v3387 = vadd.f32 0.0, %v3386
      %3388 = vmatprep.mubr.bf16.mxu0 %v3159
      %3389 = vmatmul.mubr.bf16.gmra.mrb[0].mxu0 %v3158
      %v3390 = vpop.f32.mrb[0].mxu0
      %v3391 = vadd.f32 0.0, %v3390
      %v3392 = vpop.f32.mrb[0].mxu0
      %v3393 = vadd.f32 0.0, %v3392
      %v3394 = vpop.f32.mrb[0].mxu0
      %v3395 = vadd.f32 0.0, %v3394
      %v3396 = vpop.f32.mrb[0].mxu0
      %v3397 = vadd.f32 0.0, %v3396
      %3398 = vmatprep.mubr.bf16.mxu0 %v3165
      %3399 = vmatmul.mubr.bf16.gmra.mrb[0].mxu0 %v3164
      %v3400 = vpop.f32.mrb[0].mxu0
      %v3401 = vadd.f32 0.0, %v3400
      %v3402 = vpop.f32.mrb[0].mxu0
      %v3403 = vadd.f32 0.0, %v3402
      %v3404 = vpop.f32.mrb[0].mxu0
      %v3405 = vadd.f32 0.0, %v3404
      %v3406 = vpop.f32.mrb[0].mxu0
      %v3407 = vadd.f32 0.0, %v3406
      %3408 = vmatprep.mubr.bf16.mxu0 %v3171
      %3409 = vmatmul.mubr.bf16.gmra.mrb[0].mxu0 %v3170
      %v3410 = vpop.f32.mrb[0].mxu0
      %v3411 = vadd.f32 0.0, %v3410
      %v3412 = vpop.f32.mrb[0].mxu0
      %v3413 = vadd.f32 0.0, %v3412
      %v3414 = vpop.f32.mrb[0].mxu0
      %v3415 = vadd.f32 0.0, %v3414
      %v3416 = vpop.f32.mrb[0].mxu0
      %v3417 = vadd.f32 0.0, %v3416
      %3418 = vmatprep.mubr.bf16.mxu0 %v3177
      %3419 = vmatmul.mubr.bf16.gmra.mrb[0].mxu0 %v3176
      %v3420 = vpop.f32.mrb[0].mxu0
      %v3421 = vadd.f32 0.0, %v3420
      %v3422 = vpop.f32.mrb[0].mxu0
      %v3423 = vadd.f32 0.0, %v3422
      %v3424 = vpop.f32.mrb[0].mxu0
      %v3425 = vadd.f32 0.0, %v3424
      %v3426 = vpop.f32.mrb[0].mxu0
      %v3427 = vadd.f32 0.0, %v3426
      %3428 = vmatprep.mubr.bf16.mxu0 %v3183
      %3429 = vmatmul.mubr.bf16.gmra.mrb[0].mxu0 %v3182
      %v3430 = vpop.f32.mrb[0].mxu0
      %v3431 = vadd.f32 0.0, %v3430
      %v3432 = vpop.f32.mrb[0].mxu0
      %v3433 = vadd.f32 0.0, %v3432
      %v3434 = vpop.f32.mrb[0].mxu0
      %v3435 = vpop.f32.mrb[0].mxu0
      %3436 = vdwg.mxu0
      %3437 = vmatprep.subr.bf16.mxu0 %v2729
      %3438 = vmatpush1.bf16.msra.mxu0 %v2728
      %3439 = vmatprep.subr.bf16.mxu0 %v2736
      %3440 = vmatpush1.bf16.msra.mxu0 %v2735
      %3441 = vmatprep.subr.bf16.mxu0 %v2743
      %3442 = vmatpush1.bf16.msra.mxu0 %v2742
      %3443 = vmatprep.subr.bf16.mxu0 %v2750
      %3444 = vmatpush1.bf16.msra.mxu0 %v2749
      %3445 = vmatprep.subr.bf16.mxu0 %v2757
      %3446 = vmatpush1.bf16.msra.mxu0 %v2756
      %3447 = vmatprep.subr.bf16.mxu0 %v2764
      %3448 = vmatpush1.bf16.msra.mxu0 %v2763
      %3449 = vmatprep.subr.bf16.mxu0 %v2771
      %3450 = vmatpush1.bf16.msra.mxu0 %v2770
      %3451 = vmatprep.subr.bf16.mxu0 %v2778
      %3452 = vmatpush1.bf16.msra.mxu0 %v2777
      %3453 = vmatprep.subr.bf16.mxu0 %v2785
      %3454 = vmatpush1.bf16.msra.mxu0 %v2784
      %3455 = vmatprep.subr.bf16.mxu0 %v2792
      %3456 = vmatpush1.bf16.msra.mxu0 %v2791
      %3457 = vmatprep.subr.bf16.mxu0 %v2799
      %3458 = vmatpush1.bf16.msra.mxu0 %v2798
      %3459 = vmatprep.subr.bf16.mxu0 %v2806
      %3460 = vmatpush1.bf16.msra.mxu0 %v2805
      %3461 = vmatprep.subr.bf16.mxu0 %v2813
      %3462 = vmatpush1.bf16.msra.mxu0 %v2812
      %3463 = vmatprep.subr.bf16.mxu0 %v2820
      %3464 = vmatpush1.bf16.msra.mxu0 %v2819
      %3465 = vmatprep.subr.bf16.mxu0 %v2827
      %3466 = vmatpush1.bf16.msra.mxu0 %v2826
      %3467 = vmatprep.subr.bf16.mxu0 %v2834
      %3468 = vmatpush1.bf16.msra.mxu0 %v2833
      %3469 = vmatprep.mubr.bf16.mxu0 %v3101
      %3470 = vmatmul.mubr.bf16.gmra.mrb[0].mxu0 %v3100
      %v3471 = vpop.f32.mrb[0].mxu0
      %v3472 = vadd.f32 %v3291, %v3471
      %v3473 = vpop.f32.mrb[0].mxu0
      %v3474 = vadd.f32 %v3293, %v3473
      %v3475 = vpop.f32.mrb[0].mxu0
      %v3476 = vadd.f32 %v3295, %v3475
      %v3477 = vpop.f32.mrb[0].mxu0
      %v3478 = vadd.f32 %v3297, %v3477
      %3479 = vmatprep.mubr.bf16.mxu0 %v3107
      %3480 = vmatmul.mubr.bf16.gmra.mrb[0].mxu0 %v3106
      %v3481 = vpop.f32.mrb[0].mxu0
      %v3482 = vadd.f32 %v3301, %v3481
      %v3483 = vpop.f32.mrb[0].mxu0
      %v3484 = vadd.f32 %v3303, %v3483
      %v3485 = vpop.f32.mrb[0].mxu0
      %v3486 = vadd.f32 %v3305, %v3485
      %v3487 = vpop.f32.mrb[0].mxu0
      %v3488 = vadd.f32 %v3307, %v3487
      %3489 = vmatprep.mubr.bf16.mxu0 %v3113
      %3490 = vmatmul.mubr.bf16.gmra.mrb[0].mxu0 %v3112
      %v3491 = vpop.f32.mrb[0].mxu0
      %v3492 = vadd.f32 %v3311, %v3491
      %v3493 = vpop.f32.mrb[0].mxu0
      %v3494 = vadd.f32 %v3313, %v3493
      %v3495 = vpop.f32.mrb[0].mxu0
      %v3496 = vadd.f32 %v3315, %v3495
      %v3497 = vpop.f32.mrb[0].mxu0
      %v3498 = vadd.f32 %v3317, %v3497
      %3499 = vmatprep.mubr.bf16.mxu0 %v3119
      %3500 = vmatmul.mubr.bf16.gmra.mrb[0].mxu0 %v3118
      %v3501 = vpop.f32.mrb[0].mxu0
      %v3502 = vadd.f32 %v3321, %v3501
      %v3503 = vpop.f32.mrb[0].mxu0
      %v3504 = vadd.f32 %v3323, %v3503
      %v3505 = vpop.f32.mrb[0].mxu0
      %v3506 = vadd.f32 %v3325, %v3505
      %v3507 = vpop.f32.mrb[0].mxu0
      %v3508 = vadd.f32 %v3327, %v3507
      %3509 = vmatprep.mubr.bf16.mxu0 %v3125
      %3510 = vmatmul.mubr.bf16.gmra.mrb[0].mxu0 %v3124
      %v3511 = vpop.f32.mrb[0].mxu0
      %v3512 = vadd.f32 %v3331, %v3511
      %v3513 = vpop.f32.mrb[0].mxu0
      %v3514 = vadd.f32 %v3333, %v3513
      %v3515 = vpop.f32.mrb[0].mxu0
      %v3516 = vadd.f32 %v3335, %v3515
      %v3517 = vpop.f32.mrb[0].mxu0
      %v3518 = vadd.f32 %v3337, %v3517
      %3519 = vmatprep.mubr.bf16.mxu0 %v3131
      %3520 = vmatmul.mubr.bf16.gmra.mrb[0].mxu0 %v3130
      %v3521 = vpop.f32.mrb[0].mxu0
      %v3522 = vadd.f32 %v3341, %v3521
      %v3523 = vpop.f32.mrb[0].mxu0
      %v3524 = vadd.f32 %v3343, %v3523
      %v3525 = vpop.f32.mrb[0].mxu0
      %v3526 = vadd.f32 %v3345, %v3525
      %v3527 = vpop.f32.mrb[0].mxu0
      %v3528 = vadd.f32 %v3347, %v3527
      %3529 = vmatprep.mubr.bf16.mxu0 %v3137
      %3530 = vmatmul.mubr.bf16.gmra.mrb[0].mxu0 %v3136
      %v3531 = vpop.f32.mrb[0].mxu0
      %v3532 = vadd.f32 %v3351, %v3531
      %v3533 = vpop.f32.mrb[0].mxu0
      %v3534 = vadd.f32 %v3353, %v3533
      %v3535 = vpop.f32.mrb[0].mxu0
      %v3536 = vadd.f32 %v3355, %v3535
      %v3537 = vpop.f32.mrb[0].mxu0
      %v3538 = vadd.f32 %v3357, %v3537
      %3539 = vmatprep.mubr.bf16.mxu0 %v3143
      %3540 = vmatmul.mubr.bf16.gmra.mrb[0].mxu0 %v3142
      %v3541 = vpop.f32.mrb[0].mxu0
      %v3542 = vadd.f32 %v3361, %v3541
      %v3543 = vpop.f32.mrb[0].mxu0
      %v3544 = vadd.f32 %v3363, %v3543
      %v3545 = vpop.f32.mrb[0].mxu0
      %v3546 = vadd.f32 %v3365, %v3545
      %v3547 = vpop.f32.mrb[0].mxu0
      %v3548 = vadd.f32 %v3367, %v3547
      %3549 = vmatprep.mubr.bf16.mxu0 %v3149
      %3550 = vmatmul.mubr.bf16.gmra.mrb[0].mxu0 %v3148
      %v3551 = vpop.f32.mrb[0].mxu0
      %v3552 = vadd.f32 %v3371, %v3551
      %v3553 = vpop.f32.mrb[0].mxu0
      %v3554 = vadd.f32 %v3373, %v3553
      %v3555 = vpop.f32.mrb[0].mxu0
      %v3556 = vadd.f32 %v3375, %v3555
      %v3557 = vpop.f32.mrb[0].mxu0
      %v3558 = vadd.f32 %v3377, %v3557
      %3559 = vmatprep.mubr.bf16.mxu0 %v3155
      %3560 = vmatmul.mubr.bf16.gmra.mrb[0].mxu0 %v3154
      %v3561 = vpop.f32.mrb[0].mxu0
      %v3562 = vadd.f32 %v3381, %v3561
      %v3563 = vpop.f32.mrb[0].mxu0
      %v3564 = vadd.f32 %v3383, %v3563
      %v3565 = vpop.f32.mrb[0].mxu0
      %v3566 = vadd.f32 %v3385, %v3565
      %v3567 = vpop.f32.mrb[0].mxu0
      %v3568 = vadd.f32 %v3387, %v3567
      %3569 = vmatprep.mubr.bf16.mxu0 %v3161
      %3570 = vmatmul.mubr.bf16.gmra.mrb[0].mxu0 %v3160
      %v3571 = vpop.f32.mrb[0].mxu0
      %v3572 = vadd.f32 %v3391, %v3571
      %v3573 = vpop.f32.mrb[0].mxu0
      %v3574 = vadd.f32 %v3393, %v3573
      %v3575 = vpop.f32.mrb[0].mxu0
      %v3576 = vadd.f32 %v3395, %v3575
      %v3577 = vpop.f32.mrb[0].mxu0
      %v3578 = vadd.f32 %v3397, %v3577
      %3579 = vmatprep.mubr.bf16.mxu0 %v3167
      %3580 = vmatmul.mubr.bf16.gmra.mrb[0].mxu0 %v3166
      %v3581 = vpop.f32.mrb[0].mxu0
      %v3582 = vadd.f32 %v3401, %v3581
      %v3583 = vpop.f32.mrb[0].mxu0
      %v3584 = vadd.f32 %v3403, %v3583
      %v3585 = vpop.f32.mrb[0].mxu0
      %v3586 = vadd.f32 %v3405, %v3585
      %v3587 = vpop.f32.mrb[0].mxu0
      %v3588 = vadd.f32 %v3407, %v3587
      %3589 = vmatprep.mubr.bf16.mxu0 %v3173
      %3590 = vmatmul.mubr.bf16.gmra.mrb[0].mxu0 %v3172
      %v3591 = vpop.f32.mrb[0].mxu0
      %v3592 = vadd.f32 %v3411, %v3591
      %v3593 = vpop.f32.mrb[0].mxu0
      %v3594 = vadd.f32 %v3413, %v3593
      %v3595 = vpop.f32.mrb[0].mxu0
      %v3596 = vadd.f32 %v3415, %v3595
      %v3597 = vpop.f32.mrb[0].mxu0
      %v3598 = vadd.f32 %v3417, %v3597
      %3599 = vmatprep.mubr.bf16.mxu0 %v3179
      %3600 = vmatmul.mubr.bf16.gmra.mrb[0].mxu0 %v3178
      %v3601 = vpop.f32.mrb[0].mxu0
      %v3602 = vadd.f32 %v3421, %v3601
      %v3603 = vpop.f32.mrb[0].mxu0
      %v3604 = vadd.f32 %v3423, %v3603
      %v3605 = vpop.f32.mrb[0].mxu0
      %v3606 = vadd.f32 %v3425, %v3605
      %v3607 = vpop.f32.mrb[0].mxu0
      %v3608 = vadd.f32 %v3427, %v3607
      %3609 = vmatprep.mubr.bf16.mxu0 %v3185
      %3610 = vmatmul.mubr.bf16.gmra.mrb[0].mxu0 %v3184
      %v3611 = vpop.f32.mrb[0].mxu0
      %v3612 = vadd.f32 %v3431, %v3611
      %v3613 = vpop.f32.mrb[0].mxu0
      %v3614 = vadd.f32 %v3433, %v3613
      %v3615 = vpop.f32.mrb[0].mxu0
      %v3616 = vpop.f32.mrb[0].mxu0
      %3617 = vdwg.mxu0
      %3618 = vmatprep.subr.bf16.mxu0 %v2841
      %3619 = vmatpush1.bf16.msra.mxu0 %v2840
      %3620 = vmatprep.subr.bf16.mxu0 %v2848
      %3621 = vmatpush1.bf16.msra.mxu0 %v2847
      %3622 = vmatprep.subr.bf16.mxu0 %v2855
      %3623 = vmatpush1.bf16.msra.mxu0 %v2854
      %3624 = vmatprep.subr.bf16.mxu0 %v2862
      %3625 = vmatpush1.bf16.msra.mxu0 %v2861
      %3626 = vmatprep.subr.bf16.mxu0 %v2869
      %3627 = vmatpush1.bf16.msra.mxu0 %v2868
      %3628 = vmatprep.subr.bf16.mxu0 %v2876
      %3629 = vmatpush1.bf16.msra.mxu0 %v2875
      %3630 = vmatprep.subr.bf16.mxu0 %v2883
      %3631 = vmatpush1.bf16.msra.mxu0 %v2882
      %3632 = vmatprep.subr.bf16.mxu0 %v2890
      %3633 = vmatpush1.bf16.msra.mxu0 %v2889
      %3634 = vmatprep.subr.bf16.mxu0 %v2897
      %3635 = vmatpush1.bf16.msra.mxu0 %v2896
      %3636 = vmatprep.subr.bf16.mxu0 %v2904
      %3637 = vmatpush1.bf16.msra.mxu0 %v2903
      %3638 = vmatprep.subr.bf16.mxu0 %v2911
      %3639 = vmatpush1.bf16.msra.mxu0 %v2910
      %3640 = vmatprep.subr.bf16.mxu0 %v3239
      %3641 = vmatpush1.bf16.msra.mxu0 %v3236
      %3642 = vmatprep.subr.bf16.mxu0 0
      %3643 = vmatpush1.bf16.msra.mxu0 0
      %3644 = vmatprep.subr.bf16.mxu0 0
      %3645 = vmatpush1.bf16.msra.mxu0 0
      %3646 = vmatprep.subr.bf16.mxu0 0
      %3647 = vmatpush1.bf16.msra.mxu0 0
      %3648 = vmatprep.subr.bf16.mxu0 0
      %3649 = vmatpush1.bf16.msra.mxu0 0
      %3650 = vmatprep.mubr.bf16.mxu0 %v3190
      %3651 = vmatmul.mubr.bf16.gmra.mrb[0].mxu0 %v3102
      %v3652 = vpop.f32.mrb[0].mxu0
      %v3653 = vadd.f32 %v3472, %v3652
      %v3654 = vpop.f32.mrb[0].mxu0
      %v3655 = vadd.f32 %v3474, %v3654
      %v3656 = vpop.f32.mrb[0].mxu0
      %v3657 = vadd.f32 %v3476, %v3656
      %v3658 = vpop.f32.mrb[0].mxu0
      %v3659 = vadd.f32 %v3478, %v3658
      %3660 = vmatprep.mubr.bf16.mxu0 %v3193
      %3661 = vmatmul.mubr.bf16.gmra.mrb[0].mxu0 %v3108
      %v3662 = vpop.f32.mrb[0].mxu0
      %v3663 = vadd.f32 %v3482, %v3662
      %v3664 = vpop.f32.mrb[0].mxu0
      %v3665 = vadd.f32 %v3484, %v3664
      %v3666 = vpop.f32.mrb[0].mxu0
      %v3667 = vadd.f32 %v3486, %v3666
      %v3668 = vpop.f32.mrb[0].mxu0
      %v3669 = vadd.f32 %v3488, %v3668
      %3670 = vmatprep.mubr.bf16.mxu0 %v3196
      %3671 = vmatmul.mubr.bf16.gmra.mrb[0].mxu0 %v3114
      %v3672 = vpop.f32.mrb[0].mxu0
      %v3673 = vadd.f32 %v3492, %v3672
      %v3674 = vpop.f32.mrb[0].mxu0
      %v3675 = vadd.f32 %v3494, %v3674
      %v3676 = vpop.f32.mrb[0].mxu0
      %v3677 = vadd.f32 %v3496, %v3676
      %v3678 = vpop.f32.mrb[0].mxu0
      %v3679 = vadd.f32 %v3498, %v3678
      %3680 = vmatprep.mubr.bf16.mxu0 %v3199
      %3681 = vmatmul.mubr.bf16.gmra.mrb[0].mxu0 %v3120
      %v3682 = vpop.f32.mrb[0].mxu0
      %v3683 = vadd.f32 %v3502, %v3682
      %v3684 = vpop.f32.mrb[0].mxu0
      %v3685 = vadd.f32 %v3504, %v3684
      %v3686 = vpop.f32.mrb[0].mxu0
      %v3687 = vadd.f32 %v3506, %v3686
      %v3688 = vpop.f32.mrb[0].mxu0
      %v3689 = vadd.f32 %v3508, %v3688
      %3690 = vmatprep.mubr.bf16.mxu0 %v3202
      %3691 = vmatmul.mubr.bf16.gmra.mrb[0].mxu0 %v3126
      %v3692 = vpop.f32.mrb[0].mxu0
      %v3693 = vadd.f32 %v3512, %v3692
      %v3694 = vpop.f32.mrb[0].mxu0
      %v3695 = vadd.f32 %v3514, %v3694
      %v3696 = vpop.f32.mrb[0].mxu0
      %v3697 = vadd.f32 %v3516, %v3696
      %v3698 = vpop.f32.mrb[0].mxu0
      %v3699 = vadd.f32 %v3518, %v3698
      %3700 = vmatprep.mubr.bf16.mxu0 %v3205
      %3701 = vmatmul.mubr.bf16.gmra.mrb[0].mxu0 %v3132
      %v3702 = vpop.f32.mrb[0].mxu0
      %v3703 = vadd.f32 %v3522, %v3702
      %v3704 = vpop.f32.mrb[0].mxu0
      %v3705 = vadd.f32 %v3524, %v3704
      %v3706 = vpop.f32.mrb[0].mxu0
      %v3707 = vadd.f32 %v3526, %v3706
      %v3708 = vpop.f32.mrb[0].mxu0
      %v3709 = vadd.f32 %v3528, %v3708
      %3710 = vmatprep.mubr.bf16.mxu0 %v3208
      %3711 = vmatmul.mubr.bf16.gmra.mrb[0].mxu0 %v3138
      %v3712 = vpop.f32.mrb[0].mxu0
      %v3713 = vadd.f32 %v3532, %v3712
      %v3714 = vpop.f32.mrb[0].mxu0
      %v3715 = vadd.f32 %v3534, %v3714
      %v3716 = vpop.f32.mrb[0].mxu0
      %v3717 = vadd.f32 %v3536, %v3716
      %v3718 = vpop.f32.mrb[0].mxu0
      %v3719 = vadd.f32 %v3538, %v3718
      %3720 = vmatprep.mubr.bf16.mxu0 %v3211
      %3721 = vmatmul.mubr.bf16.gmra.mrb[0].mxu0 %v3144
      %v3722 = vpop.f32.mrb[0].mxu0
      %v3723 = vadd.f32 %v3542, %v3722
      %v3724 = vpop.f32.mrb[0].mxu0
      %v3725 = vadd.f32 %v3544, %v3724
      %v3726 = vpop.f32.mrb[0].mxu0
      %v3727 = vadd.f32 %v3546, %v3726
      %v3728 = vpop.f32.mrb[0].mxu0
      %v3729 = vadd.f32 %v3548, %v3728
      %3730 = vmatprep.mubr.bf16.mxu0 %v3214
      %3731 = vmatmul.mubr.bf16.gmra.mrb[0].mxu0 %v3150
      %v3732 = vpop.f32.mrb[0].mxu0
      %v3733 = vadd.f32 %v3552, %v3732
      %v3734 = vpop.f32.mrb[0].mxu0
      %v3735 = vadd.f32 %v3554, %v3734
      %v3736 = vpop.f32.mrb[0].mxu0
      %v3737 = vadd.f32 %v3556, %v3736
      %v3738 = vpop.f32.mrb[0].mxu0
      %v3739 = vadd.f32 %v3558, %v3738
      %3740 = vmatprep.mubr.bf16.mxu0 %v3217
      %3741 = vmatmul.mubr.bf16.gmra.mrb[0].mxu0 %v3156
      %v3742 = vpop.f32.mrb[0].mxu0
      %v3743 = vadd.f32 %v3562, %v3742
      %v3744 = vpop.f32.mrb[0].mxu0
      %v3745 = vadd.f32 %v3564, %v3744
      %v3746 = vpop.f32.mrb[0].mxu0
      %v3747 = vadd.f32 %v3566, %v3746
      %v3748 = vpop.f32.mrb[0].mxu0
      %v3749 = vadd.f32 %v3568, %v3748
      %3750 = vmatprep.mubr.bf16.mxu0 %v3220
      %3751 = vmatmul.mubr.bf16.gmra.mrb[0].mxu0 %v3162
      %v3752 = vpop.f32.mrb[0].mxu0
      %v3753 = vadd.f32 %v3572, %v3752
      %v3754 = vpop.f32.mrb[0].mxu0
      %v3755 = vadd.f32 %v3574, %v3754
      %v3756 = vpop.f32.mrb[0].mxu0
      %v3757 = vadd.f32 %v3576, %v3756
      %v3758 = vpop.f32.mrb[0].mxu0
      %v3759 = vadd.f32 %v3578, %v3758
      %3760 = vmatprep.mubr.bf16.mxu0 %v3223
      %3761 = vmatmul.mubr.bf16.gmra.mrb[0].mxu0 %v3168
      %v3762 = vpop.f32.mrb[0].mxu0
      %v3763 = vadd.f32 %v3582, %v3762
      %v3764 = vpop.f32.mrb[0].mxu0
      %v3765 = vadd.f32 %v3584, %v3764
      %v3766 = vpop.f32.mrb[0].mxu0
      %v3767 = vadd.f32 %v3586, %v3766
      %v3768 = vpop.f32.mrb[0].mxu0
      %v3769 = vadd.f32 %v3588, %v3768
      %3770 = vmatprep.mubr.bf16.mxu0 %v3226
      %3771 = vmatmul.mubr.bf16.gmra.mrb[0].mxu0 %v3174
      %v3772 = vpop.f32.mrb[0].mxu0
      %v3773 = vadd.f32 %v3592, %v3772
      %v3774 = vpop.f32.mrb[0].mxu0
      %v3775 = vadd.f32 %v3594, %v3774
      %v3776 = vpop.f32.mrb[0].mxu0
      %v3777 = vadd.f32 %v3596, %v3776
      %v3778 = vpop.f32.mrb[0].mxu0
      %v3779 = vadd.f32 %v3598, %v3778
      %3780 = vmatprep.mubr.bf16.mxu0 %v3229
      %3781 = vmatmul.mubr.bf16.gmra.mrb[0].mxu0 %v3180
      %v3782 = vpop.f32.mrb[0].mxu0
      %v3783 = vadd.f32 %v3602, %v3782
      %v3784 = vpop.f32.mrb[0].mxu0
      %v3785 = vadd.f32 %v3604, %v3784
      %v3786 = vpop.f32.mrb[0].mxu0
      %v3787 = vadd.f32 %v3606, %v3786
      %v3788 = vpop.f32.mrb[0].mxu0
      %v3789 = vadd.f32 %v3608, %v3788
      %3790 = vmatprep.mubr.bf16.mxu0 %v3232
      %3791 = vmatmul.mubr.bf16.gmra.mrb[0].mxu0 %v3186
      %v3792 = vpop.f32.mrb[0].mxu0
      %v3793 = vadd.f32 %v3612, %v3792
      %v3794 = vpop.f32.mrb[0].mxu0
      %v3795 = vadd.f32 %v3614, %v3794
      %v3796 = vpop.f32.mrb[0].mxu0
      %v3797 = vpop.f32.mrb[0].mxu0
      %3798 = vdwg.mxu0
      %3799 = vmatprep.subr.bf16.mxu0 %v2619
      %3800 = vmatpush1.bf16.msra.mxu0 %v2618
      %3801 = vmatprep.subr.bf16.mxu0 %v2626
      %3802 = vmatpush1.bf16.msra.mxu0 %v2625
      %3803 = vmatprep.subr.bf16.mxu0 %v2633
      %3804 = vmatpush1.bf16.msra.mxu0 %v2632
      %3805 = vmatprep.subr.bf16.mxu0 %v2640
      %3806 = vmatpush1.bf16.msra.mxu0 %v2639
      %3807 = vmatprep.subr.bf16.mxu0 %v2647
      %3808 = vmatpush1.bf16.msra.mxu0 %v2646
      %3809 = vmatprep.subr.bf16.mxu0 %v2654
      %3810 = vmatpush1.bf16.msra.mxu0 %v2653
      %3811 = vmatprep.subr.bf16.mxu0 %v2661
      %3812 = vmatpush1.bf16.msra.mxu0 %v2660
      %3813 = vmatprep.subr.bf16.mxu0 %v2668
      %3814 = vmatpush1.bf16.msra.mxu0 %v2667
      %3815 = vmatprep.subr.bf16.mxu0 %v2675
      %3816 = vmatpush1.bf16.msra.mxu0 %v2674
      %3817 = vmatprep.subr.bf16.mxu0 %v2682
      %3818 = vmatpush1.bf16.msra.mxu0 %v2681
      %3819 = vmatprep.subr.bf16.mxu0 %v2689
      %3820 = vmatpush1.bf16.msra.mxu0 %v2688
      %3821 = vmatprep.subr.bf16.mxu0 %v2696
      %3822 = vmatpush1.bf16.msra.mxu0 %v2695
      %3823 = vmatprep.subr.bf16.mxu0 %v2703
      %3824 = vmatpush1.bf16.msra.mxu0 %v2702
      %3825 = vmatprep.subr.bf16.mxu0 %v2710
      %3826 = vmatpush1.bf16.msra.mxu0 %v2709
      %3827 = vmatprep.subr.bf16.mxu0 %v2717
      %3828 = vmatpush1.bf16.msra.mxu0 %v2716
      %3829 = vmatprep.subr.bf16.mxu0 %v2724
      %3830 = vmatpush1.bf16.msra.mxu0 %v2723
      %3831 = vmatprep.mubr.bf16.mxu0 %v3099
      %3832 = vmatmul.mubr.bf16.gmra.mrb[0].mxu0 %v3098
      %v3833 = vpop.f32.mrb[0].mxu0
      %v3834 = vadd.f32 0.0, %v3833
      %v3835 = vpop.f32.mrb[0].mxu0
      %v3836 = vadd.f32 0.0, %v3835
      %v3837 = vpop.f32.mrb[0].mxu0
      %v3838 = vadd.f32 0.0, %v3837
      %v3839 = vpop.f32.mrb[0].mxu0
      %v3840 = vadd.f32 0.0, %v3839
      %3841 = vmatprep.mubr.bf16.mxu0 %v3105
      %3842 = vmatmul.mubr.bf16.gmra.mrb[0].mxu0 %v3104
      %v3843 = vpop.f32.mrb[0].mxu0
      %v3844 = vadd.f32 0.0, %v3843
      %v3845 = vpop.f32.mrb[0].mxu0
      %v3846 = vadd.f32 0.0, %v3845
      %v3847 = vpop.f32.mrb[0].mxu0
      %v3848 = vadd.f32 0.0, %v3847
      %v3849 = vpop.f32.mrb[0].mxu0
      %v3850 = vadd.f32 0.0, %v3849
      %3851 = vmatprep.mubr.bf16.mxu0 %v3111
      %3852 = vmatmul.mubr.bf16.gmra.mrb[0].mxu0 %v3110
      %v3853 = vpop.f32.mrb[0].mxu0
      %v3854 = vadd.f32 0.0, %v3853
      %v3855 = vpop.f32.mrb[0].mxu0
      %v3856 = vadd.f32 0.0, %v3855
      %v3857 = vpop.f32.mrb[0].mxu0
      %v3858 = vadd.f32 0.0, %v3857
      %v3859 = vpop.f32.mrb[0].mxu0
      %v3860 = vadd.f32 0.0, %v3859
      %3861 = vmatprep.mubr.bf16.mxu0 %v3117
      %3862 = vmatmul.mubr.bf16.gmra.mrb[0].mxu0 %v3116
      %v3863 = vpop.f32.mrb[0].mxu0
      %v3864 = vadd.f32 0.0, %v3863
      %v3865 = vpop.f32.mrb[0].mxu0
      %v3866 = vadd.f32 0.0, %v3865
      %v3867 = vpop.f32.mrb[0].mxu0
      %v3868 = vadd.f32 0.0, %v3867
      %v3869 = vpop.f32.mrb[0].mxu0
      %v3870 = vadd.f32 0.0, %v3869
      %3871 = vmatprep.mubr.bf16.mxu0 %v3123
      %3872 = vmatmul.mubr.bf16.gmra.mrb[0].mxu0 %v3122
      %v3873 = vpop.f32.mrb[0].mxu0
      %v3874 = vadd.f32 0.0, %v3873
      %v3875 = vpop.f32.mrb[0].mxu0
      %v3876 = vadd.f32 0.0, %v3875
      %v3877 = vpop.f32.mrb[0].mxu0
      %v3878 = vadd.f32 0.0, %v3877
      %v3879 = vpop.f32.mrb[0].mxu0
      %v3880 = vadd.f32 0.0, %v3879
      %3881 = vmatprep.mubr.bf16.mxu0 %v3129
      %3882 = vmatmul.mubr.bf16.gmra.mrb[0].mxu0 %v3128
      %v3883 = vpop.f32.mrb[0].mxu0
      %v3884 = vadd.f32 0.0, %v3883
      %v3885 = vpop.f32.mrb[0].mxu0
      %v3886 = vadd.f32 0.0, %v3885
      %v3887 = vpop.f32.mrb[0].mxu0
      %v3888 = vadd.f32 0.0, %v3887
      %v3889 = vpop.f32.mrb[0].mxu0
      %v3890 = vadd.f32 0.0, %v3889
      %3891 = vmatprep.mubr.bf16.mxu0 %v3135
      %3892 = vmatmul.mubr.bf16.gmra.mrb[0].mxu0 %v3134
      %v3893 = vpop.f32.mrb[0].mxu0
      %v3894 = vadd.f32 0.0, %v3893
      %v3895 = vpop.f32.mrb[0].mxu0
      %v3896 = vadd.f32 0.0, %v3895
      %v3897 = vpop.f32.mrb[0].mxu0
      %v3898 = vadd.f32 0.0, %v3897
      %v3899 = vpop.f32.mrb[0].mxu0
      %v3900 = vadd.f32 0.0, %v3899
      %3901 = vmatprep.mubr.bf16.mxu0 %v3141
      %3902 = vmatmul.mubr.bf16.gmra.mrb[0].mxu0 %v3140
      %v3903 = vpop.f32.mrb[0].mxu0
      %v3904 = vadd.f32 0.0, %v3903
      %v3905 = vpop.f32.mrb[0].mxu0
      %v3906 = vadd.f32 0.0, %v3905
      %v3907 = vpop.f32.mrb[0].mxu0
      %v3908 = vadd.f32 0.0, %v3907
      %v3909 = vpop.f32.mrb[0].mxu0
      %v3910 = vadd.f32 0.0, %v3909
      %3911 = vmatprep.mubr.bf16.mxu0 %v3147
      %3912 = vmatmul.mubr.bf16.gmra.mrb[0].mxu0 %v3146
      %v3913 = vpop.f32.mrb[0].mxu0
      %v3914 = vadd.f32 0.0, %v3913
      %v3915 = vpop.f32.mrb[0].mxu0
      %v3916 = vadd.f32 0.0, %v3915
      %v3917 = vpop.f32.mrb[0].mxu0
      %v3918 = vadd.f32 0.0, %v3917
      %v3919 = vpop.f32.mrb[0].mxu0
      %v3920 = vadd.f32 0.0, %v3919
      %3921 = vmatprep.mubr.bf16.mxu0 %v3153
      %3922 = vmatmul.mubr.bf16.gmra.mrb[0].mxu0 %v3152
      %v3923 = vpop.f32.mrb[0].mxu0
      %v3924 = vadd.f32 0.0, %v3923
      %v3925 = vpop.f32.mrb[0].mxu0
      %v3926 = vadd.f32 0.0, %v3925
      %v3927 = vpop.f32.mrb[0].mxu0
      %v3928 = vadd.f32 0.0, %v3927
      %v3929 = vpop.f32.mrb[0].mxu0
      %v3930 = vadd.f32 0.0, %v3929
      %3931 = vmatprep.mubr.bf16.mxu0 %v3159
      %3932 = vmatmul.mubr.bf16.gmra.mrb[0].mxu0 %v3158
      %v3933 = vpop.f32.mrb[0].mxu0
      %v3934 = vadd.f32 0.0, %v3933
      %v3935 = vpop.f32.mrb[0].mxu0
      %v3936 = vadd.f32 0.0, %v3935
      %v3937 = vpop.f32.mrb[0].mxu0
      %v3938 = vadd.f32 0.0, %v3937
      %v3939 = vpop.f32.mrb[0].mxu0
      %v3940 = vadd.f32 0.0, %v3939
      %3941 = vmatprep.mubr.bf16.mxu0 %v3165
      %3942 = vmatmul.mubr.bf16.gmra.mrb[0].mxu0 %v3164
      %v3943 = vpop.f32.mrb[0].mxu0
      %v3944 = vadd.f32 0.0, %v3943
      %v3945 = vpop.f32.mrb[0].mxu0
      %v3946 = vadd.f32 0.0, %v3945
      %v3947 = vpop.f32.mrb[0].mxu0
      %v3948 = vadd.f32 0.0, %v3947
      %v3949 = vpop.f32.mrb[0].mxu0
      %v3950 = vadd.f32 0.0, %v3949
      %3951 = vmatprep.mubr.bf16.mxu0 %v3171
      %3952 = vmatmul.mubr.bf16.gmra.mrb[0].mxu0 %v3170
      %v3953 = vpop.f32.mrb[0].mxu0
      %v3954 = vadd.f32 0.0, %v3953
      %v3955 = vpop.f32.mrb[0].mxu0
      %v3956 = vadd.f32 0.0, %v3955
      %v3957 = vpop.f32.mrb[0].mxu0
      %v3958 = vadd.f32 0.0, %v3957
      %v3959 = vpop.f32.mrb[0].mxu0
      %v3960 = vadd.f32 0.0, %v3959
      %3961 = vmatprep.mubr.bf16.mxu0 %v3177
      %3962 = vmatmul.mubr.bf16.gmra.mrb[0].mxu0 %v3176
      %v3963 = vpop.f32.mrb[0].mxu0
      %v3964 = vadd.f32 0.0, %v3963
      %v3965 = vpop.f32.mrb[0].mxu0
      %v3966 = vadd.f32 0.0, %v3965
      %v3967 = vpop.f32.mrb[0].mxu0
      %v3968 = vadd.f32 0.0, %v3967
      %v3969 = vpop.f32.mrb[0].mxu0
      %v3970 = vadd.f32 0.0, %v3969
      %3971 = vmatprep.mubr.bf16.mxu0 %v3183
      %3972 = vmatmul.mubr.bf16.gmra.mrb[0].mxu0 %v3182
      %v3973 = vpop.f32.mrb[0].mxu0
      %v3974 = vadd.f32 0.0, %v3973
      %v3975 = vpop.f32.mrb[0].mxu0
      %v3976 = vadd.f32 0.0, %v3975
      %v3977 = vpop.f32.mrb[0].mxu0
      %v3978 = vpop.f32.mrb[0].mxu0
      %3979 = vdwg.mxu0
      %3980 = vmatprep.subr.bf16.mxu0 %v2731
      %3981 = vmatpush1.bf16.msra.mxu0 %v2730
      %3982 = vmatprep.subr.bf16.mxu0 %v2738
      %3983 = vmatpush1.bf16.msra.mxu0 %v2737
      %3984 = vmatprep.subr.bf16.mxu0 %v2745
      %3985 = vmatpush1.bf16.msra.mxu0 %v2744
      %3986 = vmatprep.subr.bf16.mxu0 %v2752
      %3987 = vmatpush1.bf16.msra.mxu0 %v2751
      %3988 = vmatprep.subr.bf16.mxu0 %v2759
      %3989 = vmatpush1.bf16.msra.mxu0 %v2758
      %3990 = vmatprep.subr.bf16.mxu0 %v2766
      %3991 = vmatpush1.bf16.msra.mxu0 %v2765
      %3992 = vmatprep.subr.bf16.mxu0 %v2773
      %3993 = vmatpush1.bf16.msra.mxu0 %v2772
      %3994 = vmatprep.subr.bf16.mxu0 %v2780
      %3995 = vmatpush1.bf16.msra.mxu0 %v2779
      %3996 = vmatprep.subr.bf16.mxu0 %v2787
      %3997 = vmatpush1.bf16.msra.mxu0 %v2786
      %3998 = vmatprep.subr.bf16.mxu0 %v2794
      %3999 = vmatpush1.bf16.msra.mxu0 %v2793
      %4000 = vmatprep.subr.bf16.mxu0 %v2801
      %4001 = vmatpush1.bf16.msra.mxu0 %v2800
      %4002 = vmatprep.subr.bf16.mxu0 %v2808
      %4003 = vmatpush1.bf16.msra.mxu0 %v2807
      %4004 = vmatprep.subr.bf16.mxu0 %v2815
      %4005 = vmatpush1.bf16.msra.mxu0 %v2814
      %4006 = vmatprep.subr.bf16.mxu0 %v2822
      %4007 = vmatpush1.bf16.msra.mxu0 %v2821
      %4008 = vmatprep.subr.bf16.mxu0 %v2829
      %4009 = vmatpush1.bf16.msra.mxu0 %v2828
      %4010 = vmatprep.subr.bf16.mxu0 %v2836
      %4011 = vmatpush1.bf16.msra.mxu0 %v2835
      %4012 = vmatprep.mubr.bf16.mxu0 %v3101
      %4013 = vmatmul.mubr.bf16.gmra.mrb[0].mxu0 %v3100
      %v4014 = vpop.f32.mrb[0].mxu0
      %v4015 = vadd.f32 %v3834, %v4014
      %v4016 = vpop.f32.mrb[0].mxu0
      %v4017 = vadd.f32 %v3836, %v4016
      %v4018 = vpop.f32.mrb[0].mxu0
      %v4019 = vadd.f32 %v3838, %v4018
      %v4020 = vpop.f32.mrb[0].mxu0
      %v4021 = vadd.f32 %v3840, %v4020
      %4022 = vmatprep.mubr.bf16.mxu0 %v3107
      %4023 = vmatmul.mubr.bf16.gmra.mrb[0].mxu0 %v3106
      %v4024 = vpop.f32.mrb[0].mxu0
      %v4025 = vadd.f32 %v3844, %v4024
      %v4026 = vpop.f32.mrb[0].mxu0
      %v4027 = vadd.f32 %v3846, %v4026
      %v4028 = vpop.f32.mrb[0].mxu0
      %v4029 = vadd.f32 %v3848, %v4028
      %v4030 = vpop.f32.mrb[0].mxu0
      %v4031 = vadd.f32 %v3850, %v4030
      %4032 = vmatprep.mubr.bf16.mxu0 %v3113
      %4033 = vmatmul.mubr.bf16.gmra.mrb[0].mxu0 %v3112
      %v4034 = vpop.f32.mrb[0].mxu0
      %v4035 = vadd.f32 %v3854, %v4034
      %v4036 = vpop.f32.mrb[0].mxu0
      %v4037 = vadd.f32 %v3856, %v4036
      %v4038 = vpop.f32.mrb[0].mxu0
      %v4039 = vadd.f32 %v3858, %v4038
      %v4040 = vpop.f32.mrb[0].mxu0
      %v4041 = vadd.f32 %v3860, %v4040
      %4042 = vmatprep.mubr.bf16.mxu0 %v3119
      %4043 = vmatmul.mubr.bf16.gmra.mrb[0].mxu0 %v3118
      %v4044 = vpop.f32.mrb[0].mxu0
      %v4045 = vadd.f32 %v3864, %v4044
      %v4046 = vpop.f32.mrb[0].mxu0
      %v4047 = vadd.f32 %v3866, %v4046
      %v4048 = vpop.f32.mrb[0].mxu0
      %v4049 = vadd.f32 %v3868, %v4048
      %v4050 = vpop.f32.mrb[0].mxu0
      %v4051 = vadd.f32 %v3870, %v4050
      %4052 = vmatprep.mubr.bf16.mxu0 %v3125
      %4053 = vmatmul.mubr.bf16.gmra.mrb[0].mxu0 %v3124
      %v4054 = vpop.f32.mrb[0].mxu0
      %v4055 = vadd.f32 %v3874, %v4054
      %v4056 = vpop.f32.mrb[0].mxu0
      %v4057 = vadd.f32 %v3876, %v4056
      %v4058 = vpop.f32.mrb[0].mxu0
      %v4059 = vadd.f32 %v3878, %v4058
      %v4060 = vpop.f32.mrb[0].mxu0
      %v4061 = vadd.f32 %v3880, %v4060
      %4062 = vmatprep.mubr.bf16.mxu0 %v3131
      %4063 = vmatmul.mubr.bf16.gmra.mrb[0].mxu0 %v3130
      %v4064 = vpop.f32.mrb[0].mxu0
      %v4065 = vadd.f32 %v3884, %v4064
      %v4066 = vpop.f32.mrb[0].mxu0
      %v4067 = vadd.f32 %v3886, %v4066
      %v4068 = vpop.f32.mrb[0].mxu0
      %v4069 = vadd.f32 %v3888, %v4068
      %v4070 = vpop.f32.mrb[0].mxu0
      %v4071 = vadd.f32 %v3890, %v4070
      %4072 = vmatprep.mubr.bf16.mxu0 %v3137
      %4073 = vmatmul.mubr.bf16.gmra.mrb[0].mxu0 %v3136
      %v4074 = vpop.f32.mrb[0].mxu0
      %v4075 = vadd.f32 %v3894, %v4074
      %v4076 = vpop.f32.mrb[0].mxu0
      %v4077 = vadd.f32 %v3896, %v4076
      %v4078 = vpop.f32.mrb[0].mxu0
      %v4079 = vadd.f32 %v3898, %v4078
      %v4080 = vpop.f32.mrb[0].mxu0
      %v4081 = vadd.f32 %v3900, %v4080
      %4082 = vmatprep.mubr.bf16.mxu0 %v3143
      %4083 = vmatmul.mubr.bf16.gmra.mrb[0].mxu0 %v3142
      %v4084 = vpop.f32.mrb[0].mxu0
      %v4085 = vadd.f32 %v3904, %v4084
      %v4086 = vpop.f32.mrb[0].mxu0
      %v4087 = vadd.f32 %v3906, %v4086
      %v4088 = vpop.f32.mrb[0].mxu0
      %v4089 = vadd.f32 %v3908, %v4088
      %v4090 = vpop.f32.mrb[0].mxu0
      %v4091 = vadd.f32 %v3910, %v4090
      %4092 = vmatprep.mubr.bf16.mxu0 %v3149
      %4093 = vmatmul.mubr.bf16.gmra.mrb[0].mxu0 %v3148
      %v4094 = vpop.f32.mrb[0].mxu0
      %v4095 = vadd.f32 %v3914, %v4094
      %v4096 = vpop.f32.mrb[0].mxu0
      %v4097 = vadd.f32 %v3916, %v4096
      %v4098 = vpop.f32.mrb[0].mxu0
      %v4099 = vadd.f32 %v3918, %v4098
      %v4100 = vpop.f32.mrb[0].mxu0
      %v4101 = vadd.f32 %v3920, %v4100
      %4102 = vmatprep.mubr.bf16.mxu0 %v3155
      %4103 = vmatmul.mubr.bf16.gmra.mrb[0].mxu0 %v3154
      %v4104 = vpop.f32.mrb[0].mxu0
      %v4105 = vadd.f32 %v3924, %v4104
      %v4106 = vpop.f32.mrb[0].mxu0
      %v4107 = vadd.f32 %v3926, %v4106
      %v4108 = vpop.f32.mrb[0].mxu0
      %v4109 = vadd.f32 %v3928, %v4108
      %v4110 = vpop.f32.mrb[0].mxu0
      %v4111 = vadd.f32 %v3930, %v4110
      %4112 = vmatprep.mubr.bf16.mxu0 %v3161
      %4113 = vmatmul.mubr.bf16.gmra.mrb[0].mxu0 %v3160
      %v4114 = vpop.f32.mrb[0].mxu0
      %v4115 = vadd.f32 %v3934, %v4114
      %v4116 = vpop.f32.mrb[0].mxu0
      %v4117 = vadd.f32 %v3936, %v4116
      %v4118 = vpop.f32.mrb[0].mxu0
      %v4119 = vadd.f32 %v3938, %v4118
      %v4120 = vpop.f32.mrb[0].mxu0
      %v4121 = vadd.f32 %v3940, %v4120
      %4122 = vmatprep.mubr.bf16.mxu0 %v3167
      %4123 = vmatmul.mubr.bf16.gmra.mrb[0].mxu0 %v3166
      %v4124 = vpop.f32.mrb[0].mxu0
      %v4125 = vadd.f32 %v3944, %v4124
      %v4126 = vpop.f32.mrb[0].mxu0
      %v4127 = vadd.f32 %v3946, %v4126
      %v4128 = vpop.f32.mrb[0].mxu0
      %v4129 = vadd.f32 %v3948, %v4128
      %v4130 = vpop.f32.mrb[0].mxu0
      %v4131 = vadd.f32 %v3950, %v4130
      %4132 = vmatprep.mubr.bf16.mxu0 %v3173
      %4133 = vmatmul.mubr.bf16.gmra.mrb[0].mxu0 %v3172
      %v4134 = vpop.f32.mrb[0].mxu0
      %v4135 = vadd.f32 %v3954, %v4134
      %v4136 = vpop.f32.mrb[0].mxu0
      %v4137 = vadd.f32 %v3956, %v4136
      %v4138 = vpop.f32.mrb[0].mxu0
      %v4139 = vadd.f32 %v3958, %v4138
      %v4140 = vpop.f32.mrb[0].mxu0
      %v4141 = vadd.f32 %v3960, %v4140
      %4142 = vmatprep.mubr.bf16.mxu0 %v3179
      %4143 = vmatmul.mubr.bf16.gmra.mrb[0].mxu0 %v3178
      %v4144 = vpop.f32.mrb[0].mxu0
      %v4145 = vadd.f32 %v3964, %v4144
      %v4146 = vpop.f32.mrb[0].mxu0
      %v4147 = vadd.f32 %v3966, %v4146
      %v4148 = vpop.f32.mrb[0].mxu0
      %v4149 = vadd.f32 %v3968, %v4148
      %v4150 = vpop.f32.mrb[0].mxu0
      %v4151 = vadd.f32 %v3970, %v4150
      %4152 = vmatprep.mubr.bf16.mxu0 %v3185
      %4153 = vmatmul.mubr.bf16.gmra.mrb[0].mxu0 %v3184
      %v4154 = vpop.f32.mrb[0].mxu0
      %v4155 = vadd.f32 %v3974, %v4154
      %v4156 = vpop.f32.mrb[0].mxu0
      %v4157 = vadd.f32 %v3976, %v4156
      %v4158 = vpop.f32.mrb[0].mxu0
      %v4159 = vpop.f32.mrb[0].mxu0
      %4160 = vdwg.mxu0
      %4161 = vmatprep.subr.bf16.mxu0 %v2843
      %4162 = vmatpush1.bf16.msra.mxu0 %v2842
      %4163 = vmatprep.subr.bf16.mxu0 %v2850
      %4164 = vmatpush1.bf16.msra.mxu0 %v2849
      %4165 = vmatprep.subr.bf16.mxu0 %v2857
      %4166 = vmatpush1.bf16.msra.mxu0 %v2856
      %4167 = vmatprep.subr.bf16.mxu0 %v2864
      %4168 = vmatpush1.bf16.msra.mxu0 %v2863
      %4169 = vmatprep.subr.bf16.mxu0 %v2871
      %4170 = vmatpush1.bf16.msra.mxu0 %v2870
      %4171 = vmatprep.subr.bf16.mxu0 %v2878
      %4172 = vmatpush1.bf16.msra.mxu0 %v2877
      %4173 = vmatprep.subr.bf16.mxu0 %v2885
      %4174 = vmatpush1.bf16.msra.mxu0 %v2884
      %4175 = vmatprep.subr.bf16.mxu0 %v2892
      %4176 = vmatpush1.bf16.msra.mxu0 %v2891
      %4177 = vmatprep.subr.bf16.mxu0 %v2899
      %4178 = vmatpush1.bf16.msra.mxu0 %v2898
      %4179 = vmatprep.subr.bf16.mxu0 %v2906
      %4180 = vmatpush1.bf16.msra.mxu0 %v2905
      %4181 = vmatprep.subr.bf16.mxu0 %v2913
      %4182 = vmatpush1.bf16.msra.mxu0 %v2912
      %4183 = vmatprep.subr.bf16.mxu0 %v3245
      %4184 = vmatpush1.bf16.msra.mxu0 %v3242
      %4185 = vmatprep.subr.bf16.mxu0 0
      %4186 = vmatpush1.bf16.msra.mxu0 0
      %4187 = vmatprep.subr.bf16.mxu0 0
      %4188 = vmatpush1.bf16.msra.mxu0 0
      %4189 = vmatprep.subr.bf16.mxu0 0
      %4190 = vmatpush1.bf16.msra.mxu0 0
      %4191 = vmatprep.subr.bf16.mxu0 0
      %4192 = vmatpush1.bf16.msra.mxu0 0
      %4193 = vmatprep.mubr.bf16.mxu0 %v3190
      %4194 = vmatmul.mubr.bf16.gmra.mrb[0].mxu0 %v3102
      %v4195 = vpop.f32.mrb[0].mxu0
      %v4196 = vadd.f32 %v4015, %v4195
      %v4197 = vpop.f32.mrb[0].mxu0
      %v4198 = vadd.f32 %v4017, %v4197
      %v4199 = vpop.f32.mrb[0].mxu0
      %v4200 = vadd.f32 %v4019, %v4199
      %v4201 = vpop.f32.mrb[0].mxu0
      %v4202 = vadd.f32 %v4021, %v4201
      %4203 = vmatprep.mubr.bf16.mxu0 %v3193
      %4204 = vmatmul.mubr.bf16.gmra.mrb[0].mxu0 %v3108
      %v4205 = vpop.f32.mrb[0].mxu0
      %v4206 = vadd.f32 %v4025, %v4205
      %v4207 = vpop.f32.mrb[0].mxu0
      %v4208 = vadd.f32 %v4027, %v4207
      %v4209 = vpop.f32.mrb[0].mxu0
      %v4210 = vadd.f32 %v4029, %v4209
      %v4211 = vpop.f32.mrb[0].mxu0
      %v4212 = vadd.f32 %v4031, %v4211
      %4213 = vmatprep.mubr.bf16.mxu0 %v3196
      %4214 = vmatmul.mubr.bf16.gmra.mrb[0].mxu0 %v3114
      %v4215 = vpop.f32.mrb[0].mxu0
      %v4216 = vadd.f32 %v4035, %v4215
      %v4217 = vpop.f32.mrb[0].mxu0
      %v4218 = vadd.f32 %v4037, %v4217
      %v4219 = vpop.f32.mrb[0].mxu0
      %v4220 = vadd.f32 %v4039, %v4219
      %v4221 = vpop.f32.mrb[0].mxu0
      %v4222 = vadd.f32 %v4041, %v4221
      %4223 = vmatprep.mubr.bf16.mxu0 %v3199
      %4224 = vmatmul.mubr.bf16.gmra.mrb[0].mxu0 %v3120
      %v4225 = vpop.f32.mrb[0].mxu0
      %v4226 = vadd.f32 %v4045, %v4225
      %v4227 = vpop.f32.mrb[0].mxu0
      %v4228 = vadd.f32 %v4047, %v4227
      %v4229 = vpop.f32.mrb[0].mxu0
      %v4230 = vadd.f32 %v4049, %v4229
      %v4231 = vpop.f32.mrb[0].mxu0
      %v4232 = vadd.f32 %v4051, %v4231
      %4233 = vmatprep.mubr.bf16.mxu0 %v3202
      %4234 = vmatmul.mubr.bf16.gmra.mrb[0].mxu0 %v3126
      %v4235 = vpop.f32.mrb[0].mxu0
      %v4236 = vadd.f32 %v4055, %v4235
      %v4237 = vpop.f32.mrb[0].mxu0
      %v4238 = vadd.f32 %v4057, %v4237
      %v4239 = vpop.f32.mrb[0].mxu0
      %v4240 = vadd.f32 %v4059, %v4239
      %v4241 = vpop.f32.mrb[0].mxu0
      %v4242 = vadd.f32 %v4061, %v4241
      %4243 = vmatprep.mubr.bf16.mxu0 %v3205
      %4244 = vmatmul.mubr.bf16.gmra.mrb[0].mxu0 %v3132
      %v4245 = vpop.f32.mrb[0].mxu0
      %v4246 = vadd.f32 %v4065, %v4245
      %v4247 = vpop.f32.mrb[0].mxu0
      %v4248 = vadd.f32 %v4067, %v4247
      %v4249 = vpop.f32.mrb[0].mxu0
      %v4250 = vadd.f32 %v4069, %v4249
      %v4251 = vpop.f32.mrb[0].mxu0
      %v4252 = vadd.f32 %v4071, %v4251
      %4253 = vmatprep.mubr.bf16.mxu0 %v3208
      %4254 = vmatmul.mubr.bf16.gmra.mrb[0].mxu0 %v3138
      %v4255 = vpop.f32.mrb[0].mxu0
      %v4256 = vadd.f32 %v4075, %v4255
      %v4257 = vpop.f32.mrb[0].mxu0
      %v4258 = vadd.f32 %v4077, %v4257
      %v4259 = vpop.f32.mrb[0].mxu0
      %v4260 = vadd.f32 %v4079, %v4259
      %v4261 = vpop.f32.mrb[0].mxu0
      %v4262 = vadd.f32 %v4081, %v4261
      %4263 = vmatprep.mubr.bf16.mxu0 %v3211
      %4264 = vmatmul.mubr.bf16.gmra.mrb[0].mxu0 %v3144
      %v4265 = vpop.f32.mrb[0].mxu0
      %v4266 = vadd.f32 %v4085, %v4265
      %v4267 = vpop.f32.mrb[0].mxu0
      %v4268 = vadd.f32 %v4087, %v4267
      %v4269 = vpop.f32.mrb[0].mxu0
      %v4270 = vadd.f32 %v4089, %v4269
      %v4271 = vpop.f32.mrb[0].mxu0
      %v4272 = vadd.f32 %v4091, %v4271
      %4273 = vmatprep.mubr.bf16.mxu0 %v3214
      %4274 = vmatmul.mubr.bf16.gmra.mrb[0].mxu0 %v3150
      %v4275 = vpop.f32.mrb[0].mxu0
      %v4276 = vadd.f32 %v4095, %v4275
      %v4277 = vpop.f32.mrb[0].mxu0
      %v4278 = vadd.f32 %v4097, %v4277
      %v4279 = vpop.f32.mrb[0].mxu0
      %v4280 = vadd.f32 %v4099, %v4279
      %v4281 = vpop.f32.mrb[0].mxu0
      %v4282 = vadd.f32 %v4101, %v4281
      %4283 = vmatprep.mubr.bf16.mxu0 %v3217
      %4284 = vmatmul.mubr.bf16.gmra.mrb[0].mxu0 %v3156
      %v4285 = vpop.f32.mrb[0].mxu0
      %v4286 = vadd.f32 %v4105, %v4285
      %v4287 = vpop.f32.mrb[0].mxu0
      %v4288 = vadd.f32 %v4107, %v4287
      %v4289 = vpop.f32.mrb[0].mxu0
      %v4290 = vadd.f32 %v4109, %v4289
      %v4291 = vpop.f32.mrb[0].mxu0
      %v4292 = vadd.f32 %v4111, %v4291
      %4293 = vmatprep.mubr.bf16.mxu0 %v3220
      %4294 = vmatmul.mubr.bf16.gmra.mrb[0].mxu0 %v3162
      %v4295 = vpop.f32.mrb[0].mxu0
      %v4296 = vadd.f32 %v4115, %v4295
      %v4297 = vpop.f32.mrb[0].mxu0
      %v4298 = vadd.f32 %v4117, %v4297
      %v4299 = vpop.f32.mrb[0].mxu0
      %v4300 = vadd.f32 %v4119, %v4299
      %v4301 = vpop.f32.mrb[0].mxu0
      %v4302 = vadd.f32 %v4121, %v4301
      %4303 = vmatprep.mubr.bf16.mxu0 %v3223
      %4304 = vmatmul.mubr.bf16.gmra.mrb[0].mxu0 %v3168
      %v4305 = vpop.f32.mrb[0].mxu0
      %v4306 = vadd.f32 %v4125, %v4305
      %v4307 = vpop.f32.mrb[0].mxu0
      %v4308 = vadd.f32 %v4127, %v4307
      %v4309 = vpop.f32.mrb[0].mxu0
      %v4310 = vadd.f32 %v4129, %v4309
      %v4311 = vpop.f32.mrb[0].mxu0
      %v4312 = vadd.f32 %v4131, %v4311
      %4313 = vmatprep.mubr.bf16.mxu0 %v3226
      %4314 = vmatmul.mubr.bf16.gmra.mrb[0].mxu0 %v3174
      %v4315 = vpop.f32.mrb[0].mxu0
      %v4316 = vadd.f32 %v4135, %v4315
      %v4317 = vpop.f32.mrb[0].mxu0
      %v4318 = vadd.f32 %v4137, %v4317
      %v4319 = vpop.f32.mrb[0].mxu0
      %v4320 = vadd.f32 %v4139, %v4319
      %v4321 = vpop.f32.mrb[0].mxu0
      %v4322 = vadd.f32 %v4141, %v4321
      %4323 = vmatprep.mubr.bf16.mxu0 %v3229
      %4324 = vmatmul.mubr.bf16.gmra.mrb[0].mxu0 %v3180
      %v4325 = vpop.f32.mrb[0].mxu0
      %v4326 = vadd.f32 %v4145, %v4325
      %v4327 = vpop.f32.mrb[0].mxu0
      %v4328 = vadd.f32 %v4147, %v4327
      %v4329 = vpop.f32.mrb[0].mxu0
      %v4330 = vadd.f32 %v4149, %v4329
      %v4331 = vpop.f32.mrb[0].mxu0
      %v4332 = vadd.f32 %v4151, %v4331
      %4333 = vmatprep.mubr.bf16.mxu0 %v3232
      %4334 = vmatmul.mubr.bf16.gmra.mrb[0].mxu0 %v3186
      %v4335 = vpop.f32.mrb[0].mxu0
      %v4336 = vadd.f32 %v4155, %v4335
      %v4337 = vpop.f32.mrb[0].mxu0
      %v4338 = vadd.f32 %v4157, %v4337
      %v4339 = vpop.f32.mrb[0].mxu0
      %v4340 = vpop.f32.mrb[0].mxu0
      %4341 = vdwg.mxu0
      %4342 = vmatprep.subr.bf16.mxu0 %v2621
      %4343 = vmatpush1.bf16.msra.mxu0 %v2620
      %4344 = vmatprep.subr.bf16.mxu0 %v2628
      %4345 = vmatpush1.bf16.msra.mxu0 %v2627
      %4346 = vmatprep.subr.bf16.mxu0 %v2635
      %4347 = vmatpush1.bf16.msra.mxu0 %v2634
      %4348 = vmatprep.subr.bf16.mxu0 %v2642
      %4349 = vmatpush1.bf16.msra.mxu0 %v2641
      %4350 = vmatprep.subr.bf16.mxu0 %v2649
      %4351 = vmatpush1.bf16.msra.mxu0 %v2648
      %4352 = vmatprep.subr.bf16.mxu0 %v2656
      %4353 = vmatpush1.bf16.msra.mxu0 %v2655
      %4354 = vmatprep.subr.bf16.mxu0 %v2663
      %4355 = vmatpush1.bf16.msra.mxu0 %v2662
      %4356 = vmatprep.subr.bf16.mxu0 %v2670
      %4357 = vmatpush1.bf16.msra.mxu0 %v2669
      %4358 = vmatprep.subr.bf16.mxu0 %v2677
      %4359 = vmatpush1.bf16.msra.mxu0 %v2676
      %4360 = vmatprep.subr.bf16.mxu0 %v2684
      %4361 = vmatpush1.bf16.msra.mxu0 %v2683
      %4362 = vmatprep.subr.bf16.mxu0 %v2691
      %4363 = vmatpush1.bf16.msra.mxu0 %v2690
      %4364 = vmatprep.subr.bf16.mxu0 %v2698
      %4365 = vmatpush1.bf16.msra.mxu0 %v2697
      %4366 = vmatprep.subr.bf16.mxu0 %v2705
      %4367 = vmatpush1.bf16.msra.mxu0 %v2704
      %4368 = vmatprep.subr.bf16.mxu0 %v2712
      %4369 = vmatpush1.bf16.msra.mxu0 %v2711
      %4370 = vmatprep.subr.bf16.mxu0 %v2719
      %4371 = vmatpush1.bf16.msra.mxu0 %v2718
      %4372 = vmatprep.subr.bf16.mxu0 %v2726
      %4373 = vmatpush1.bf16.msra.mxu0 %v2725
      %4374 = vmatprep.mubr.bf16.mxu0 %v3099
      %4375 = vmatmul.mubr.bf16.gmra.mrb[0].mxu0 %v3098
      %v4376 = vpop.f32.mrb[0].mxu0
      %v4377 = vadd.f32 0.0, %v4376
      %v4378 = vpop.f32.mrb[0].mxu0
      %v4379 = vadd.f32 0.0, %v4378
      %v4380 = vpop.f32.mrb[0].mxu0
      %v4381 = vadd.f32 0.0, %v4380
      %v4382 = vpop.f32.mrb[0].mxu0
      %v4383 = vadd.f32 0.0, %v4382
      %4384 = vmatprep.mubr.bf16.mxu0 %v3105
      %4385 = vmatmul.mubr.bf16.gmra.mrb[0].mxu0 %v3104
      %v4386 = vpop.f32.mrb[0].mxu0
      %v4387 = vadd.f32 0.0, %v4386
      %v4388 = vpop.f32.mrb[0].mxu0
      %v4389 = vadd.f32 0.0, %v4388
      %v4390 = vpop.f32.mrb[0].mxu0
      %v4391 = vadd.f32 0.0, %v4390
      %v4392 = vpop.f32.mrb[0].mxu0
      %v4393 = vadd.f32 0.0, %v4392
      %4394 = vmatprep.mubr.bf16.mxu0 %v3111
      %4395 = vmatmul.mubr.bf16.gmra.mrb[0].mxu0 %v3110
      %v4396 = vpop.f32.mrb[0].mxu0
      %v4397 = vadd.f32 0.0, %v4396
      %v4398 = vpop.f32.mrb[0].mxu0
      %v4399 = vadd.f32 0.0, %v4398
      %v4400 = vpop.f32.mrb[0].mxu0
      %v4401 = vadd.f32 0.0, %v4400
      %v4402 = vpop.f32.mrb[0].mxu0
      %v4403 = vadd.f32 0.0, %v4402
      %4404 = vmatprep.mubr.bf16.mxu0 %v3117
      %4405 = vmatmul.mubr.bf16.gmra.mrb[0].mxu0 %v3116
      %v4406 = vpop.f32.mrb[0].mxu0
      %v4407 = vadd.f32 0.0, %v4406
      %v4408 = vpop.f32.mrb[0].mxu0
      %v4409 = vadd.f32 0.0, %v4408
      %v4410 = vpop.f32.mrb[0].mxu0
      %v4411 = vadd.f32 0.0, %v4410
      %v4412 = vpop.f32.mrb[0].mxu0
      %v4413 = vadd.f32 0.0, %v4412
      %4414 = vmatprep.mubr.bf16.mxu0 %v3123
      %4415 = vmatmul.mubr.bf16.gmra.mrb[0].mxu0 %v3122
      %v4416 = vpop.f32.mrb[0].mxu0
      %v4417 = vadd.f32 0.0, %v4416
      %v4418 = vpop.f32.mrb[0].mxu0
      %v4419 = vadd.f32 0.0, %v4418
      %v4420 = vpop.f32.mrb[0].mxu0
      %v4421 = vadd.f32 0.0, %v4420
      %v4422 = vpop.f32.mrb[0].mxu0
      %v4423 = vadd.f32 0.0, %v4422
      %4424 = vmatprep.mubr.bf16.mxu0 %v3129
      %4425 = vmatmul.mubr.bf16.gmra.mrb[0].mxu0 %v3128
      %v4426 = vpop.f32.mrb[0].mxu0
      %v4427 = vadd.f32 0.0, %v4426
      %v4428 = vpop.f32.mrb[0].mxu0
      %v4429 = vadd.f32 0.0, %v4428
      %v4430 = vpop.f32.mrb[0].mxu0
      %v4431 = vadd.f32 0.0, %v4430
      %v4432 = vpop.f32.mrb[0].mxu0
      %v4433 = vadd.f32 0.0, %v4432
      %4434 = vmatprep.mubr.bf16.mxu0 %v3135
      %4435 = vmatmul.mubr.bf16.gmra.mrb[0].mxu0 %v3134
      %v4436 = vpop.f32.mrb[0].mxu0
      %v4437 = vadd.f32 0.0, %v4436
      %v4438 = vpop.f32.mrb[0].mxu0
      %v4439 = vadd.f32 0.0, %v4438
      %v4440 = vpop.f32.mrb[0].mxu0
      %v4441 = vadd.f32 0.0, %v4440
      %v4442 = vpop.f32.mrb[0].mxu0
      %v4443 = vadd.f32 0.0, %v4442
      %4444 = vmatprep.mubr.bf16.mxu0 %v3141
      %4445 = vmatmul.mubr.bf16.gmra.mrb[0].mxu0 %v3140
      %v4446 = vpop.f32.mrb[0].mxu0
      %v4447 = vadd.f32 0.0, %v4446
      %v4448 = vpop.f32.mrb[0].mxu0
      %v4449 = vadd.f32 0.0, %v4448
      %v4450 = vpop.f32.mrb[0].mxu0
      %v4451 = vadd.f32 0.0, %v4450
      %v4452 = vpop.f32.mrb[0].mxu0
      %v4453 = vadd.f32 0.0, %v4452
      %4454 = vmatprep.mubr.bf16.mxu0 %v3147
      %4455 = vmatmul.mubr.bf16.gmra.mrb[0].mxu0 %v3146
      %v4456 = vpop.f32.mrb[0].mxu0
      %v4457 = vadd.f32 0.0, %v4456
      %v4458 = vpop.f32.mrb[0].mxu0
      %v4459 = vadd.f32 0.0, %v4458
      %v4460 = vpop.f32.mrb[0].mxu0
      %v4461 = vadd.f32 0.0, %v4460
      %v4462 = vpop.f32.mrb[0].mxu0
      %v4463 = vadd.f32 0.0, %v4462
      %4464 = vmatprep.mubr.bf16.mxu0 %v3153
      %4465 = vmatmul.mubr.bf16.gmra.mrb[0].mxu0 %v3152
      %v4466 = vpop.f32.mrb[0].mxu0
      %v4467 = vadd.f32 0.0, %v4466
      %v4468 = vpop.f32.mrb[0].mxu0
      %v4469 = vadd.f32 0.0, %v4468
      %v4470 = vpop.f32.mrb[0].mxu0
      %v4471 = vadd.f32 0.0, %v4470
      %v4472 = vpop.f32.mrb[0].mxu0
      %v4473 = vadd.f32 0.0, %v4472
      %4474 = vmatprep.mubr.bf16.mxu0 %v3159
      %4475 = vmatmul.mubr.bf16.gmra.mrb[0].mxu0 %v3158
      %v4476 = vpop.f32.mrb[0].mxu0
      %v4477 = vadd.f32 0.0, %v4476
      %v4478 = vpop.f32.mrb[0].mxu0
      %v4479 = vadd.f32 0.0, %v4478
      %v4480 = vpop.f32.mrb[0].mxu0
      %v4481 = vadd.f32 0.0, %v4480
      %v4482 = vpop.f32.mrb[0].mxu0
      %v4483 = vadd.f32 0.0, %v4482
      %4484 = vmatprep.mubr.bf16.mxu0 %v3165
      %4485 = vmatmul.mubr.bf16.gmra.mrb[0].mxu0 %v3164
      %v4486 = vpop.f32.mrb[0].mxu0
      %v4487 = vadd.f32 0.0, %v4486
      %v4488 = vpop.f32.mrb[0].mxu0
      %v4489 = vadd.f32 0.0, %v4488
      %v4490 = vpop.f32.mrb[0].mxu0
      %v4491 = vadd.f32 0.0, %v4490
      %v4492 = vpop.f32.mrb[0].mxu0
      %v4493 = vadd.f32 0.0, %v4492
      %4494 = vmatprep.mubr.bf16.mxu0 %v3171
      %4495 = vmatmul.mubr.bf16.gmra.mrb[0].mxu0 %v3170
      %v4496 = vpop.f32.mrb[0].mxu0
      %v4497 = vadd.f32 0.0, %v4496
      %v4498 = vpop.f32.mrb[0].mxu0
      %v4499 = vadd.f32 0.0, %v4498
      %v4500 = vpop.f32.mrb[0].mxu0
      %v4501 = vadd.f32 0.0, %v4500
      %v4502 = vpop.f32.mrb[0].mxu0
      %v4503 = vadd.f32 0.0, %v4502
      %4504 = vmatprep.mubr.bf16.mxu0 %v3177
      %4505 = vmatmul.mubr.bf16.gmra.mrb[0].mxu0 %v3176
      %v4506 = vpop.f32.mrb[0].mxu0
      %v4507 = vadd.f32 0.0, %v4506
      %v4508 = vpop.f32.mrb[0].mxu0
      %v4509 = vadd.f32 0.0, %v4508
      %v4510 = vpop.f32.mrb[0].mxu0
      %v4511 = vadd.f32 0.0, %v4510
      %v4512 = vpop.f32.mrb[0].mxu0
      %v4513 = vadd.f32 0.0, %v4512
      %4514 = vmatprep.mubr.bf16.mxu0 %v3183
      %4515 = vmatmul.mubr.bf16.gmra.mrb[0].mxu0 %v3182
      %v4516 = vpop.f32.mrb[0].mxu0
      %v4517 = vadd.f32 0.0, %v4516
      %v4518 = vpop.f32.mrb[0].mxu0
      %v4519 = vadd.f32 0.0, %v4518
      %v4520 = vpop.f32.mrb[0].mxu0
      %v4521 = vpop.f32.mrb[0].mxu0
      %4522 = vdwg.mxu0
      %4523 = vmatprep.subr.bf16.mxu0 %v2733
      %4524 = vmatpush1.bf16.msra.mxu0 %v2732
      %4525 = vmatprep.subr.bf16.mxu0 %v2740
      %4526 = vmatpush1.bf16.msra.mxu0 %v2739
      %4527 = vmatprep.subr.bf16.mxu0 %v2747
      %4528 = vmatpush1.bf16.msra.mxu0 %v2746
      %4529 = vmatprep.subr.bf16.mxu0 %v2754
      %4530 = vmatpush1.bf16.msra.mxu0 %v2753
      %4531 = vmatprep.subr.bf16.mxu0 %v2761
      %4532 = vmatpush1.bf16.msra.mxu0 %v2760
      %4533 = vmatprep.subr.bf16.mxu0 %v2768
      %4534 = vmatpush1.bf16.msra.mxu0 %v2767
      %4535 = vmatprep.subr.bf16.mxu0 %v2775
      %4536 = vmatpush1.bf16.msra.mxu0 %v2774
      %4537 = vmatprep.subr.bf16.mxu0 %v2782
      %4538 = vmatpush1.bf16.msra.mxu0 %v2781
      %4539 = vmatprep.subr.bf16.mxu0 %v2789
      %4540 = vmatpush1.bf16.msra.mxu0 %v2788
      %4541 = vmatprep.subr.bf16.mxu0 %v2796
      %4542 = vmatpush1.bf16.msra.mxu0 %v2795
      %4543 = vmatprep.subr.bf16.mxu0 %v2803
      %4544 = vmatpush1.bf16.msra.mxu0 %v2802
      %4545 = vmatprep.subr.bf16.mxu0 %v2810
      %4546 = vmatpush1.bf16.msra.mxu0 %v2809
      %4547 = vmatprep.subr.bf16.mxu0 %v2817
      %4548 = vmatpush1.bf16.msra.mxu0 %v2816
      %4549 = vmatprep.subr.bf16.mxu0 %v2824
      %4550 = vmatpush1.bf16.msra.mxu0 %v2823
      %4551 = vmatprep.subr.bf16.mxu0 %v2831
      %4552 = vmatpush1.bf16.msra.mxu0 %v2830
      %4553 = vmatprep.subr.bf16.mxu0 %v2838
      %4554 = vmatpush1.bf16.msra.mxu0 %v2837
      %4555 = vmatprep.mubr.bf16.mxu0 %v3101
      %4556 = vmatmul.mubr.bf16.gmra.mrb[0].mxu0 %v3100
      %v4557 = vpop.f32.mrb[0].mxu0
      %v4558 = vadd.f32 %v4377, %v4557
      %v4559 = vpop.f32.mrb[0].mxu0
      %v4560 = vadd.f32 %v4379, %v4559
      %v4561 = vpop.f32.mrb[0].mxu0
      %v4562 = vadd.f32 %v4381, %v4561
      %v4563 = vpop.f32.mrb[0].mxu0
      %v4564 = vadd.f32 %v4383, %v4563
      %4565 = vmatprep.mubr.bf16.mxu0 %v3107
      %4566 = vmatmul.mubr.bf16.gmra.mrb[0].mxu0 %v3106
      %v4567 = vpop.f32.mrb[0].mxu0
      %v4568 = vadd.f32 %v4387, %v4567
      %v4569 = vpop.f32.mrb[0].mxu0
      %v4570 = vadd.f32 %v4389, %v4569
      %v4571 = vpop.f32.mrb[0].mxu0
      %v4572 = vadd.f32 %v4391, %v4571
      %v4573 = vpop.f32.mrb[0].mxu0
      %v4574 = vadd.f32 %v4393, %v4573
      %4575 = vmatprep.mubr.bf16.mxu0 %v3113
      %4576 = vmatmul.mubr.bf16.gmra.mrb[0].mxu0 %v3112
      %v4577 = vpop.f32.mrb[0].mxu0
      %v4578 = vadd.f32 %v4397, %v4577
      %v4579 = vpop.f32.mrb[0].mxu0
      %v4580 = vadd.f32 %v4399, %v4579
      %v4581 = vpop.f32.mrb[0].mxu0
      %v4582 = vadd.f32 %v4401, %v4581
      %v4583 = vpop.f32.mrb[0].mxu0
      %v4584 = vadd.f32 %v4403, %v4583
      %4585 = vmatprep.mubr.bf16.mxu0 %v3119
      %4586 = vmatmul.mubr.bf16.gmra.mrb[0].mxu0 %v3118
      %v4587 = vpop.f32.mrb[0].mxu0
      %v4588 = vadd.f32 %v4407, %v4587
      %v4589 = vpop.f32.mrb[0].mxu0
      %v4590 = vadd.f32 %v4409, %v4589
      %v4591 = vpop.f32.mrb[0].mxu0
      %v4592 = vadd.f32 %v4411, %v4591
      %v4593 = vpop.f32.mrb[0].mxu0
      %v4594 = vadd.f32 %v4413, %v4593
      %4595 = vmatprep.mubr.bf16.mxu0 %v3125
      %4596 = vmatmul.mubr.bf16.gmra.mrb[0].mxu0 %v3124
      %v4597 = vpop.f32.mrb[0].mxu0
      %v4598 = vadd.f32 %v4417, %v4597
      %v4599 = vpop.f32.mrb[0].mxu0
      %v4600 = vadd.f32 %v4419, %v4599
      %v4601 = vpop.f32.mrb[0].mxu0
      %v4602 = vadd.f32 %v4421, %v4601
      %v4603 = vpop.f32.mrb[0].mxu0
      %v4604 = vadd.f32 %v4423, %v4603
      %4605 = vmatprep.mubr.bf16.mxu0 %v3131
      %4606 = vmatmul.mubr.bf16.gmra.mrb[0].mxu0 %v3130
      %v4607 = vpop.f32.mrb[0].mxu0
      %v4608 = vadd.f32 %v4427, %v4607
      %v4609 = vpop.f32.mrb[0].mxu0
      %v4610 = vadd.f32 %v4429, %v4609
      %v4611 = vpop.f32.mrb[0].mxu0
      %v4612 = vadd.f32 %v4431, %v4611
      %v4613 = vpop.f32.mrb[0].mxu0
      %v4614 = vadd.f32 %v4433, %v4613
      %4615 = vmatprep.mubr.bf16.mxu0 %v3137
      %4616 = vmatmul.mubr.bf16.gmra.mrb[0].mxu0 %v3136
      %v4617 = vpop.f32.mrb[0].mxu0
      %v4618 = vadd.f32 %v4437, %v4617
      %v4619 = vpop.f32.mrb[0].mxu0
      %v4620 = vadd.f32 %v4439, %v4619
      %v4621 = vpop.f32.mrb[0].mxu0
      %v4622 = vadd.f32 %v4441, %v4621
      %v4623 = vpop.f32.mrb[0].mxu0
      %v4624 = vadd.f32 %v4443, %v4623
      %4625 = vmatprep.mubr.bf16.mxu0 %v3143
      %4626 = vmatmul.mubr.bf16.gmra.mrb[0].mxu0 %v3142
      %v4627 = vpop.f32.mrb[0].mxu0
      %v4628 = vadd.f32 %v4447, %v4627
      %v4629 = vpop.f32.mrb[0].mxu0
      %v4630 = vadd.f32 %v4449, %v4629
      %v4631 = vpop.f32.mrb[0].mxu0
      %v4632 = vadd.f32 %v4451, %v4631
      %v4633 = vpop.f32.mrb[0].mxu0
      %v4634 = vadd.f32 %v4453, %v4633
      %4635 = vmatprep.mubr.bf16.mxu0 %v3149
      %4636 = vmatmul.mubr.bf16.gmra.mrb[0].mxu0 %v3148
      %v4637 = vpop.f32.mrb[0].mxu0
      %v4638 = vadd.f32 %v4457, %v4637
      %v4639 = vpop.f32.mrb[0].mxu0
      %v4640 = vadd.f32 %v4459, %v4639
      %v4641 = vpop.f32.mrb[0].mxu0
      %v4642 = vadd.f32 %v4461, %v4641
      %v4643 = vpop.f32.mrb[0].mxu0
      %v4644 = vadd.f32 %v4463, %v4643
      %4645 = vmatprep.mubr.bf16.mxu0 %v3155
      %4646 = vmatmul.mubr.bf16.gmra.mrb[0].mxu0 %v3154
      %v4647 = vpop.f32.mrb[0].mxu0
      %v4648 = vadd.f32 %v4467, %v4647
      %v4649 = vpop.f32.mrb[0].mxu0
      %v4650 = vadd.f32 %v4469, %v4649
      %v4651 = vpop.f32.mrb[0].mxu0
      %v4652 = vadd.f32 %v4471, %v4651
      %v4653 = vpop.f32.mrb[0].mxu0
      %v4654 = vadd.f32 %v4473, %v4653
      %4655 = vmatprep.mubr.bf16.mxu0 %v3161
      %4656 = vmatmul.mubr.bf16.gmra.mrb[0].mxu0 %v3160
      %v4657 = vpop.f32.mrb[0].mxu0
      %v4658 = vadd.f32 %v4477, %v4657
      %v4659 = vpop.f32.mrb[0].mxu0
      %v4660 = vadd.f32 %v4479, %v4659
      %v4661 = vpop.f32.mrb[0].mxu0
      %v4662 = vadd.f32 %v4481, %v4661
      %v4663 = vpop.f32.mrb[0].mxu0
      %v4664 = vadd.f32 %v4483, %v4663
      %4665 = vmatprep.mubr.bf16.mxu0 %v3167
      %4666 = vmatmul.mubr.bf16.gmra.mrb[0].mxu0 %v3166
      %v4667 = vpop.f32.mrb[0].mxu0
      %v4668 = vadd.f32 %v4487, %v4667
      %v4669 = vpop.f32.mrb[0].mxu0
      %v4670 = vadd.f32 %v4489, %v4669
      %v4671 = vpop.f32.mrb[0].mxu0
      %v4672 = vadd.f32 %v4491, %v4671
      %v4673 = vpop.f32.mrb[0].mxu0
      %v4674 = vadd.f32 %v4493, %v4673
      %4675 = vmatprep.mubr.bf16.mxu0 %v3173
      %4676 = vmatmul.mubr.bf16.gmra.mrb[0].mxu0 %v3172
      %v4677 = vpop.f32.mrb[0].mxu0
      %v4678 = vadd.f32 %v4497, %v4677
      %v4679 = vpop.f32.mrb[0].mxu0
      %v4680 = vadd.f32 %v4499, %v4679
      %v4681 = vpop.f32.mrb[0].mxu0
      %v4682 = vadd.f32 %v4501, %v4681
      %v4683 = vpop.f32.mrb[0].mxu0
      %v4684 = vadd.f32 %v4503, %v4683
      %4685 = vmatprep.mubr.bf16.mxu0 %v3179
      %4686 = vmatmul.mubr.bf16.gmra.mrb[0].mxu0 %v3178
      %v4687 = vpop.f32.mrb[0].mxu0
      %v4688 = vadd.f32 %v4507, %v4687
      %v4689 = vpop.f32.mrb[0].mxu0
      %v4690 = vadd.f32 %v4509, %v4689
      %v4691 = vpop.f32.mrb[0].mxu0
      %v4692 = vadd.f32 %v4511, %v4691
      %v4693 = vpop.f32.mrb[0].mxu0
      %v4694 = vadd.f32 %v4513, %v4693
      %4695 = vmatprep.mubr.bf16.mxu0 %v3185
      %4696 = vmatmul.mubr.bf16.gmra.mrb[0].mxu0 %v3184
      %v4697 = vpop.f32.mrb[0].mxu0
      %v4698 = vadd.f32 %v4517, %v4697
      %v4699 = vpop.f32.mrb[0].mxu0
      %v4700 = vadd.f32 %v4519, %v4699
      %v4701 = vpop.f32.mrb[0].mxu0
      %v4702 = vpop.f32.mrb[0].mxu0
      %4703 = vdwg.mxu0
      %4704 = vmatprep.subr.bf16.mxu0 %v2845
      %4705 = vmatpush1.bf16.msra.mxu0 %v2844
      %4706 = vmatprep.subr.bf16.mxu0 %v2852
      %4707 = vmatpush1.bf16.msra.mxu0 %v2851
      %4708 = vmatprep.subr.bf16.mxu0 %v2859
      %4709 = vmatpush1.bf16.msra.mxu0 %v2858
      %4710 = vmatprep.subr.bf16.mxu0 %v2866
      %4711 = vmatpush1.bf16.msra.mxu0 %v2865
      %4712 = vmatprep.subr.bf16.mxu0 %v2873
      %4713 = vmatpush1.bf16.msra.mxu0 %v2872
      %4714 = vmatprep.subr.bf16.mxu0 %v2880
      %4715 = vmatpush1.bf16.msra.mxu0 %v2879
      %4716 = vmatprep.subr.bf16.mxu0 %v2887
      %4717 = vmatpush1.bf16.msra.mxu0 %v2886
      %4718 = vmatprep.subr.bf16.mxu0 %v2894
      %4719 = vmatpush1.bf16.msra.mxu0 %v2893
      %4720 = vmatprep.subr.bf16.mxu0 %v2901
      %4721 = vmatpush1.bf16.msra.mxu0 %v2900
      %4722 = vmatprep.subr.bf16.mxu0 %v2908
      %4723 = vmatpush1.bf16.msra.mxu0 %v2907
      %4724 = vmatprep.subr.bf16.mxu0 %v2915
      %4725 = vmatpush1.bf16.msra.mxu0 %v2914
      %4726 = vmatprep.subr.bf16.mxu0 %v3251
      %4727 = vmatpush1.bf16.msra.mxu0 %v3248
      %4728 = vmatprep.subr.bf16.mxu0 0
      %4729 = vmatpush1.bf16.msra.mxu0 0
      %4730 = vmatprep.subr.bf16.mxu0 0
      %4731 = vmatpush1.bf16.msra.mxu0 0
      %4732 = vmatprep.subr.bf16.mxu0 0
      %4733 = vmatpush1.bf16.msra.mxu0 0
      %4734 = vmatprep.subr.bf16.mxu0 0
      %4735 = vmatpush1.bf16.msra.mxu0 0
      %4736 = vmatprep.mubr.bf16.mxu0 %v3190
      %4737 = vmatmul.mubr.bf16.gmra.mrb[0].mxu0 %v3102
      %v4738 = vpop.f32.mrb[0].mxu0
      %v4739 = vadd.f32 %v4558, %v4738
      %v4740 = vpop.f32.mrb[0].mxu0
      %v4741 = vadd.f32 %v4560, %v4740
      %v4742 = vpop.f32.mrb[0].mxu0
      %v4743 = vadd.f32 %v4562, %v4742
      %v4744 = vpop.f32.mrb[0].mxu0
      %v4745 = vadd.f32 %v4564, %v4744
      %4746 = vmatprep.mubr.bf16.mxu0 %v3193
      %4747 = vmatmul.mubr.bf16.gmra.mrb[0].mxu0 %v3108
      %v4748 = vpop.f32.mrb[0].mxu0
      %v4749 = vadd.f32 %v4568, %v4748
      %v4750 = vpop.f32.mrb[0].mxu0
      %v4751 = vadd.f32 %v4570, %v4750
      %v4752 = vpop.f32.mrb[0].mxu0
      %v4753 = vadd.f32 %v4572, %v4752
      %v4754 = vpop.f32.mrb[0].mxu0
      %v4755 = vadd.f32 %v4574, %v4754
      %4756 = vmatprep.mubr.bf16.mxu0 %v3196
      %4757 = vmatmul.mubr.bf16.gmra.mrb[0].mxu0 %v3114
      %v4758 = vpop.f32.mrb[0].mxu0
      %v4759 = vadd.f32 %v4578, %v4758
      %v4760 = vpop.f32.mrb[0].mxu0
      %v4761 = vadd.f32 %v4580, %v4760
      %v4762 = vpop.f32.mrb[0].mxu0
      %v4763 = vadd.f32 %v4582, %v4762
      %v4764 = vpop.f32.mrb[0].mxu0
      %v4765 = vadd.f32 %v4584, %v4764
      %4766 = vmatprep.mubr.bf16.mxu0 %v3199
      %4767 = vmatmul.mubr.bf16.gmra.mrb[0].mxu0 %v3120
      %v4768 = vpop.f32.mrb[0].mxu0
      %v4769 = vadd.f32 %v4588, %v4768
      %v4770 = vpop.f32.mrb[0].mxu0
      %v4771 = vadd.f32 %v4590, %v4770
      %v4772 = vpop.f32.mrb[0].mxu0
      %v4773 = vadd.f32 %v4592, %v4772
      %v4774 = vpop.f32.mrb[0].mxu0
      %v4775 = vadd.f32 %v4594, %v4774
      %4776 = vmatprep.mubr.bf16.mxu0 %v3202
      %4777 = vmatmul.mubr.bf16.gmra.mrb[0].mxu0 %v3126
      %v4778 = vpop.f32.mrb[0].mxu0
      %v4779 = vadd.f32 %v4598, %v4778
      %v4780 = vpop.f32.mrb[0].mxu0
      %v4781 = vadd.f32 %v4600, %v4780
      %v4782 = vpop.f32.mrb[0].mxu0
      %v4783 = vadd.f32 %v4602, %v4782
      %v4784 = vpop.f32.mrb[0].mxu0
      %v4785 = vadd.f32 %v4604, %v4784
      %4786 = vmatprep.mubr.bf16.mxu0 %v3205
      %4787 = vmatmul.mubr.bf16.gmra.mrb[0].mxu0 %v3132
      %v4788 = vpop.f32.mrb[0].mxu0
      %v4789 = vadd.f32 %v4608, %v4788
      %v4790 = vpop.f32.mrb[0].mxu0
      %v4791 = vadd.f32 %v4610, %v4790
      %v4792 = vpop.f32.mrb[0].mxu0
      %v4793 = vadd.f32 %v4612, %v4792
      %v4794 = vpop.f32.mrb[0].mxu0
      %v4795 = vadd.f32 %v4614, %v4794
      %4796 = vmatprep.mubr.bf16.mxu0 %v3208
      %4797 = vmatmul.mubr.bf16.gmra.mrb[0].mxu0 %v3138
      %v4798 = vpop.f32.mrb[0].mxu0
      %v4799 = vadd.f32 %v4618, %v4798
      %v4800 = vpop.f32.mrb[0].mxu0
      %v4801 = vadd.f32 %v4620, %v4800
      %v4802 = vpop.f32.mrb[0].mxu0
      %v4803 = vadd.f32 %v4622, %v4802
      %v4804 = vpop.f32.mrb[0].mxu0
      %v4805 = vadd.f32 %v4624, %v4804
      %4806 = vmatprep.mubr.bf16.mxu0 %v3211
      %4807 = vmatmul.mubr.bf16.gmra.mrb[0].mxu0 %v3144
      %v4808 = vpop.f32.mrb[0].mxu0
      %v4809 = vadd.f32 %v4628, %v4808
      %v4810 = vpop.f32.mrb[0].mxu0
      %v4811 = vadd.f32 %v4630, %v4810
      %v4812 = vpop.f32.mrb[0].mxu0
      %v4813 = vadd.f32 %v4632, %v4812
      %v4814 = vpop.f32.mrb[0].mxu0
      %v4815 = vadd.f32 %v4634, %v4814
      %4816 = vmatprep.mubr.bf16.mxu0 %v3214
      %4817 = vmatmul.mubr.bf16.gmra.mrb[0].mxu0 %v3150
      %v4818 = vpop.f32.mrb[0].mxu0
      %v4819 = vadd.f32 %v4638, %v4818
      %v4820 = vpop.f32.mrb[0].mxu0
      %v4821 = vadd.f32 %v4640, %v4820
      %v4822 = vpop.f32.mrb[0].mxu0
      %v4823 = vadd.f32 %v4642, %v4822
      %v4824 = vpop.f32.mrb[0].mxu0
      %v4825 = vadd.f32 %v4644, %v4824
      %4826 = vmatprep.mubr.bf16.mxu0 %v3217
      %4827 = vmatmul.mubr.bf16.gmra.mrb[0].mxu0 %v3156
      %v4828 = vpop.f32.mrb[0].mxu0
      %v4829 = vadd.f32 %v4648, %v4828
      %v4830 = vpop.f32.mrb[0].mxu0
      %v4831 = vadd.f32 %v4650, %v4830
      %v4832 = vpop.f32.mrb[0].mxu0
      %v4833 = vadd.f32 %v4652, %v4832
      %v4834 = vpop.f32.mrb[0].mxu0
      %v4835 = vadd.f32 %v4654, %v4834
      %4836 = vmatprep.mubr.bf16.mxu0 %v3220
      %4837 = vmatmul.mubr.bf16.gmra.mrb[0].mxu0 %v3162
      %v4838 = vpop.f32.mrb[0].mxu0
      %v4839 = vadd.f32 %v4658, %v4838
      %v4840 = vpop.f32.mrb[0].mxu0
      %v4841 = vadd.f32 %v4660, %v4840
      %v4842 = vpop.f32.mrb[0].mxu0
      %v4843 = vadd.f32 %v4662, %v4842
      %v4844 = vpop.f32.mrb[0].mxu0
      %v4845 = vadd.f32 %v4664, %v4844
      %4846 = vmatprep.mubr.bf16.mxu0 %v3223
      %4847 = vmatmul.mubr.bf16.gmra.mrb[0].mxu0 %v3168
      %v4848 = vpop.f32.mrb[0].mxu0
      %v4849 = vadd.f32 %v4668, %v4848
      %v4850 = vpop.f32.mrb[0].mxu0
      %v4851 = vadd.f32 %v4670, %v4850
      %v4852 = vpop.f32.mrb[0].mxu0
      %v4853 = vadd.f32 %v4672, %v4852
      %v4854 = vpop.f32.mrb[0].mxu0
      %v4855 = vadd.f32 %v4674, %v4854
      %4856 = vmatprep.mubr.bf16.mxu0 %v3226
      %4857 = vmatmul.mubr.bf16.gmra.mrb[0].mxu0 %v3174
      %v4858 = vpop.f32.mrb[0].mxu0
      %v4859 = vadd.f32 %v4678, %v4858
      %v4860 = vpop.f32.mrb[0].mxu0
      %v4861 = vadd.f32 %v4680, %v4860
      %v4862 = vpop.f32.mrb[0].mxu0
      %v4863 = vadd.f32 %v4682, %v4862
      %v4864 = vpop.f32.mrb[0].mxu0
      %v4865 = vadd.f32 %v4684, %v4864
      %4866 = vmatprep.mubr.bf16.mxu0 %v3229
      %4867 = vmatmul.mubr.bf16.gmra.mrb[0].mxu0 %v3180
      %v4868 = vpop.f32.mrb[0].mxu0
      %v4869 = vadd.f32 %v4688, %v4868
      %v4870 = vpop.f32.mrb[0].mxu0
      %v4871 = vadd.f32 %v4690, %v4870
      %v4872 = vpop.f32.mrb[0].mxu0
      %v4873 = vadd.f32 %v4692, %v4872
      %v4874 = vpop.f32.mrb[0].mxu0
      %v4875 = vadd.f32 %v4694, %v4874
      %4876 = vmatprep.mubr.bf16.mxu0 %v3232
      %4877 = vmatmul.mubr.bf16.gmra.mrb[0].mxu0 %v3186
      %v4878 = vpop.f32.mrb[0].mxu0
      %v4879 = vadd.f32 %v4698, %v4878
      %v4880 = vpop.f32.mrb[0].mxu0
      %v4881 = vadd.f32 %v4700, %v4880
      %v4882 = vpop.f32.mrb[0].mxu0
      %v4883 = vpop.f32.mrb[0].mxu0
      %4884 = vdwg.mxu0
      %4885 = vmatprep.subr.bf16.mxu0 0
      %4886 = vmatpush1.bf16.msra.mxu0 %v2622
      %4887 = vmatprep.subr.bf16.mxu0 0
      %4888 = vmatpush1.bf16.msra.mxu0 %v2629
      %4889 = vmatprep.subr.bf16.mxu0 0
      %4890 = vmatpush1.bf16.msra.mxu0 %v2636
      %4891 = vmatprep.subr.bf16.mxu0 0
      %4892 = vmatpush1.bf16.msra.mxu0 %v2643
      %4893 = vmatprep.subr.bf16.mxu0 0
      %4894 = vmatpush1.bf16.msra.mxu0 %v2650
      %4895 = vmatprep.subr.bf16.mxu0 0
      %4896 = vmatpush1.bf16.msra.mxu0 %v2657
      %4897 = vmatprep.subr.bf16.mxu0 0
      %4898 = vmatpush1.bf16.msra.mxu0 %v2664
      %4899 = vmatprep.subr.bf16.mxu0 0
      %4900 = vmatpush1.bf16.msra.mxu0 %v2671
      %4901 = vmatprep.subr.bf16.mxu0 0
      %4902 = vmatpush1.bf16.msra.mxu0 %v2678
      %4903 = vmatprep.subr.bf16.mxu0 0
      %4904 = vmatpush1.bf16.msra.mxu0 %v2685
      %4905 = vmatprep.subr.bf16.mxu0 0
      %4906 = vmatpush1.bf16.msra.mxu0 %v2692
      %4907 = vmatprep.subr.bf16.mxu0 0
      %4908 = vmatpush1.bf16.msra.mxu0 %v2699
      %4909 = vmatprep.subr.bf16.mxu0 0
      %4910 = vmatpush1.bf16.msra.mxu0 %v2706
      %4911 = vmatprep.subr.bf16.mxu0 0
      %4912 = vmatpush1.bf16.msra.mxu0 %v2713
      %4913 = vmatprep.subr.bf16.mxu0 0
      %4914 = vmatpush1.bf16.msra.mxu0 %v2720
      %4915 = vmatprep.subr.bf16.mxu0 0
      %4916 = vmatpush1.bf16.msra.mxu0 %v2727
      %4917 = vmatprep.mubr.bf16.mxu0 %v3099
      %4918 = vmatmul.mubr.bf16.gmra.mrb[0].mxu0 %v3098
      %v4919 = vpop.f32.mrb[0].mxu0
      %v4920 = vadd.f32 0.0, %v4919
      %v4921 = vpop.f32.mrb[0].mxu0
      %v4922 = vpop.f32.mrb[0].mxu0
      %v4923 = vadd.f32 0.0, %v4922
      %v4924 = vpop.f32.mrb[0].mxu0
      %4925 = vmatprep.mubr.bf16.mxu0 %v3105
      %4926 = vmatmul.mubr.bf16.gmra.mrb[0].mxu0 %v3104
      %v4927 = vpop.f32.mrb[0].mxu0
      %v4928 = vadd.f32 0.0, %v4927
      %v4929 = vpop.f32.mrb[0].mxu0
      %v4930 = vpop.f32.mrb[0].mxu0
      %v4931 = vadd.f32 0.0, %v4930
      %v4932 = vpop.f32.mrb[0].mxu0
      %4933 = vmatprep.mubr.bf16.mxu0 %v3111
      %4934 = vmatmul.mubr.bf16.gmra.mrb[0].mxu0 %v3110
      %v4935 = vpop.f32.mrb[0].mxu0
      %v4936 = vadd.f32 0.0, %v4935
      %v4937 = vpop.f32.mrb[0].mxu0
      %v4938 = vpop.f32.mrb[0].mxu0
      %v4939 = vadd.f32 0.0, %v4938
      %v4940 = vpop.f32.mrb[0].mxu0
      %4941 = vmatprep.mubr.bf16.mxu0 %v3117
      %4942 = vmatmul.mubr.bf16.gmra.mrb[0].mxu0 %v3116
      %v4943 = vpop.f32.mrb[0].mxu0
      %v4944 = vadd.f32 0.0, %v4943
      %v4945 = vpop.f32.mrb[0].mxu0
      %v4946 = vpop.f32.mrb[0].mxu0
      %v4947 = vadd.f32 0.0, %v4946
      %v4948 = vpop.f32.mrb[0].mxu0
      %4949 = vmatprep.mubr.bf16.mxu0 %v3123
      %4950 = vmatmul.mubr.bf16.gmra.mrb[0].mxu0 %v3122
      %v4951 = vpop.f32.mrb[0].mxu0
      %v4952 = vadd.f32 0.0, %v4951
      %v4953 = vpop.f32.mrb[0].mxu0
      %v4954 = vpop.f32.mrb[0].mxu0
      %v4955 = vadd.f32 0.0, %v4954
      %v4956 = vpop.f32.mrb[0].mxu0
      %4957 = vmatprep.mubr.bf16.mxu0 %v3129
      %4958 = vmatmul.mubr.bf16.gmra.mrb[0].mxu0 %v3128
      %v4959 = vpop.f32.mrb[0].mxu0
      %v4960 = vadd.f32 0.0, %v4959
      %v4961 = vpop.f32.mrb[0].mxu0
      %v4962 = vpop.f32.mrb[0].mxu0
      %v4963 = vadd.f32 0.0, %v4962
      %v4964 = vpop.f32.mrb[0].mxu0
      %4965 = vmatprep.mubr.bf16.mxu0 %v3135
      %4966 = vmatmul.mubr.bf16.gmra.mrb[0].mxu0 %v3134
      %v4967 = vpop.f32.mrb[0].mxu0
      %v4968 = vadd.f32 0.0, %v4967
      %v4969 = vpop.f32.mrb[0].mxu0
      %v4970 = vpop.f32.mrb[0].mxu0
      %v4971 = vadd.f32 0.0, %v4970
      %v4972 = vpop.f32.mrb[0].mxu0
      %4973 = vmatprep.mubr.bf16.mxu0 %v3141
      %4974 = vmatmul.mubr.bf16.gmra.mrb[0].mxu0 %v3140
      %v4975 = vpop.f32.mrb[0].mxu0
      %v4976 = vadd.f32 0.0, %v4975
      %v4977 = vpop.f32.mrb[0].mxu0
      %v4978 = vpop.f32.mrb[0].mxu0
      %v4979 = vadd.f32 0.0, %v4978
      %v4980 = vpop.f32.mrb[0].mxu0
      %4981 = vmatprep.mubr.bf16.mxu0 %v3147
      %4982 = vmatmul.mubr.bf16.gmra.mrb[0].mxu0 %v3146
      %v4983 = vpop.f32.mrb[0].mxu0
      %v4984 = vadd.f32 0.0, %v4983
      %v4985 = vpop.f32.mrb[0].mxu0
      %v4986 = vpop.f32.mrb[0].mxu0
      %v4987 = vadd.f32 0.0, %v4986
      %v4988 = vpop.f32.mrb[0].mxu0
      %4989 = vmatprep.mubr.bf16.mxu0 %v3153
      %4990 = vmatmul.mubr.bf16.gmra.mrb[0].mxu0 %v3152
      %v4991 = vpop.f32.mrb[0].mxu0
      %v4992 = vadd.f32 0.0, %v4991
      %v4993 = vpop.f32.mrb[0].mxu0
      %v4994 = vpop.f32.mrb[0].mxu0
      %v4995 = vadd.f32 0.0, %v4994
      %v4996 = vpop.f32.mrb[0].mxu0
      %4997 = vmatprep.mubr.bf16.mxu0 %v3159
      %4998 = vmatmul.mubr.bf16.gmra.mrb[0].mxu0 %v3158
      %v4999 = vpop.f32.mrb[0].mxu0
      %v5000 = vadd.f32 0.0, %v4999
      %v5001 = vpop.f32.mrb[0].mxu0
      %v5002 = vpop.f32.mrb[0].mxu0
      %v5003 = vadd.f32 0.0, %v5002
      %v5004 = vpop.f32.mrb[0].mxu0
      %5005 = vmatprep.mubr.bf16.mxu0 %v3165
      %5006 = vmatmul.mubr.bf16.gmra.mrb[0].mxu0 %v3164
      %v5007 = vpop.f32.mrb[0].mxu0
      %v5008 = vadd.f32 0.0, %v5007
      %v5009 = vpop.f32.mrb[0].mxu0
      %v5010 = vpop.f32.mrb[0].mxu0
      %v5011 = vadd.f32 0.0, %v5010
      %v5012 = vpop.f32.mrb[0].mxu0
      %5013 = vmatprep.mubr.bf16.mxu0 %v3171
      %5014 = vmatmul.mubr.bf16.gmra.mrb[0].mxu0 %v3170
      %v5015 = vpop.f32.mrb[0].mxu0
      %v5016 = vadd.f32 0.0, %v5015
      %v5017 = vpop.f32.mrb[0].mxu0
      %v5018 = vpop.f32.mrb[0].mxu0
      %v5019 = vadd.f32 0.0, %v5018
      %v5020 = vpop.f32.mrb[0].mxu0
      %5021 = vmatprep.mubr.bf16.mxu0 %v3177
      %5022 = vmatmul.mubr.bf16.gmra.mrb[0].mxu0 %v3176
      %v5023 = vpop.f32.mrb[0].mxu0
      %v5024 = vadd.f32 0.0, %v5023
      %v5025 = vpop.f32.mrb[0].mxu0
      %v5026 = vpop.f32.mrb[0].mxu0
      %v5027 = vadd.f32 0.0, %v5026
      %v5028 = vpop.f32.mrb[0].mxu0
      %5029 = vmatprep.mubr.bf16.mxu0 %v3183
      %5030 = vmatmul.mubr.bf16.gmra.mrb[0].mxu0 %v3182
      %v5031 = vpop.f32.mrb[0].mxu0
      %v5032 = vadd.f32 0.0, %v5031
      %v5033 = vpop.f32.mrb[0].mxu0
      %v5034 = vpop.f32.mrb[0].mxu0
      %v5035 = vpop.f32.mrb[0].mxu0
      %5036 = vdwg.mxu0
      %5037 = vmatprep.subr.bf16.mxu0 0
      %5038 = vmatpush1.bf16.msra.mxu0 %v2734
      %5039 = vmatprep.subr.bf16.mxu0 0
      %5040 = vmatpush1.bf16.msra.mxu0 %v2741
      %5041 = vmatprep.subr.bf16.mxu0 0
      %5042 = vmatpush1.bf16.msra.mxu0 %v2748
      %5043 = vmatprep.subr.bf16.mxu0 0
      %5044 = vmatpush1.bf16.msra.mxu0 %v2755
      %5045 = vmatprep.subr.bf16.mxu0 0
      %5046 = vmatpush1.bf16.msra.mxu0 %v2762
      %5047 = vmatprep.subr.bf16.mxu0 0
      %5048 = vmatpush1.bf16.msra.mxu0 %v2769
      %5049 = vmatprep.subr.bf16.mxu0 0
      %5050 = vmatpush1.bf16.msra.mxu0 %v2776
      %5051 = vmatprep.subr.bf16.mxu0 0
      %5052 = vmatpush1.bf16.msra.mxu0 %v2783
      %5053 = vmatprep.subr.bf16.mxu0 0
      %5054 = vmatpush1.bf16.msra.mxu0 %v2790
      %5055 = vmatprep.subr.bf16.mxu0 0
      %5056 = vmatpush1.bf16.msra.mxu0 %v2797
      %5057 = vmatprep.subr.bf16.mxu0 0
      %5058 = vmatpush1.bf16.msra.mxu0 %v2804
      %5059 = vmatprep.subr.bf16.mxu0 0
      %5060 = vmatpush1.bf16.msra.mxu0 %v2811
      %5061 = vmatprep.subr.bf16.mxu0 0
      %5062 = vmatpush1.bf16.msra.mxu0 %v2818
      %5063 = vmatprep.subr.bf16.mxu0 0
      %5064 = vmatpush1.bf16.msra.mxu0 %v2825
      %5065 = vmatprep.subr.bf16.mxu0 0
      %5066 = vmatpush1.bf16.msra.mxu0 %v2832
      %5067 = vmatprep.subr.bf16.mxu0 0
      %5068 = vmatpush1.bf16.msra.mxu0 %v2839
      %5069 = vmatprep.mubr.bf16.mxu0 %v3101
      %5070 = vmatmul.mubr.bf16.gmra.mrb[0].mxu0 %v3100
      %v5071 = vpop.f32.mrb[0].mxu0
      %v5072 = vadd.f32 %v4920, %v5071
      %v5073 = vpop.f32.mrb[0].mxu0
      %v5074 = vpop.f32.mrb[0].mxu0
      %v5075 = vadd.f32 %v4923, %v5074
      %v5076 = vpop.f32.mrb[0].mxu0
      %5077 = vmatprep.mubr.bf16.mxu0 %v3107
      %5078 = vmatmul.mubr.bf16.gmra.mrb[0].mxu0 %v3106
      %v5079 = vpop.f32.mrb[0].mxu0
      %v5080 = vadd.f32 %v4928, %v5079
      %v5081 = vpop.f32.mrb[0].mxu0
      %v5082 = vpop.f32.mrb[0].mxu0
      %v5083 = vadd.f32 %v4931, %v5082
      %v5084 = vpop.f32.mrb[0].mxu0
      %5085 = vmatprep.mubr.bf16.mxu0 %v3113
      %5086 = vmatmul.mubr.bf16.gmra.mrb[0].mxu0 %v3112
      %v5087 = vpop.f32.mrb[0].mxu0
      %v5088 = vadd.f32 %v4936, %v5087
      %v5089 = vpop.f32.mrb[0].mxu0
      %v5090 = vpop.f32.mrb[0].mxu0
      %v5091 = vadd.f32 %v4939, %v5090
      %v5092 = vpop.f32.mrb[0].mxu0
      %5093 = vmatprep.mubr.bf16.mxu0 %v3119
      %5094 = vmatmul.mubr.bf16.gmra.mrb[0].mxu0 %v3118
      %v5095 = vpop.f32.mrb[0].mxu0
      %v5096 = vadd.f32 %v4944, %v5095
      %v5097 = vpop.f32.mrb[0].mxu0
      %v5098 = vpop.f32.mrb[0].mxu0
      %v5099 = vadd.f32 %v4947, %v5098
      %v5100 = vpop.f32.mrb[0].mxu0
      %5101 = vmatprep.mubr.bf16.mxu0 %v3125
      %5102 = vmatmul.mubr.bf16.gmra.mrb[0].mxu0 %v3124
      %v5103 = vpop.f32.mrb[0].mxu0
      %v5104 = vadd.f32 %v4952, %v5103
      %v5105 = vpop.f32.mrb[0].mxu0
      %v5106 = vpop.f32.mrb[0].mxu0
      %v5107 = vadd.f32 %v4955, %v5106
      %v5108 = vpop.f32.mrb[0].mxu0
      %5109 = vmatprep.mubr.bf16.mxu0 %v3131
      %5110 = vmatmul.mubr.bf16.gmra.mrb[0].mxu0 %v3130
      %v5111 = vpop.f32.mrb[0].mxu0
      %v5112 = vadd.f32 %v4960, %v5111
      %v5113 = vpop.f32.mrb[0].mxu0
      %v5114 = vpop.f32.mrb[0].mxu0
      %v5115 = vadd.f32 %v4963, %v5114
      %v5116 = vpop.f32.mrb[0].mxu0
      %5117 = vmatprep.mubr.bf16.mxu0 %v3137
      %5118 = vmatmul.mubr.bf16.gmra.mrb[0].mxu0 %v3136
      %v5119 = vpop.f32.mrb[0].mxu0
      %v5120 = vadd.f32 %v4968, %v5119
      %v5121 = vpop.f32.mrb[0].mxu0
      %v5122 = vpop.f32.mrb[0].mxu0
      %v5123 = vadd.f32 %v4971, %v5122
      %v5124 = vpop.f32.mrb[0].mxu0
      %5125 = vmatprep.mubr.bf16.mxu0 %v3143
      %5126 = vmatmul.mubr.bf16.gmra.mrb[0].mxu0 %v3142
      %v5127 = vpop.f32.mrb[0].mxu0
      %v5128 = vadd.f32 %v4976, %v5127
      %v5129 = vpop.f32.mrb[0].mxu0
      %v5130 = vpop.f32.mrb[0].mxu0
      %v5131 = vadd.f32 %v4979, %v5130
      %v5132 = vpop.f32.mrb[0].mxu0
      %5133 = vmatprep.mubr.bf16.mxu0 %v3149
      %5134 = vmatmul.mubr.bf16.gmra.mrb[0].mxu0 %v3148
      %v5135 = vpop.f32.mrb[0].mxu0
      %v5136 = vadd.f32 %v4984, %v5135
      %v5137 = vpop.f32.mrb[0].mxu0
      %v5138 = vpop.f32.mrb[0].mxu0
      %v5139 = vadd.f32 %v4987, %v5138
      %v5140 = vpop.f32.mrb[0].mxu0
      %5141 = vmatprep.mubr.bf16.mxu0 %v3155
      %5142 = vmatmul.mubr.bf16.gmra.mrb[0].mxu0 %v3154
      %v5143 = vpop.f32.mrb[0].mxu0
      %v5144 = vadd.f32 %v4992, %v5143
      %v5145 = vpop.f32.mrb[0].mxu0
      %v5146 = vpop.f32.mrb[0].mxu0
      %v5147 = vadd.f32 %v4995, %v5146
      %v5148 = vpop.f32.mrb[0].mxu0
      %5149 = vmatprep.mubr.bf16.mxu0 %v3161
      %5150 = vmatmul.mubr.bf16.gmra.mrb[0].mxu0 %v3160
      %v5151 = vpop.f32.mrb[0].mxu0
      %v5152 = vadd.f32 %v5000, %v5151
      %v5153 = vpop.f32.mrb[0].mxu0
      %v5154 = vpop.f32.mrb[0].mxu0
      %v5155 = vadd.f32 %v5003, %v5154
      %v5156 = vpop.f32.mrb[0].mxu0
      %5157 = vmatprep.mubr.bf16.mxu0 %v3167
      %5158 = vmatmul.mubr.bf16.gmra.mrb[0].mxu0 %v3166
      %v5159 = vpop.f32.mrb[0].mxu0
      %v5160 = vadd.f32 %v5008, %v5159
      %v5161 = vpop.f32.mrb[0].mxu0
      %v5162 = vpop.f32.mrb[0].mxu0
      %v5163 = vadd.f32 %v5011, %v5162
      %v5164 = vpop.f32.mrb[0].mxu0
      %5165 = vmatprep.mubr.bf16.mxu0 %v3173
      %5166 = vmatmul.mubr.bf16.gmra.mrb[0].mxu0 %v3172
      %v5167 = vpop.f32.mrb[0].mxu0
      %v5168 = vadd.f32 %v5016, %v5167
      %v5169 = vpop.f32.mrb[0].mxu0
      %v5170 = vpop.f32.mrb[0].mxu0
      %v5171 = vadd.f32 %v5019, %v5170
      %v5172 = vpop.f32.mrb[0].mxu0
      %5173 = vmatprep.mubr.bf16.mxu0 %v3179
      %5174 = vmatmul.mubr.bf16.gmra.mrb[0].mxu0 %v3178
      %v5175 = vpop.f32.mrb[0].mxu0
      %v5176 = vadd.f32 %v5024, %v5175
      %v5177 = vpop.f32.mrb[0].mxu0
      %v5178 = vpop.f32.mrb[0].mxu0
      %v5179 = vadd.f32 %v5027, %v5178
      %v5180 = vpop.f32.mrb[0].mxu0
      %5181 = vmatprep.mubr.bf16.mxu0 %v3185
      %5182 = vmatmul.mubr.bf16.gmra.mrb[0].mxu0 %v3184
      %v5183 = vpop.f32.mrb[0].mxu0
      %v5184 = vadd.f32 %v5032, %v5183
      %v5185 = vpop.f32.mrb[0].mxu0
      %v5186 = vpop.f32.mrb[0].mxu0
      %v5187 = vpop.f32.mrb[0].mxu0
      %5188 = vdwg.mxu0
      %5189 = vmatprep.subr.bf16.mxu0 0
      %5190 = vmatpush1.bf16.msra.mxu0 %v2846
      %5191 = vmatprep.subr.bf16.mxu0 0
      %5192 = vmatpush1.bf16.msra.mxu0 %v2853
      %5193 = vmatprep.subr.bf16.mxu0 0
      %5194 = vmatpush1.bf16.msra.mxu0 %v2860
      %5195 = vmatprep.subr.bf16.mxu0 0
      %5196 = vmatpush1.bf16.msra.mxu0 %v2867
      %5197 = vmatprep.subr.bf16.mxu0 0
      %5198 = vmatpush1.bf16.msra.mxu0 %v2874
      %5199 = vmatprep.subr.bf16.mxu0 0
      %5200 = vmatpush1.bf16.msra.mxu0 %v2881
      %5201 = vmatprep.subr.bf16.mxu0 0
      %5202 = vmatpush1.bf16.msra.mxu0 %v2888
      %5203 = vmatprep.subr.bf16.mxu0 0
      %5204 = vmatpush1.bf16.msra.mxu0 %v2895
      %5205 = vmatprep.subr.bf16.mxu0 0
      %5206 = vmatpush1.bf16.msra.mxu0 %v2902
      %5207 = vmatprep.subr.bf16.mxu0 0
      %5208 = vmatpush1.bf16.msra.mxu0 %v2909
      %5209 = vmatprep.subr.bf16.mxu0 0
      %5210 = vmatpush1.bf16.msra.mxu0 %v2916
      %5211 = vmatprep.subr.bf16.mxu0 0
      %5212 = vmatpush1.bf16.msra.mxu0 %v3254
      %5213 = vmatprep.subr.bf16.mxu0 0
      %5214 = vmatpush1.bf16.msra.mxu0 0
      %5215 = vmatprep.subr.bf16.mxu0 0
      %5216 = vmatpush1.bf16.msra.mxu0 0
      %5217 = vmatprep.subr.bf16.mxu0 0
      %5218 = vmatpush1.bf16.msra.mxu0 0
      %5219 = vmatprep.subr.bf16.mxu0 0
      %5220 = vmatpush1.bf16.msra.mxu0 0
      %5221 = vmatprep.mubr.bf16.mxu0 %v3190
      %5222 = vmatmul.mubr.bf16.gmra.mrb[0].mxu0 %v3102
      %v5223 = vpop.f32.mrb[0].mxu0
      %v5224 = vadd.f32 %v5072, %v5223
      %v5225 = vpop.f32.mrb[0].mxu0
      %v5226 = vpop.f32.mrb[0].mxu0
      %v5227 = vadd.f32 %v5075, %v5226
      %v5228 = vpop.f32.mrb[0].mxu0
      %5229 = vmatprep.mubr.bf16.mxu0 %v3193
      %5230 = vmatmul.mubr.bf16.gmra.mrb[0].mxu0 %v3108
      %v5231 = vpop.f32.mrb[0].mxu0
      %v5232 = vadd.f32 %v5080, %v5231
      %v5233 = vpop.f32.mrb[0].mxu0
      %v5234 = vpop.f32.mrb[0].mxu0
      %v5235 = vadd.f32 %v5083, %v5234
      %v5236 = vpop.f32.mrb[0].mxu0
      %5237 = vmatprep.mubr.bf16.mxu0 %v3196
      %5238 = vmatmul.mubr.bf16.gmra.mrb[0].mxu0 %v3114
      %v5239 = vpop.f32.mrb[0].mxu0
      %v5240 = vadd.f32 %v5088, %v5239
      %v5241 = vpop.f32.mrb[0].mxu0
      %v5242 = vpop.f32.mrb[0].mxu0
      %v5243 = vadd.f32 %v5091, %v5242
      %v5244 = vpop.f32.mrb[0].mxu0
      %5245 = vmatprep.mubr.bf16.mxu0 %v3199
      %5246 = vmatmul.mubr.bf16.gmra.mrb[0].mxu0 %v3120
      %v5247 = vpop.f32.mrb[0].mxu0
      %v5248 = vadd.f32 %v5096, %v5247
      %v5249 = vpop.f32.mrb[0].mxu0
      %v5250 = vpop.f32.mrb[0].mxu0
      %v5251 = vadd.f32 %v5099, %v5250
      %v5252 = vpop.f32.mrb[0].mxu0
      %5253 = vmatprep.mubr.bf16.mxu0 %v3202
      %5254 = vmatmul.mubr.bf16.gmra.mrb[0].mxu0 %v3126
      %v5255 = vpop.f32.mrb[0].mxu0
      %v5256 = vadd.f32 %v5104, %v5255
      %v5257 = vpop.f32.mrb[0].mxu0
      %v5258 = vpop.f32.mrb[0].mxu0
      %v5259 = vadd.f32 %v5107, %v5258
      %v5260 = vpop.f32.mrb[0].mxu0
      %5261 = vmatprep.mubr.bf16.mxu0 %v3205
      %5262 = vmatmul.mubr.bf16.gmra.mrb[0].mxu0 %v3132
      %v5263 = vpop.f32.mrb[0].mxu0
      %v5264 = vadd.f32 %v5112, %v5263
      %v5265 = vpop.f32.mrb[0].mxu0
      %v5266 = vpop.f32.mrb[0].mxu0
      %v5267 = vadd.f32 %v5115, %v5266
      %v5268 = vpop.f32.mrb[0].mxu0
      %5269 = vmatprep.mubr.bf16.mxu0 %v3208
      %5270 = vmatmul.mubr.bf16.gmra.mrb[0].mxu0 %v3138
      %v5271 = vpop.f32.mrb[0].mxu0
      %v5272 = vadd.f32 %v5120, %v5271
      %v5273 = vpop.f32.mrb[0].mxu0
      %v5274 = vpop.f32.mrb[0].mxu0
      %v5275 = vadd.f32 %v5123, %v5274
      %v5276 = vpop.f32.mrb[0].mxu0
      %5277 = vmatprep.mubr.bf16.mxu0 %v3211
      %5278 = vmatmul.mubr.bf16.gmra.mrb[0].mxu0 %v3144
      %v5279 = vpop.f32.mrb[0].mxu0
      %v5280 = vadd.f32 %v5128, %v5279
      %v5281 = vpop.f32.mrb[0].mxu0
      %v5282 = vpop.f32.mrb[0].mxu0
      %v5283 = vadd.f32 %v5131, %v5282
      %v5284 = vpop.f32.mrb[0].mxu0
      %5285 = vmatprep.mubr.bf16.mxu0 %v3214
      %5286 = vmatmul.mubr.bf16.gmra.mrb[0].mxu0 %v3150
      %v5287 = vpop.f32.mrb[0].mxu0
      %v5288 = vadd.f32 %v5136, %v5287
      %v5289 = vpop.f32.mrb[0].mxu0
      %v5290 = vpop.f32.mrb[0].mxu0
      %v5291 = vadd.f32 %v5139, %v5290
      %v5292 = vpop.f32.mrb[0].mxu0
      %5293 = vmatprep.mubr.bf16.mxu0 %v3217
      %5294 = vmatmul.mubr.bf16.gmra.mrb[0].mxu0 %v3156
      %v5295 = vpop.f32.mrb[0].mxu0
      %v5296 = vadd.f32 %v5144, %v5295
      %v5297 = vpop.f32.mrb[0].mxu0
      %v5298 = vpop.f32.mrb[0].mxu0
      %v5299 = vadd.f32 %v5147, %v5298
      %v5300 = vpop.f32.mrb[0].mxu0
      %5301 = vmatprep.mubr.bf16.mxu0 %v3220
      %5302 = vmatmul.mubr.bf16.gmra.mrb[0].mxu0 %v3162
      %v5303 = vpop.f32.mrb[0].mxu0
      %v5304 = vadd.f32 %v5152, %v5303
      %v5305 = vpop.f32.mrb[0].mxu0
      %v5306 = vpop.f32.mrb[0].mxu0
      %v5307 = vadd.f32 %v5155, %v5306
      %v5308 = vpop.f32.mrb[0].mxu0
      %5309 = vmatprep.mubr.bf16.mxu0 %v3223
      %5310 = vmatmul.mubr.bf16.gmra.mrb[0].mxu0 %v3168
      %v5311 = vpop.f32.mrb[0].mxu0
      %v5312 = vadd.f32 %v5160, %v5311
      %v5313 = vpop.f32.mrb[0].mxu0
      %v5314 = vpop.f32.mrb[0].mxu0
      %v5315 = vadd.f32 %v5163, %v5314
      %v5316 = vpop.f32.mrb[0].mxu0
      %5317 = vmatprep.mubr.bf16.mxu0 %v3226
      %5318 = vmatmul.mubr.bf16.gmra.mrb[0].mxu0 %v3174
      %v5319 = vpop.f32.mrb[0].mxu0
      %v5320 = vadd.f32 %v5168, %v5319
      %v5321 = vpop.f32.mrb[0].mxu0
      %v5322 = vpop.f32.mrb[0].mxu0
      %v5323 = vadd.f32 %v5171, %v5322
      %v5324 = vpop.f32.mrb[0].mxu0
      %5325 = vmatprep.mubr.bf16.mxu0 %v3229
      %5326 = vmatmul.mubr.bf16.gmra.mrb[0].mxu0 %v3180
      %v5327 = vpop.f32.mrb[0].mxu0
      %v5328 = vadd.f32 %v5176, %v5327
      %v5329 = vpop.f32.mrb[0].mxu0
      %v5330 = vpop.f32.mrb[0].mxu0
      %v5331 = vadd.f32 %v5179, %v5330
      %v5332 = vpop.f32.mrb[0].mxu0
      %5333 = vmatprep.mubr.bf16.mxu0 %v3232
      %5334 = vmatmul.mubr.bf16.gmra.mrb[0].mxu0 %v3186
      %v5335 = vpop.f32.mrb[0].mxu0
      %v5336 = vadd.f32 %v5184, %v5335
      %v5337 = vpop.f32.mrb[0].mxu0
      %v5338 = vpop.f32.mrb[0].mxu0
      %v5339 = vpop.f32.mrb[0].mxu0
      %5340 = vdwg.mxu0
      %5341 = vst [vmem:[%s177] sm:$0xff] %v3653
      %5342 = vst [vmem:[%s177 + $0x8] sm:$0xff] %v3655
      %5343 = vst [vmem:[%s177 + $0x10] sm:$0xff] %v4196
      %5344 = vst [vmem:[%s177 + $0x18] sm:$0xff] %v4198
      %5345 = vst [vmem:[%s177 + $0x20] sm:$0xff] %v4739
      %5346 = vst [vmem:[%s177 + $0x28] sm:$0xff] %v4741
      %vm5347 = vcmask 130048
      %5348 = vst.msk [vmem:[%s177 + $0x30] sm:$0xff] %vm5347, %v5224
      %5349 = vst [vmem:[%s177 + $0x38] sm:$0xff] %v3657
      %5350 = vst [vmem:[%s177 + $0x40] sm:$0xff] %v3659
      %5351 = vst [vmem:[%s177 + $0x48] sm:$0xff] %v4200
      %5352 = vst [vmem:[%s177 + $0x50] sm:$0xff] %v4202
      %5353 = vst [vmem:[%s177 + $0x58] sm:$0xff] %v4743
      %5354 = vst [vmem:[%s177 + $0x60] sm:$0xff] %v4745
      %5355 = vst.msk [vmem:[%s177 + $0x68] sm:$0xff] %vm5347, %v5227
      %5356 = vst [vmem:[%s177 + $0x70] sm:$0xff] %v3663
      %5357 = vst [vmem:[%s177 + $0x78] sm:$0xff] %v3665
      %5358 = vst [vmem:[%s177 + $0x80] sm:$0xff] %v4206
      %5359 = vst [vmem:[%s177 + $0x88] sm:$0xff] %v4208
      %5360 = vst [vmem:[%s177 + $0x90] sm:$0xff] %v4749
      %5361 = vst [vmem:[%s177 + $0x98] sm:$0xff] %v4751
      %5362 = vst.msk [vmem:[%s177 + $0xa0] sm:$0xff] %vm5347, %v5232
      %5363 = vst [vmem:[%s177 + $0xa8] sm:$0xff] %v3667
      %5364 = vst [vmem:[%s177 + $0xb0] sm:$0xff] %v3669
      %5365 = vst [vmem:[%s177 + $0xb8] sm:$0xff] %v4210
      %5366 = vst [vmem:[%s177 + $0xc0] sm:$0xff] %v4212
      %5367 = vst [vmem:[%s177 + $0xc8] sm:$0xff] %v4753
      %5368 = vst [vmem:[%s177 + $0xd0] sm:$0xff] %v4755
      %5369 = vst.msk [vmem:[%s177 + $0xd8] sm:$0xff] %vm5347, %v5235
      %5370 = vst [vmem:[%s177 + $0xe0] sm:$0xff] %v3673
      %5371 = vst [vmem:[%s177 + $0xe8] sm:$0xff] %v3675
      %5372 = vst [vmem:[%s177 + $0xf0] sm:$0xff] %v4216
      %5373 = vst [vmem:[%s177 + $0xf8] sm:$0xff] %v4218
      %5374 = vst [vmem:[%s177 + $0x100] sm:$0xff] %v4759
      %5375 = vst [vmem:[%s177 + $0x108] sm:$0xff] %v4761
      %5376 = vst.msk [vmem:[%s177 + $0x110] sm:$0xff] %vm5347, %v5240
      %5377 = vst [vmem:[%s177 + $0x118] sm:$0xff] %v3677
      %5378 = vst [vmem:[%s177 + $0x120] sm:$0xff] %v3679
      %5379 = vst [vmem:[%s177 + $0x128] sm:$0xff] %v4220
      %5380 = vst [vmem:[%s177 + $0x130] sm:$0xff] %v4222
      %5381 = vst [vmem:[%s177 + $0x138] sm:$0xff] %v4763
      %5382 = vst [vmem:[%s177 + $0x140] sm:$0xff] %v4765
      %5383 = vst.msk [vmem:[%s177 + $0x148] sm:$0xff] %vm5347, %v5243
      %5384 = vst [vmem:[%s177 + $0x150] sm:$0xff] %v3683
      %5385 = vst [vmem:[%s177 + $0x158] sm:$0xff] %v3685
      %5386 = vst [vmem:[%s177 + $0x160] sm:$0xff] %v4226
      %5387 = vst [vmem:[%s177 + $0x168] sm:$0xff] %v4228
      %5388 = vst [vmem:[%s177 + $0x170] sm:$0xff] %v4769
      %5389 = vst [vmem:[%s177 + $0x178] sm:$0xff] %v4771
      %5390 = vst.msk [vmem:[%s177 + $0x180] sm:$0xff] %vm5347, %v5248
      %5391 = vst [vmem:[%s177 + $0x188] sm:$0xff] %v3687
      %5392 = vst [vmem:[%s177 + $0x190] sm:$0xff] %v3689
      %5393 = vst [vmem:[%s177 + $0x198] sm:$0xff] %v4230
      %5394 = vst [vmem:[%s177 + $0x1a0] sm:$0xff] %v4232
      %5395 = vst [vmem:[%s177 + $0x1a8] sm:$0xff] %v4773
      %5396 = vst [vmem:[%s177 + $0x1b0] sm:$0xff] %v4775
      %5397 = vst.msk [vmem:[%s177 + $0x1b8] sm:$0xff] %vm5347, %v5251
      %5398 = vst [vmem:[%s177 + $0x1c0] sm:$0xff] %v3693
      %5399 = vst [vmem:[%s177 + $0x1c8] sm:$0xff] %v3695
      %5400 = vst [vmem:[%s177 + $0x1d0] sm:$0xff] %v4236
      %5401 = vst [vmem:[%s177 + $0x1d8] sm:$0xff] %v4238
      %5402 = vst [vmem:[%s177 + $0x1e0] sm:$0xff] %v4779
      %5403 = vst [vmem:[%s177 + $0x1e8] sm:$0xff] %v4781
      %5404 = vst.msk [vmem:[%s177 + $0x1f0] sm:$0xff] %vm5347, %v5256
      %5405 = vst [vmem:[%s177 + $0x1f8] sm:$0xff] %v3697
      %5406 = vst [vmem:[%s177 + $0x200] sm:$0xff] %v3699
      %5407 = vst [vmem:[%s177 + $0x208] sm:$0xff] %v4240
      %5408 = vst [vmem:[%s177 + $0x210] sm:$0xff] %v4242
      %5409 = vst [vmem:[%s177 + $0x218] sm:$0xff] %v4783
      %5410 = vst [vmem:[%s177 + $0x220] sm:$0xff] %v4785
      %5411 = vst.msk [vmem:[%s177 + $0x228] sm:$0xff] %vm5347, %v5259
      %5412 = vst [vmem:[%s177 + $0x230] sm:$0xff] %v3703
      %5413 = vst [vmem:[%s177 + $0x238] sm:$0xff] %v3705
      %5414 = vst [vmem:[%s177 + $0x240] sm:$0xff] %v4246
      %5415 = vst [vmem:[%s177 + $0x248] sm:$0xff] %v4248
      %5416 = vst [vmem:[%s177 + $0x250] sm:$0xff] %v4789
      %5417 = vst [vmem:[%s177 + $0x258] sm:$0xff] %v4791
      %5418 = vst.msk [vmem:[%s177 + $0x260] sm:$0xff] %vm5347, %v5264
      %5419 = vst [vmem:[%s177 + $0x268] sm:$0xff] %v3707
      %5420 = vst [vmem:[%s177 + $0x270] sm:$0xff] %v3709
      %5421 = vst [vmem:[%s177 + $0x278] sm:$0xff] %v4250
      %5422 = vst [vmem:[%s177 + $0x280] sm:$0xff] %v4252
      %5423 = vst [vmem:[%s177 + $0x288] sm:$0xff] %v4793
      %5424 = vst [vmem:[%s177 + $0x290] sm:$0xff] %v4795
      %5425 = vst.msk [vmem:[%s177 + $0x298] sm:$0xff] %vm5347, %v5267
      %5426 = vst [vmem:[%s177 + $0x2a0] sm:$0xff] %v3713
      %5427 = vst [vmem:[%s177 + $0x2a8] sm:$0xff] %v3715
      %5428 = vst [vmem:[%s177 + $0x2b0] sm:$0xff] %v4256
      %5429 = vst [vmem:[%s177 + $0x2b8] sm:$0xff] %v4258
      %5430 = vst [vmem:[%s177 + $0x2c0] sm:$0xff] %v4799
      %5431 = vst [vmem:[%s177 + $0x2c8] sm:$0xff] %v4801
      %5432 = vst.msk [vmem:[%s177 + $0x2d0] sm:$0xff] %vm5347, %v5272
      %5433 = vst [vmem:[%s177 + $0x2d8] sm:$0xff] %v3717
      %5434 = vst [vmem:[%s177 + $0x2e0] sm:$0xff] %v3719
      %5435 = vst [vmem:[%s177 + $0x2e8] sm:$0xff] %v4260
      %5436 = vst [vmem:[%s177 + $0x2f0] sm:$0xff] %v4262
      %5437 = vst [vmem:[%s177 + $0x2f8] sm:$0xff] %v4803
      %5438 = vst [vmem:[%s177 + $0x300] sm:$0xff] %v4805
      %5439 = vst.msk [vmem:[%s177 + $0x308] sm:$0xff] %vm5347, %v5275
      %5440 = vst [vmem:[%s177 + $0x310] sm:$0xff] %v3723
      %5441 = vst [vmem:[%s177 + $0x318] sm:$0xff] %v3725
      %5442 = vst [vmem:[%s177 + $0x320] sm:$0xff] %v4266
      %5443 = vst [vmem:[%s177 + $0x328] sm:$0xff] %v4268
      %5444 = vst [vmem:[%s177 + $0x330] sm:$0xff] %v4809
      %5445 = vst [vmem:[%s177 + $0x338] sm:$0xff] %v4811
      %5446 = vst.msk [vmem:[%s177 + $0x340] sm:$0xff] %vm5347, %v5280
      %5447 = vst [vmem:[%s177 + $0x348] sm:$0xff] %v3727
      %5448 = vst [vmem:[%s177 + $0x350] sm:$0xff] %v3729
      %5449 = vst [vmem:[%s177 + $0x358] sm:$0xff] %v4270
      %5450 = vst [vmem:[%s177 + $0x360] sm:$0xff] %v4272
      %5451 = vst [vmem:[%s177 + $0x368] sm:$0xff] %v4813
      %5452 = vst [vmem:[%s177 + $0x370] sm:$0xff] %v4815
      %5453 = vst.msk [vmem:[%s177 + $0x378] sm:$0xff] %vm5347, %v5283
      %5454 = vst [vmem:[%s177 + $0x380] sm:$0xff] %v3733
      %5455 = vst [vmem:[%s177 + $0x388] sm:$0xff] %v3735
      %5456 = vst [vmem:[%s177 + $0x390] sm:$0xff] %v4276
      %5457 = vst [vmem:[%s177 + $0x398] sm:$0xff] %v4278
      %5458 = vst [vmem:[%s177 + $0x3a0] sm:$0xff] %v4819
      %5459 = vst [vmem:[%s177 + $0x3a8] sm:$0xff] %v4821
      %5460 = vst.msk [vmem:[%s177 + $0x3b0] sm:$0xff] %vm5347, %v5288
      %5461 = vst [vmem:[%s177 + $0x3b8] sm:$0xff] %v3737
      %5462 = vst [vmem:[%s177 + $0x3c0] sm:$0xff] %v3739
      %5463 = vst [vmem:[%s177 + $0x3c8] sm:$0xff] %v4280
      %5464 = vst [vmem:[%s177 + $0x3d0] sm:$0xff] %v4282
      %5465 = vst [vmem:[%s177 + $0x3d8] sm:$0xff] %v4823
      %5466 = vst [vmem:[%s177 + $0x3e0] sm:$0xff] %v4825
      %5467 = vst.msk [vmem:[%s177 + $0x3e8] sm:$0xff] %vm5347, %v5291
      %5468 = vst [vmem:[%s177 + $0x3f0] sm:$0xff] %v3743
      %5469 = vst [vmem:[%s177 + $0x3f8] sm:$0xff] %v3745
      %5470 = vst [vmem:[%s177 + $0x400] sm:$0xff] %v4286
      %5471 = vst [vmem:[%s177 + $0x408] sm:$0xff] %v4288
      %5472 = vst [vmem:[%s177 + $0x410] sm:$0xff] %v4829
      %5473 = vst [vmem:[%s177 + $0x418] sm:$0xff] %v4831
      %5474 = vst.msk [vmem:[%s177 + $0x420] sm:$0xff] %vm5347, %v5296
      %5475 = vst [vmem:[%s177 + $0x428] sm:$0xff] %v3747
      %5476 = vst [vmem:[%s177 + $0x430] sm:$0xff] %v3749
      %5477 = vst [vmem:[%s177 + $0x438] sm:$0xff] %v4290
      %5478 = vst [vmem:[%s177 + $0x440] sm:$0xff] %v4292
      %5479 = vst [vmem:[%s177 + $0x448] sm:$0xff] %v4833
      %5480 = vst [vmem:[%s177 + $0x450] sm:$0xff] %v4835
      %5481 = vst.msk [vmem:[%s177 + $0x458] sm:$0xff] %vm5347, %v5299
      %5482 = vst [vmem:[%s177 + $0x460] sm:$0xff] %v3753
      %5483 = vst [vmem:[%s177 + $0x468] sm:$0xff] %v3755
      %5484 = vst [vmem:[%s177 + $0x470] sm:$0xff] %v4296
      %5485 = vst [vmem:[%s177 + $0x478] sm:$0xff] %v4298
      %5486 = vst [vmem:[%s177 + $0x480] sm:$0xff] %v4839
      %5487 = vst [vmem:[%s177 + $0x488] sm:$0xff] %v4841
      %5488 = vst.msk [vmem:[%s177 + $0x490] sm:$0xff] %vm5347, %v5304
      %5489 = vst [vmem:[%s177 + $0x498] sm:$0xff] %v3757
      %5490 = vst [vmem:[%s177 + $0x4a0] sm:$0xff] %v3759
      %5491 = vst [vmem:[%s177 + $0x4a8] sm:$0xff] %v4300
      %5492 = vst [vmem:[%s177 + $0x4b0] sm:$0xff] %v4302
      %5493 = vst [vmem:[%s177 + $0x4b8] sm:$0xff] %v4843
      %5494 = vst [vmem:[%s177 + $0x4c0] sm:$0xff] %v4845
      %5495 = vst.msk [vmem:[%s177 + $0x4c8] sm:$0xff] %vm5347, %v5307
      %5496 = vst [vmem:[%s177 + $0x4d0] sm:$0xff] %v3763
      %5497 = vst [vmem:[%s177 + $0x4d8] sm:$0xff] %v3765
      %5498 = vst [vmem:[%s177 + $0x4e0] sm:$0xff] %v4306
      %5499 = vst [vmem:[%s177 + $0x4e8] sm:$0xff] %v4308
      %5500 = vst [vmem:[%s177 + $0x4f0] sm:$0xff] %v4849
      %5501 = vst [vmem:[%s177 + $0x4f8] sm:$0xff] %v4851
      %5502 = vst.msk [vmem:[%s177 + $0x500] sm:$0xff] %vm5347, %v5312
      %5503 = vst [vmem:[%s177 + $0x508] sm:$0xff] %v3767
      %5504 = vst [vmem:[%s177 + $0x510] sm:$0xff] %v3769
      %5505 = vst [vmem:[%s177 + $0x518] sm:$0xff] %v4310
      %5506 = vst [vmem:[%s177 + $0x520] sm:$0xff] %v4312
      %5507 = vst [vmem:[%s177 + $0x528] sm:$0xff] %v4853
      %5508 = vst [vmem:[%s177 + $0x530] sm:$0xff] %v4855
      %5509 = vst.msk [vmem:[%s177 + $0x538] sm:$0xff] %vm5347, %v5315
      %5510 = vst [vmem:[%s177 + $0x540] sm:$0xff] %v3773
      %5511 = vst [vmem:[%s177 + $0x548] sm:$0xff] %v3775
      %5512 = vst [vmem:[%s177 + $0x550] sm:$0xff] %v4316
      %5513 = vst [vmem:[%s177 + $0x558] sm:$0xff] %v4318
      %5514 = vst [vmem:[%s177 + $0x560] sm:$0xff] %v4859
      %5515 = vst [vmem:[%s177 + $0x568] sm:$0xff] %v4861
      %5516 = vst.msk [vmem:[%s177 + $0x570] sm:$0xff] %vm5347, %v5320
      %5517 = vst [vmem:[%s177 + $0x578] sm:$0xff] %v3777
      %5518 = vst [vmem:[%s177 + $0x580] sm:$0xff] %v3779
      %5519 = vst [vmem:[%s177 + $0x588] sm:$0xff] %v4320
      %5520 = vst [vmem:[%s177 + $0x590] sm:$0xff] %v4322
      %5521 = vst [vmem:[%s177 + $0x598] sm:$0xff] %v4863
      %5522 = vst [vmem:[%s177 + $0x5a0] sm:$0xff] %v4865
      %5523 = vst.msk [vmem:[%s177 + $0x5a8] sm:$0xff] %vm5347, %v5323
      %5524 = vst [vmem:[%s177 + $0x5b0] sm:$0xff] %v3783
      %5525 = vst [vmem:[%s177 + $0x5b8] sm:$0xff] %v3785
      %5526 = vst [vmem:[%s177 + $0x5c0] sm:$0xff] %v4326
      %5527 = vst [vmem:[%s177 + $0x5c8] sm:$0xff] %v4328
      %5528 = vst [vmem:[%s177 + $0x5d0] sm:$0xff] %v4869
      %5529 = vst [vmem:[%s177 + $0x5d8] sm:$0xff] %v4871
      %5530 = vst.msk [vmem:[%s177 + $0x5e0] sm:$0xff] %vm5347, %v5328
      %5531 = vst [vmem:[%s177 + $0x5e8] sm:$0xff] %v3787
      %5532 = vst [vmem:[%s177 + $0x5f0] sm:$0xff] %v3789
      %5533 = vst [vmem:[%s177 + $0x5f8] sm:$0xff] %v4330
      %5534 = vst [vmem:[%s177 + $0x600] sm:$0xff] %v4332
      %5535 = vst [vmem:[%s177 + $0x608] sm:$0xff] %v4873
      %5536 = vst [vmem:[%s177 + $0x610] sm:$0xff] %v4875
      %5537 = vst.msk [vmem:[%s177 + $0x618] sm:$0xff] %vm5347, %v5331
      %5538 = vst [vmem:[%s177 + $0x620] sm:$0xff] %v3793
      %5539 = vst [vmem:[%s177 + $0x628] sm:$0xff] %v3795
      %5540 = vst [vmem:[%s177 + $0x630] sm:$0xff] %v4336
      %5541 = vst [vmem:[%s177 + $0x638] sm:$0xff] %v4338
      %5542 = vst [vmem:[%s177 + $0x640] sm:$0xff] %v4879
      %5543 = vst [vmem:[%s177 + $0x648] sm:$0xff] %v4881
      %5544 = vst.msk [vmem:[%s177 + $0x650] sm:$0xff] %vm5347, %v5336
      %s5545 = smul.u32 29, %s14
      %p5546 = scmp.lt.s32.totalorder %s5545, 86
      %s5547 = scalar_select %p5546, %s5545, 86
      %s5548 = smul.addr %s5547, 7
      %s5549 = smul.addr %s5548, 8
      %s5550 = scalar_lea.vmem %s3, %s5549
      // Predicated region
      $region33: #{tpu_custom_call.1} parent=31 // pred_check
        %p5551 = pneg %p100
      $region34: #{tpu_custom_call.1} parent=31 // pred_check_branch
        %5553 = sbr.rel (%p5551) target = $region36
      $region35: #{tpu_custom_call.1} parent=31 // pred_region
        %s5554 = smul.u32 29, %s14
      $region36: #{tpu_custom_call.1} parent=31 // pred_fallthru
        _
    $region32: #{tpu_custom_call.1} parent=5 // pred_fallthru
      _
    %p5555 = scmp.le.s32.totalorder 2, %s9
    // Predicated region
    $region37: #{tpu_custom_call.1} parent=5 // pred_check
      %p5556 = pneg %p5555
    $region38: #{tpu_custom_call.1} parent=5 // pred_check_branch
      %5558 = sbr.rel (%p5556) target = $region40
    $region39: #{tpu_custom_call.1} parent=5 // pred_region
      %s5559 = ssub.s32 %s9, 2
      // Predicated region
      $region41: #{tpu_custom_call.1} parent=39 // pred_check
        %p5560 = pneg %p106
      $region42: #{tpu_custom_call.1} parent=39 // pred_check_branch
        %5562 = sbr.rel (%p5560) target = $region44
      $region43: #{tpu_custom_call.1} parent=39 // pred_region
        %s5563 = smul.u32 29, %s15
        %p5564 = scmp.lt.s32.totalorder %s5563, 86
        %s5565 = scalar_select %p5564, %s5563, 86
        %s5566 = smul.addr %s5565, 7
        %s5567 = smul.addr %s5566, 8
        %s5568 = scalar_lea.vmem %s3, %s5567
      $region44: #{tpu_custom_call.1} parent=39 // pred_fallthru
        _
    $region40: #{tpu_custom_call.1} parent=5 // pred_fallthru
      _
  $region6: #{tpu_custom_call.1} parent=0 // loop_footer
    %s13 = sadd.s32 1, %s9
  $region7: #{tpu_custom_call.1} parent=0 // loop_footer_branch
    %8 = sbr.rel target = $region3
  $region8: #{tpu_custom_call.1} parent=0 // loop_exit
    _

</llo_original>
